<compile_context>
chip_gen: v6e
topology: v6e:2x2x1
jax: 0.10.0
libtpu: 0.0.40
codegen_flags: <defaults>
</compile_context>

<pallas_src>
import functools
import numpy as np
import jax
import jax.numpy as jnp
from jax import lax
from jax.experimental import pallas as pl
from jax.experimental.pallas import tpu as pltpu

# ----------------------------- configuration --------------------------------
NUMI = 3          # gJSON['numi']
WIDTH = 32
RANK = 4
N_LAYERS = 4      # len(nets) ; len(bs) == N_LAYERS - 1
HIDDEN = 64       # hidden width of the phi / psi DenseNets inside LowRank1d
B = 2             # batch
N = 64            # number of spatial points (after stripping the numi scalars)

RW = RANK * WIDTH          # 128
H2 = 2 * HIDDEN            # 128

# wide (128-lane) slab row offsets
R_P1 = 0                            # (3 rows per net-pair) * N_LAYERS, padded to 16
R_B2 = 16                           # 2 * N_LAYERS rows: [phi_bias_l, psi_bias_l] per layer
R_SEG = R_B2 + 2 * N_LAYERS         # 24: 8-row batch segment-sum matrix (1/n folded)
R_G = R_SEG + 8                     # 32: per-rank segment-sum matrix (rw, rw)
R_FT = R_G + RW                     # 160: rank-replication matrix ftT (W, rw)
WIDE_ROWS = R_FT + WIDTH            # 192

# narrow (32-lane) slab row offsets
R_FM = 0                            # fold matrix fmat (rw, W)
R_WW = R_FM + RW                    # ws[l] weights, (W, W) per layer
R_W0 = R_WW + N_LAYERS * WIDTH
R_B0 = R_W0 + 2
R_BW = R_B0 + 1
R_BNS = R_BW + N_LAYERS
R_BNH = R_BNS + (N_LAYERS - 1)
R_W12 = R_BNH + (N_LAYERS - 1)
R_B12 = R_W12 + 1
NAR_ROWS = R_B12 + 1


def _gelu_tanh(x):
    # TODO(synk): PyTorch F.gelu default is the exact erf form; the tanh approximation
    #             is used here (EUP-friendly), max abs diff ~1e-3.
    c = 0.7978845608028654  # sqrt(2/pi)
    return 0.5 * x * (1.0 + jnp.tanh(c * (x + 0.044715 * x * x * x)))


# ------------------------------- kernel --------------------------------------
def lrnol_kernel(va_ref, w2_ref, wide_ref, nar_ref, out_ref, *, batch, n):
    """Single-invocation kernel over the whole (B*n, .) problem.

    va_ref   : (B*n, 2) f32                 columns = [field, grid]
    w2_ref   : (L*2H, 2*RW) f32             per-layer block-diag second-layer weights
    wide_ref : (192, 128) f32               [p1 | b2 | seg | gmat | ftT]
    nar_ref  : (NAR_ROWS, 32) f32           [fmat | ww | w0 | b0 | bw | bn_s | bn_h | w12 | b12]
    out_ref  : (1, B*n) f32                 lane-dense output
    """
    f32 = jnp.float32
    bn = batch * n

    field = va_ref[:, 0:1]                                    # (bn, 1)
    grid = va_ref[:, 1:2]                                     # (bn, 1)

    # constant matrices (loaded once)
    seg8 = wide_ref[R_SEG:R_SEG + 8, :]                       # (8, bn)  rows >= batch are 0
    gmat = wide_ref[R_G:R_G + RW, :]                          # (rw, rw)
    ftT = wide_ref[R_FT:R_FT + WIDTH, :]                      # (W, rw)
    fmat = nar_ref[R_FM:R_FM + RW, :]                         # (rw, W)

    # ---- prologue: ALL input-only phi/psi nets, hoisted off the v-chain ----
    f_h = jnp.broadcast_to(field, (bn, H2))                   # hoisted lane-broadcasts
    g_h = jnp.broadcast_to(grid, (bn, H2))
    phis, psis = [], []
    for l in range(N_LAYERS):
        p = wide_ref[R_P1 + 3 * l:R_P1 + 3 * l + 3, :]        # (3, 128): [w_field; w_grid; bias]
        h = jnp.maximum(f_h * p[0:1, :] + g_h * p[1:2, :] + p[2:3, :], 0.0)   # (bn, 128)
        pq = jnp.dot(h, w2_ref[l * H2:(l + 1) * H2, :],
                     preferred_element_type=f32)              # (bn, 2*rw) one K=128/N=256 matmul
        phis.append(pq[:, :RW] + wide_ref[R_B2 + 2 * l:R_B2 + 2 * l + 1, :])
        psis.append(pq[:, RW:] + wide_ref[R_B2 + 2 * l + 1:R_B2 + 2 * l + 2, :])

    # fc0 as two VPU FMAs (K=2 matmul is lane-sparse on the MXU)
    v = (field * nar_ref[R_W0:R_W0 + 1, :]
         + grid * nar_ref[R_W0 + 1:R_W0 + 2, :]
         + nar_ref[R_B0:R_B0 + 1, :])                         # (bn, WIDTH) f32

    # hoisted batch-row selector for coef
    row = lax.broadcasted_iota(jnp.int32, (bn, RW), 0)

    for l in range(N_LAYERS):
        # ---- low-rank global operator (psi side consumed before phi is touched) ----
        vtile = jnp.dot(v, ftT, preferred_element_type=f32)   # (bn, rw): lane j -> v[:, j%W] (MXU)
        prod = psis[l] * vtile                                 # (bn, rw)
        cs = jnp.dot(seg8, prod, preferred_element_type=f32)   # (8, rw): per-batch col sums * 1/n
        cw = jnp.dot(cs, gmat, preferred_element_type=f32)     # (8, rw): lane j -> coef[b, j//W]
        coef = jnp.broadcast_to(cw[0:1, :], (bn, RW))
        for b in range(1, batch):                               # batch==2: single VPU select
            coef = jnp.where(row >= b * n,
                             jnp.broadcast_to(cw[b:b + 1, :], (bn, RW)), coef)
        v1 = jnp.dot(phis[l] * coef, fmat, preferred_element_type=f32)   # (bn, WIDTH)

        # ---- point-wise linear ws[l] ----
        ww = nar_ref[R_WW + WIDTH * l:R_WW + WIDTH * (l + 1), :]          # (WIDTH, WIDTH)
        v2 = (jnp.dot(v, ww, preferred_element_type=f32)
              + nar_ref[R_BW + l:R_BW + l + 1, :])
        v = v1 + v2

        if l < N_LAYERS - 1:
            # BatchNorm1d (eval, folded) + GELU, all in f32
            v = (v * nar_ref[R_BNS + l:R_BNS + l + 1, :]
                 + nar_ref[R_BNH + l:R_BNH + l + 1, :])
            v = _gelu_tanh(v)

    # fc1 o fc2 folded into a single (WIDTH,) weight; lane-dense (1, bn) result.
    # (contraction over the trailing dims of both operands -> ~4 vxpose ops, one unmasked vst)
    w12 = nar_ref[R_W12:R_W12 + 1, :]                          # (1, WIDTH)
    out = lax.dot_general(w12, v, (((1,), (1,)), ((), ())),
                          preferred_element_type=f32)          # (1, bn)
    out_ref[...] = out + nar_ref[R_B12:R_B12 + 1, 0:1]         # + b12 (scalar splat)


# ------------------------------ wrapper ---------------------------------------
def _prepare_input(v):
    """Mirror the PyTorch glue: strip numi scalars, build grid, concat."""
    # ps = v[:, :NUMI, 0] is computed in the reference forward but never used.
    field = v[:, NUMI:, 0]                                     # (B, n)
    n = field.shape[1]
    gridx = jnp.linspace(0.0, 1.0, n, dtype=jnp.float32)
    gridx = jnp.broadcast_to(gridx[None, :], field.shape)      # (B, n)
    return jnp.stack([field, gridx], axis=-1)                  # (B, n, 2)


def _pack_params(P, batch, n):
    """Pack the 19 parameter arrays into 3 slabs; fold fc1@fc2, 1/n and BN."""
    L, W, R, H = N_LAYERS, WIDTH, RANK, HIDDEN
    bn = batch * n
    assert bn == RW == H2 == 128, "packing assumes B*n == rank*width == 2*hidden == 128"
    assert batch <= 8
    hi = jax.lax.Precision.HIGHEST

    # block-diagonal second-layer slab: (L*2H, 2*rw)
    zeros = jnp.zeros((H, RW), jnp.float32)
    w2_blocks = []
    for l in range(L):
        top = jnp.concatenate([P["wp2"][l], zeros], axis=1)     # (H, 2rw)
        bot = jnp.concatenate([zeros, P["wq2"][l]], axis=1)     # (H, 2rw)
        w2_blocks.append(jnp.concatenate([top, bot], axis=0))   # (2H, 2rw)
    w2bd = jnp.concatenate(w2_blocks, axis=0)                   # (L*2H, 2rw)

    # wide slab (128 lanes): p1 | b2 | seg | gmat | ftT
    p1_rows = []
    for l in range(L):
        wl = jnp.concatenate([P["wp1"][l], P["wq1"][l]], axis=1)   # (2, 2H)
        bl = jnp.concatenate([P["bp1"][l], P["bq1"][l]], axis=1)   # (1, 2H)
        p1_rows.append(jnp.concatenate([wl, bl], axis=0))          # (3, 2H)
    p1 = jnp.concatenate(p1_rows, axis=0)                          # (3L, 2H)
    p1 = jnp.pad(p1, ((0, 16 - 3 * L), (0, 0)))                    # (16, 2H)

    b2 = jnp.concatenate(
        [jnp.concatenate([P["bp2"][l], P["bq2"][l]], axis=0) for l in range(L)],
        axis=0)                                                    # (2L, rw)

    seg = np.zeros((8, bn), np.float32)                            # batch segment sums, 1/n folded
    for b in range(batch):
        seg[b, b * n:(b + 1) * n] = 1.0 / n
    j = np.arange(RW)
    gmat = (j[:, None] // W == j[None, :] // W).astype(np.float32)        # (rw, rw)
    ftT = (np.arange(W)[:, None] == (j[None, :] % W)).astype(np.float32)  # (W, rw)
    wide = jnp.concatenate(
        [p1, b2, jnp.asarray(seg), jnp.asarray(gmat), jnp.asarray(ftT)], axis=0)  # (192, 128)

    # narrow slab (32 lanes): fmat | ww | w0 | b0 | bw | bn_scale | bn_shift | w12 | b12
    fmat = (j[:, None] % W == np.arange(W)[None, :]).astype(np.float32)   # (rw, W)
    w12 = jnp.dot(P["w1"], P["w2"], precision=hi)                         # (W, 1)
    b12 = jnp.dot(P["b1"], P["w2"], precision=hi) + P["b2"]               # (1, 1)
    nar = jnp.concatenate([
        jnp.asarray(fmat),                                                # rows [0, rw)
        P["ww"].reshape(L * W, W),                                        # L*W rows
        P["w0"],                                                          # 2 rows
        P["b0"],                                                          # 1 row
        P["bw"].reshape(L, W),                                            # L rows
        P["bn_scale"].reshape(L - 1, W),                                  # L-1 rows
        P["bn_shift"].reshape(L - 1, W),                                  # L-1 rows
        w12.T,                                                            # 1 row
        jnp.pad(b12, ((0, 0), (0, W - 1))),                               # 1 row: [b12, 0...]
    ], axis=0)                                                            # (NAR_ROWS, W)
    return w2bd, wide, nar


@jax.jit
def lrnol_forward(v, params):
    va3 = _prepare_input(v)                                    # (B, n, 2)
    bsz, n, _ = va3.shape
    bn = bsz * n
    va = va3.reshape(bn, 2)                                    # fold batch into rows
    w2bd, wide, nar = _pack_params(params, bsz, n)

    def _const(a):
        nd = a.ndim
        return pl.BlockSpec(a.shape, lambda i, _nd=nd: (0,) * _nd)

    args = (va, w2bd, wide, nar)                               # 4 inputs (was 6)
    out = pl.pallas_call(
        functools.partial(lrnol_kernel, batch=bsz, n=n),
        out_shape=jax.ShapeDtypeStruct((1, bn), jnp.float32),  # lane-dense output
        grid=(1,),                                             # whole problem in one step
        in_specs=[_const(a) for a in args],
        out_specs=pl.BlockSpec((1, bn), lambda i: (0, 0)),
        compiler_params=pltpu.CompilerParams(dimension_semantics=("arbitrary",)),
    )(*args)
    # NOTE(v7x): at bn=128 a single grid step is right; only split over row blocks
    # (leading "parallel" axis) if bn grows >= ~512 so both TensorCores get work.
    return out.reshape(bsz, n, 1)


# ------------------------- pure-JAX reference ---------------------------------
def lrnol_reference(v, P):
    hi = jax.lax.Precision.HIGHEST
    va = _prepare_input(v)                                     # (B, n, 2)
    n = va.shape[1]
    x = jnp.einsum("bnc,cw->bnw", va, P["w0"], precision=hi) + P["b0"]
    for l in range(N_LAYERS):
        hp = jax.nn.relu(jnp.einsum("bnc,ch->bnh", va, P["wp1"][l], precision=hi) + P["bp1"][l])
        phi = jnp.einsum("bnh,hk->bnk", hp, P["wp2"][l], precision=hi) + P["bp2"][l]
        hq = jax.nn.relu(jnp.einsum("bnc,ch->bnh", va, P["wq1"][l], precision=hi) + P["bq1"][l])
        psi = jnp.einsum("bnh,hk->bnk", hq, P["wq2"][l], precision=hi) + P["bq2"][l]
        phi = phi.reshape(va.shape[0], n, RANK, WIDTH)
        psi = psi.reshape(va.shape[0], n, RANK, WIDTH)
        coef = jnp.einsum("bkri,bki->br", psi, x, precision=hi) / n
        v1 = jnp.einsum("bmro,br->bmo", phi, coef, precision=hi)
        v2 = jnp.einsum("bni,io->bno", x, P["ww"][l], precision=hi) + P["bw"][l]
        x = v1 + v2
        if l < N_LAYERS - 1:
            x = x * P["bn_scale"][l] + P["bn_shift"][l]
            x = _gelu_tanh(x)
    x = jnp.einsum("bnw,wk->bnk", x, P["w1"], precision=hi) + P["b1"]
    x = jnp.einsum("bnk,ko->bno", x, P["w2"], precision=hi) + P["b2"]
    return x


# ------------------------- deterministic parameters ---------------------------
def init_params(key):
    ks = jax.random.split(key, 20)
    nrm = lambda k, shape, s=0.1: s * jax.random.normal(k, shape, dtype=jnp.float32)
    P = {}
    P["w0"] = nrm(ks[0], (2, WIDTH));             P["b0"] = nrm(ks[1], (1, WIDTH))
    P["wp1"] = nrm(ks[2], (N_LAYERS, 2, HIDDEN)); P["bp1"] = nrm(ks[3], (N_LAYERS, 1, HIDDEN))
    P["wp2"] = nrm(ks[4], (N_LAYERS, HIDDEN, RANK * WIDTH))
    P["bp2"] = nrm(ks[5], (N_LAYERS, 1, RANK * WIDTH))
    P["wq1"] = nrm(ks[6], (N_LAYERS, 2, HIDDEN)); P["bq1"] = nrm(ks[7], (N_LAYERS, 1, HIDDEN))
    P["wq2"] = nrm(ks[8], (N_LAYERS, HIDDEN, RANK * WIDTH))
    P["bq2"] = nrm(ks[9], (N_LAYERS, 1, RANK * WIDTH))
    P["ww"] = nrm(ks[10], (N_LAYERS, WIDTH, WIDTH)); P["bw"] = nrm(ks[11], (N_LAYERS, 1, WIDTH))
    # BatchNorm1d (eval mode): fold (gamma, beta, running_mean, running_var)
    gamma = 1.0 + nrm(ks[12], (N_LAYERS - 1, 1, WIDTH))
    beta = nrm(ks[13], (N_LAYERS - 1, 1, WIDTH))
    rmean = nrm(ks[14], (N_LAYERS - 1, 1, WIDTH))
    rvar = 1.0 + 0.1 * jnp.abs(jax.random.normal(ks[15], (N_LAYERS - 1, 1, WIDTH), dtype=jnp.float32))
    scale = gamma * jax.lax.rsqrt(rvar + 1e-5)
    P["bn_scale"] = scale
    P["bn_shift"] = beta - rmean * scale
    P["w1"] = nrm(ks[16], (WIDTH, 2 * WIDTH));    P["b1"] = nrm(ks[17], (1, 2 * WIDTH))
    P["w2"] = nrm(ks[18], (2 * WIDTH, 1));        P["b2"] = nrm(ks[19], (1, 1))
    return P


# --------------------------------- main ---------------------------------------
if __name__ == "__main__":
    key = jax.random.PRNGKey(0)
    kv, kp = jax.random.split(key)
    # input mirrors the PyTorch forward: v of shape (B, numi + n, 1)
    v = jax.random.normal(kv, (B, NUMI + N, 1), dtype=jnp.float32)
    params = init_params(kp)

    out = jax.block_until_ready(lrnol_forward(v, params))
    ref = jax.block_until_ready(lrnol_reference(v, params))

    assert out.shape == (B, N, 1), out.shape
    np.testing.assert_allclose(np.asarray(out), np.asarray(ref), atol=1e-2, rtol=1e-2)
    print("KERNEL_OK")
</pallas_src>

<mosaic_0001>
module attributes {stable_mosaic.version = 11 : i64} {
  func.func @lrnol_kernel(%arg0: i32, %arg1: memref<128x2xf32, #tpu.memory_space<vmem>>, %arg2: memref<512x256xf32, #tpu.memory_space<vmem>>, %arg3: memref<192x128xf32, #tpu.memory_space<vmem>>, %arg4: memref<271x32xf32, #tpu.memory_space<vmem>>, %arg5: memref<1x128xf32, #tpu.memory_space<vmem>>) attributes {dimension_semantics = [#tpu.dimension_semantics<arbitrary>], iteration_bounds = array<i64: 1>, scalar_prefetch = 0 : i64, scratch_operands = 0 : i64, tpu.core_type = #tpu.core_type<tc>, window_params = [{pipeline_mode = #tpu.pipeline_mode<synchronous>, transform_indices = @transform_0, window_bounds = array<i64: 128, 2>}, {pipeline_mode = #tpu.pipeline_mode<synchronous>, transform_indices = @transform_1, window_bounds = array<i64: 512, 256>}, {pipeline_mode = #tpu.pipeline_mode<synchronous>, transform_indices = @transform_2, window_bounds = array<i64: 192, 128>}, {pipeline_mode = #tpu.pipeline_mode<synchronous>, transform_indices = @transform_3, window_bounds = array<i64: 271, 32>}, {pipeline_mode = #tpu.pipeline_mode<synchronous>, transform_indices = @transform_4, window_bounds = array<i64: 1, 128>}]} {
    %c0 = arith.constant 0 : index
    %c0_0 = arith.constant 0 : index
    %0 = vector.load %arg1[%c0, %c0_0] : memref<128x2xf32, #tpu.memory_space<vmem>>, vector<128x1xf32>
    %c0_1 = arith.constant 0 : index
    %c1 = arith.constant 1 : index
    %1 = vector.load %arg1[%c0_1, %c1] : memref<128x2xf32, #tpu.memory_space<vmem>>, vector<128x1xf32>
    %c24 = arith.constant 24 : index
    %c0_2 = arith.constant 0 : index
    %2 = vector.load %arg3[%c24, %c0_2] : memref<192x128xf32, #tpu.memory_space<vmem>>, vector<8x128xf32>
    %c32 = arith.constant 32 : index
    %c0_3 = arith.constant 0 : index
    %3 = vector.load %arg3[%c32, %c0_3] : memref<192x128xf32, #tpu.memory_space<vmem>>, vector<128x128xf32>
    %c160 = arith.constant 160 : index
    %c0_4 = arith.constant 0 : index
    %4 = vector.load %arg3[%c160, %c0_4] : memref<192x128xf32, #tpu.memory_space<vmem>>, vector<32x128xf32>
    %c0_5 = arith.constant 0 : index
    %c0_6 = arith.constant 0 : index
    %5 = vector.load %arg4[%c0_5, %c0_6] : memref<271x32xf32, #tpu.memory_space<vmem>>, vector<128x32xf32>
    %6 = vector.shape_cast %0 : vector<128x1xf32> to vector<128x1xf32>
    %7 = vector.broadcast %6 : vector<128x1xf32> to vector<128x128xf32>
    %8 = vector.shape_cast %1 : vector<128x1xf32> to vector<128x1xf32>
    %9 = vector.broadcast %8 : vector<128x1xf32> to vector<128x128xf32>
    %c0_7 = arith.constant 0 : index
    %c0_8 = arith.constant 0 : index
    %10 = vector.load %arg3[%c0_7, %c0_8] : memref<192x128xf32, #tpu.memory_space<vmem>>, vector<3x128xf32>
    %11 = vector.extract_strided_slice %10 {offsets = [0, 0], sizes = [1, 128], strides = [1, 1]} : vector<3x128xf32> to vector<1x128xf32>
    %12 = vector.broadcast %11 : vector<1x128xf32> to vector<128x128xf32>
    %13 = arith.mulf %7, %12 : vector<128x128xf32>
    %14 = vector.extract_strided_slice %10 {offsets = [1, 0], sizes = [1, 128], strides = [1, 1]} : vector<3x128xf32> to vector<1x128xf32>
    %15 = vector.broadcast %14 : vector<1x128xf32> to vector<128x128xf32>
    %16 = arith.mulf %9, %15 : vector<128x128xf32>
    %17 = arith.addf %13, %16 : vector<128x128xf32>
    %18 = vector.extract_strided_slice %10 {offsets = [2, 0], sizes = [1, 128], strides = [1, 1]} : vector<3x128xf32> to vector<1x128xf32>
    %19 = vector.broadcast %18 : vector<1x128xf32> to vector<128x128xf32>
    %20 = arith.addf %17, %19 : vector<128x128xf32>
    %cst = arith.constant 0.000000e+00 : f32
    %21 = vector.broadcast %cst : f32 to vector<128x128xf32>
    %22 = arith.maximumf %20, %21 : vector<128x128xf32>
    %c0_9 = arith.constant 0 : index
    %c0_10 = arith.constant 0 : index
    %23 = vector.load %arg2[%c0_9, %c0_10] : memref<512x256xf32, #tpu.memory_space<vmem>>, vector<128x256xf32>
    %cst_11 = arith.constant dense<0.000000e+00> : vector<128x256xf32>
    %24 = tpu.matmul %22, %23, %cst_11 {dimension_numbers = #tpu.dot_dimension_numbers<[1], [0], [0], [1], [0, 0, 1, 1], [], []>} : vector<128x128xf32>, vector<128x256xf32>, vector<128x256xf32> -> vector<128x256xf32>
    %25 = vector.extract_strided_slice %24 {offsets = [0, 0], sizes = [128, 128], strides = [1, 1]} : vector<128x256xf32> to vector<128x128xf32>
    %c16 = arith.constant 16 : index
    %c0_12 = arith.constant 0 : index
    %26 = vector.load %arg3[%c16, %c0_12] : memref<192x128xf32, #tpu.memory_space<vmem>>, vector<1x128xf32>
    %27 = vector.broadcast %26 : vector<1x128xf32> to vector<128x128xf32>
    %28 = arith.addf %25, %27 : vector<128x128xf32>
    %29 = vector.extract_strided_slice %24 {offsets = [0, 128], sizes = [128, 128], strides = [1, 1]} : vector<128x256xf32> to vector<128x128xf32>
    %c17 = arith.constant 17 : index
    %c0_13 = arith.constant 0 : index
    %30 = vector.load %arg3[%c17, %c0_13] : memref<192x128xf32, #tpu.memory_space<vmem>>, vector<1x128xf32>
    %31 = vector.broadcast %30 : vector<1x128xf32> to vector<128x128xf32>
    %32 = arith.addf %29, %31 : vector<128x128xf32>
    %c3 = arith.constant 3 : index
    %c0_14 = arith.constant 0 : index
    %33 = vector.load %arg3[%c3, %c0_14] : memref<192x128xf32, #tpu.memory_space<vmem>>, vector<3x128xf32>
    %34 = vector.extract_strided_slice %33 {offsets = [0, 0], sizes = [1, 128], strides = [1, 1]} : vector<3x128xf32> to vector<1x128xf32>
    %35 = vector.broadcast %34 : vector<1x128xf32> to vector<128x128xf32>
    %36 = arith.mulf %7, %35 : vector<128x128xf32>
    %37 = vector.extract_strided_slice %33 {offsets = [1, 0], sizes = [1, 128], strides = [1, 1]} : vector<3x128xf32> to vector<1x128xf32>
    %38 = vector.broadcast %37 : vector<1x128xf32> to vector<128x128xf32>
    %39 = arith.mulf %9, %38 : vector<128x128xf32>
    %40 = arith.addf %36, %39 : vector<128x128xf32>
    %41 = vector.extract_strided_slice %33 {offsets = [2, 0], sizes = [1, 128], strides = [1, 1]} : vector<3x128xf32> to vector<1x128xf32>
    %42 = vector.broadcast %41 : vector<1x128xf32> to vector<128x128xf32>
    %43 = arith.addf %40, %42 : vector<128x128xf32>
    %cst_15 = arith.constant 0.000000e+00 : f32
    %44 = vector.broadcast %cst_15 : f32 to vector<128x128xf32>
    %45 = arith.maximumf %43, %44 : vector<128x128xf32>
    %c128 = arith.constant 128 : index
    %c0_16 = arith.constant 0 : index
    %46 = vector.load %arg2[%c128, %c0_16] : memref<512x256xf32, #tpu.memory_space<vmem>>, vector<128x256xf32>
    %cst_17 = arith.constant dense<0.000000e+00> : vector<128x256xf32>
    %47 = tpu.matmul %45, %46, %cst_17 {dimension_numbers = #tpu.dot_dimension_numbers<[1], [0], [0], [1], [0, 0, 1, 1], [], []>} : vector<128x128xf32>, vector<128x256xf32>, vector<128x256xf32> -> vector<128x256xf32>
    %48 = vector.extract_strided_slice %47 {offsets = [0, 0], sizes = [128, 128], strides = [1, 1]} : vector<128x256xf32> to vector<128x128xf32>
    %c18 = arith.constant 18 : index
    %c0_18 = arith.constant 0 : index
    %49 = vector.load %arg3[%c18, %c0_18] : memref<192x128xf32, #tpu.memory_space<vmem>>, vector<1x128xf32>
    %50 = vector.broadcast %49 : vector<1x128xf32> to vector<128x128xf32>
    %51 = arith.addf %48, %50 : vector<128x128xf32>
    %52 = vector.extract_strided_slice %47 {offsets = [0, 128], sizes = [128, 128], strides = [1, 1]} : vector<128x256xf32> to vector<128x128xf32>
    %c19 = arith.constant 19 : index
    %c0_19 = arith.constant 0 : index
    %53 = vector.load %arg3[%c19, %c0_19] : memref<192x128xf32, #tpu.memory_space<vmem>>, vector<1x128xf32>
    %54 = vector.broadcast %53 : vector<1x128xf32> to vector<128x128xf32>
    %55 = arith.addf %52, %54 : vector<128x128xf32>
    %c6 = arith.constant 6 : index
    %c0_20 = arith.constant 0 : index
    %56 = vector.load %arg3[%c6, %c0_20] : memref<192x128xf32, #tpu.memory_space<vmem>>, vector<3x128xf32>
    %57 = vector.extract_strided_slice %56 {offsets = [0, 0], sizes = [1, 128], strides = [1, 1]} : vector<3x128xf32> to vector<1x128xf32>
    %58 = vector.broadcast %57 : vector<1x128xf32> to vector<128x128xf32>
    %59 = arith.mulf %7, %58 : vector<128x128xf32>
    %60 = vector.extract_strided_slice %56 {offsets = [1, 0], sizes = [1, 128], strides = [1, 1]} : vector<3x128xf32> to vector<1x128xf32>
    %61 = vector.broadcast %60 : vector<1x128xf32> to vector<128x128xf32>
    %62 = arith.mulf %9, %61 : vector<128x128xf32>
    %63 = arith.addf %59, %62 : vector<128x128xf32>
    %64 = vector.extract_strided_slice %56 {offsets = [2, 0], sizes = [1, 128], strides = [1, 1]} : vector<3x128xf32> to vector<1x128xf32>
    %65 = vector.broadcast %64 : vector<1x128xf32> to vector<128x128xf32>
    %66 = arith.addf %63, %65 : vector<128x128xf32>
    %cst_21 = arith.constant 0.000000e+00 : f32
    %67 = vector.broadcast %cst_21 : f32 to vector<128x128xf32>
    %68 = arith.maximumf %66, %67 : vector<128x128xf32>
    %c256 = arith.constant 256 : index
    %c0_22 = arith.constant 0 : index
    %69 = vector.load %arg2[%c256, %c0_22] : memref<512x256xf32, #tpu.memory_space<vmem>>, vector<128x256xf32>
    %cst_23 = arith.constant dense<0.000000e+00> : vector<128x256xf32>
    %70 = tpu.matmul %68, %69, %cst_23 {dimension_numbers = #tpu.dot_dimension_numbers<[1], [0], [0], [1], [0, 0, 1, 1], [], []>} : vector<128x128xf32>, vector<128x256xf32>, vector<128x256xf32> -> vector<128x256xf32>
    %71 = vector.extract_strided_slice %70 {offsets = [0, 0], sizes = [128, 128], strides = [1, 1]} : vector<128x256xf32> to vector<128x128xf32>
    %c20 = arith.constant 20 : index
    %c0_24 = arith.constant 0 : index
    %72 = vector.load %arg3[%c20, %c0_24] : memref<192x128xf32, #tpu.memory_space<vmem>>, vector<1x128xf32>
    %73 = vector.broadcast %72 : vector<1x128xf32> to vector<128x128xf32>
    %74 = arith.addf %71, %73 : vector<128x128xf32>
    %75 = vector.extract_strided_slice %70 {offsets = [0, 128], sizes = [128, 128], strides = [1, 1]} : vector<128x256xf32> to vector<128x128xf32>
    %c21 = arith.constant 21 : index
    %c0_25 = arith.constant 0 : index
    %76 = vector.load %arg3[%c21, %c0_25] : memref<192x128xf32, #tpu.memory_space<vmem>>, vector<1x128xf32>
    %77 = vector.broadcast %76 : vector<1x128xf32> to vector<128x128xf32>
    %78 = arith.addf %75, %77 : vector<128x128xf32>
    %c9 = arith.constant 9 : index
    %c0_26 = arith.constant 0 : index
    %79 = vector.load %arg3[%c9, %c0_26] : memref<192x128xf32, #tpu.memory_space<vmem>>, vector<3x128xf32>
    %80 = vector.extract_strided_slice %79 {offsets = [0, 0], sizes = [1, 128], strides = [1, 1]} : vector<3x128xf32> to vector<1x128xf32>
    %81 = vector.broadcast %80 : vector<1x128xf32> to vector<128x128xf32>
    %82 = arith.mulf %7, %81 : vector<128x128xf32>
    %83 = vector.extract_strided_slice %79 {offsets = [1, 0], sizes = [1, 128], strides = [1, 1]} : vector<3x128xf32> to vector<1x128xf32>
    %84 = vector.broadcast %83 : vector<1x128xf32> to vector<128x128xf32>
    %85 = arith.mulf %9, %84 : vector<128x128xf32>
    %86 = arith.addf %82, %85 : vector<128x128xf32>
    %87 = vector.extract_strided_slice %79 {offsets = [2, 0], sizes = [1, 128], strides = [1, 1]} : vector<3x128xf32> to vector<1x128xf32>
    %88 = vector.broadcast %87 : vector<1x128xf32> to vector<128x128xf32>
    %89 = arith.addf %86, %88 : vector<128x128xf32>
    %cst_27 = arith.constant 0.000000e+00 : f32
    %90 = vector.broadcast %cst_27 : f32 to vector<128x128xf32>
    %91 = arith.maximumf %89, %90 : vector<128x128xf32>
    %c384 = arith.constant 384 : index
    %c0_28 = arith.constant 0 : index
    %92 = vector.load %arg2[%c384, %c0_28] : memref<512x256xf32, #tpu.memory_space<vmem>>, vector<128x256xf32>
    %cst_29 = arith.constant dense<0.000000e+00> : vector<128x256xf32>
    %93 = tpu.matmul %91, %92, %cst_29 {dimension_numbers = #tpu.dot_dimension_numbers<[1], [0], [0], [1], [0, 0, 1, 1], [], []>} : vector<128x128xf32>, vector<128x256xf32>, vector<128x256xf32> -> vector<128x256xf32>
    %94 = vector.extract_strided_slice %93 {offsets = [0, 0], sizes = [128, 128], strides = [1, 1]} : vector<128x256xf32> to vector<128x128xf32>
    %c22 = arith.constant 22 : index
    %c0_30 = arith.constant 0 : index
    %95 = vector.load %arg3[%c22, %c0_30] : memref<192x128xf32, #tpu.memory_space<vmem>>, vector<1x128xf32>
    %96 = vector.broadcast %95 : vector<1x128xf32> to vector<128x128xf32>
    %97 = arith.addf %94, %96 : vector<128x128xf32>
    %98 = vector.extract_strided_slice %93 {offsets = [0, 128], sizes = [128, 128], strides = [1, 1]} : vector<128x256xf32> to vector<128x128xf32>
    %c23 = arith.constant 23 : index
    %c0_31 = arith.constant 0 : index
    %99 = vector.load %arg3[%c23, %c0_31] : memref<192x128xf32, #tpu.memory_space<vmem>>, vector<1x128xf32>
    %100 = vector.broadcast %99 : vector<1x128xf32> to vector<128x128xf32>
    %101 = arith.addf %98, %100 : vector<128x128xf32>
    %c256_32 = arith.constant 256 : index
    %c0_33 = arith.constant 0 : index
    %102 = vector.load %arg4[%c256_32, %c0_33] : memref<271x32xf32, #tpu.memory_space<vmem>>, vector<1x32xf32>
    %103 = vector.broadcast %0 : vector<128x1xf32> to vector<128x32xf32>
    %104 = vector.broadcast %102 : vector<1x32xf32> to vector<128x32xf32>
    %105 = arith.mulf %103, %104 : vector<128x32xf32>
    %c257 = arith.constant 257 : index
    %c0_34 = arith.constant 0 : index
    %106 = vector.load %arg4[%c257, %c0_34] : memref<271x32xf32, #tpu.memory_space<vmem>>, vector<1x32xf32>
    %107 = vector.broadcast %1 : vector<128x1xf32> to vector<128x32xf32>
    %108 = vector.broadcast %106 : vector<1x32xf32> to vector<128x32xf32>
    %109 = arith.mulf %107, %108 : vector<128x32xf32>
    %110 = arith.addf %105, %109 : vector<128x32xf32>
    %c258 = arith.constant 258 : index
    %c0_35 = arith.constant 0 : index
    %111 = vector.load %arg4[%c258, %c0_35] : memref<271x32xf32, #tpu.memory_space<vmem>>, vector<1x32xf32>
    %112 = vector.broadcast %111 : vector<1x32xf32> to vector<128x32xf32>
    %113 = arith.addf %110, %112 : vector<128x32xf32>
    %114 = tpu.iota {dimensions = array<i32: 0>} : vector<128x128xi32>
    %cst_36 = arith.constant dense<0.000000e+00> : vector<128x128xf32>
    %115 = tpu.matmul %113, %4, %cst_36 {dimension_numbers = #tpu.dot_dimension_numbers<[1], [0], [0], [1], [0, 0, 1, 1], [], []>} : vector<128x32xf32>, vector<32x128xf32>, vector<128x128xf32> -> vector<128x128xf32>
    %116 = arith.mulf %32, %115 : vector<128x128xf32>
    %cst_37 = arith.constant dense<0.000000e+00> : vector<8x128xf32>
    %117 = tpu.matmul %2, %116, %cst_37 {dimension_numbers = #tpu.dot_dimension_numbers<[1], [0], [0], [1], [0, 0, 1, 1], [], []>} : vector<8x128xf32>, vector<128x128xf32>, vector<8x128xf32> -> vector<8x128xf32>
    %cst_38 = arith.constant dense<0.000000e+00> : vector<8x128xf32>
    %118 = tpu.matmul %117, %3, %cst_38 {dimension_numbers = #tpu.dot_dimension_numbers<[1], [0], [0], [1], [0, 0, 1, 1], [], []>} : vector<8x128xf32>, vector<128x128xf32>, vector<8x128xf32> -> vector<8x128xf32>
    %119 = vector.extract_strided_slice %118 {offsets = [0, 0], sizes = [1, 128], strides = [1, 1]} : vector<8x128xf32> to vector<1x128xf32>
    %120 = vector.shape_cast %119 : vector<1x128xf32> to vector<1x128xf32>
    %121 = vector.broadcast %120 : vector<1x128xf32> to vector<128x128xf32>
    %c64_i32 = arith.constant 64 : i32
    %122 = vector.broadcast %c64_i32 : i32 to vector<128x128xi32>
    %123 = arith.cmpi sge, %114, %122 : vector<128x128xi32>
    %124 = vector.extract_strided_slice %118 {offsets = [1, 0], sizes = [1, 128], strides = [1, 1]} : vector<8x128xf32> to vector<1x128xf32>
    %125 = vector.shape_cast %124 : vector<1x128xf32> to vector<1x128xf32>
    %126 = vector.broadcast %125 : vector<1x128xf32> to vector<128x128xf32>
    %127 = arith.select %123, %126, %121 : vector<128x128xi1>, vector<128x128xf32>
    %128 = arith.mulf %28, %127 : vector<128x128xf32>
    %cst_39 = arith.constant dense<0.000000e+00> : vector<128x32xf32>
    %129 = tpu.matmul %128, %5, %cst_39 {dimension_numbers = #tpu.dot_dimension_numbers<[1], [0], [0], [1], [0, 0, 1, 1], [], []>} : vector<128x128xf32>, vector<128x32xf32>, vector<128x32xf32> -> vector<128x32xf32>
    %c128_40 = arith.constant 128 : index
    %c0_41 = arith.constant 0 : index
    %130 = vector.load %arg4[%c128_40, %c0_41] : memref<271x32xf32, #tpu.memory_space<vmem>>, vector<32x32xf32>
    %cst_42 = arith.constant dense<0.000000e+00> : vector<128x32xf32>
    %131 = tpu.matmul %113, %130, %cst_42 {dimension_numbers = #tpu.dot_dimension_numbers<[1], [0], [0], [1], [0, 0, 1, 1], [], []>} : vector<128x32xf32>, vector<32x32xf32>, vector<128x32xf32> -> vector<128x32xf32>
    %c259 = arith.constant 259 : index
    %c0_43 = arith.constant 0 : index
    %132 = vector.load %arg4[%c259, %c0_43] : memref<271x32xf32, #tpu.memory_space<vmem>>, vector<1x32xf32>
    %133 = vector.broadcast %132 : vector<1x32xf32> to vector<128x32xf32>
    %134 = arith.addf %131, %133 : vector<128x32xf32>
    %135 = arith.addf %129, %134 : vector<128x32xf32>
    %c263 = arith.constant 263 : index
    %c0_44 = arith.constant 0 : index
    %136 = vector.load %arg4[%c263, %c0_44] : memref<271x32xf32, #tpu.memory_space<vmem>>, vector<1x32xf32>
    %137 = vector.broadcast %136 : vector<1x32xf32> to vector<128x32xf32>
    %138 = arith.mulf %135, %137 : vector<128x32xf32>
    %c266 = arith.constant 266 : index
    %c0_45 = arith.constant 0 : index
    %139 = vector.load %arg4[%c266, %c0_45] : memref<271x32xf32, #tpu.memory_space<vmem>>, vector<1x32xf32>
    %140 = vector.broadcast %139 : vector<1x32xf32> to vector<128x32xf32>
    %141 = arith.addf %138, %140 : vector<128x32xf32>
    %cst_46 = arith.constant 5.000000e-01 : f32
    %142 = vector.broadcast %cst_46 : f32 to vector<128x32xf32>
    %143 = arith.mulf %142, %141 : vector<128x32xf32>
    %cst_47 = arith.constant 4.471500e-02 : f32
    %144 = vector.broadcast %cst_47 : f32 to vector<128x32xf32>
    %145 = arith.mulf %144, %141 : vector<128x32xf32>
    %146 = arith.mulf %145, %141 : vector<128x32xf32>
    %147 = arith.mulf %146, %141 : vector<128x32xf32>
    %148 = arith.addf %141, %147 : vector<128x32xf32>
    %cst_48 = arith.constant 0.797884583 : f32
    %149 = vector.broadcast %cst_48 : f32 to vector<128x32xf32>
    %150 = arith.mulf %149, %148 : vector<128x32xf32>
    %151 = math.tanh %150 : vector<128x32xf32>
    %cst_49 = arith.constant 1.000000e+00 : f32
    %152 = vector.broadcast %cst_49 : f32 to vector<128x32xf32>
    %153 = arith.addf %152, %151 : vector<128x32xf32>
    %154 = arith.mulf %143, %153 : vector<128x32xf32>
    %cst_50 = arith.constant dense<0.000000e+00> : vector<128x128xf32>
    %155 = tpu.matmul %154, %4, %cst_50 {dimension_numbers = #tpu.dot_dimension_numbers<[1], [0], [0], [1], [0, 0, 1, 1], [], []>} : vector<128x32xf32>, vector<32x128xf32>, vector<128x128xf32> -> vector<128x128xf32>
    %156 = arith.mulf %55, %155 : vector<128x128xf32>
    %cst_51 = arith.constant dense<0.000000e+00> : vector<8x128xf32>
    %157 = tpu.matmul %2, %156, %cst_51 {dimension_numbers = #tpu.dot_dimension_numbers<[1], [0], [0], [1], [0, 0, 1, 1], [], []>} : vector<8x128xf32>, vector<128x128xf32>, vector<8x128xf32> -> vector<8x128xf32>
    %cst_52 = arith.constant dense<0.000000e+00> : vector<8x128xf32>
    %158 = tpu.matmul %157, %3, %cst_52 {dimension_numbers = #tpu.dot_dimension_numbers<[1], [0], [0], [1], [0, 0, 1, 1], [], []>} : vector<8x128xf32>, vector<128x128xf32>, vector<8x128xf32> -> vector<8x128xf32>
    %159 = vector.extract_strided_slice %158 {offsets = [0, 0], sizes = [1, 128], strides = [1, 1]} : vector<8x128xf32> to vector<1x128xf32>
    %160 = vector.shape_cast %159 : vector<1x128xf32> to vector<1x128xf32>
    %161 = vector.broadcast %160 : vector<1x128xf32> to vector<128x128xf32>
    %c64_i32_53 = arith.constant 64 : i32
    %162 = vector.broadcast %c64_i32_53 : i32 to vector<128x128xi32>
    %163 = arith.cmpi sge, %114, %162 : vector<128x128xi32>
    %164 = vector.extract_strided_slice %158 {offsets = [1, 0], sizes = [1, 128], strides = [1, 1]} : vector<8x128xf32> to vector<1x128xf32>
    %165 = vector.shape_cast %164 : vector<1x128xf32> to vector<1x128xf32>
    %166 = vector.broadcast %165 : vector<1x128xf32> to vector<128x128xf32>
    %167 = arith.select %163, %166, %161 : vector<128x128xi1>, vector<128x128xf32>
    %168 = arith.mulf %51, %167 : vector<128x128xf32>
    %cst_54 = arith.constant dense<0.000000e+00> : vector<128x32xf32>
    %169 = tpu.matmul %168, %5, %cst_54 {dimension_numbers = #tpu.dot_dimension_numbers<[1], [0], [0], [1], [0, 0, 1, 1], [], []>} : vector<128x128xf32>, vector<128x32xf32>, vector<128x32xf32> -> vector<128x32xf32>
    %c160_55 = arith.constant 160 : index
    %c0_56 = arith.constant 0 : index
    %170 = vector.load %arg4[%c160_55, %c0_56] : memref<271x32xf32, #tpu.memory_space<vmem>>, vector<32x32xf32>
    %cst_57 = arith.constant dense<0.000000e+00> : vector<128x32xf32>
    %171 = tpu.matmul %154, %170, %cst_57 {dimension_numbers = #tpu.dot_dimension_numbers<[1], [0], [0], [1], [0, 0, 1, 1], [], []>} : vector<128x32xf32>, vector<32x32xf32>, vector<128x32xf32> -> vector<128x32xf32>
    %c260 = arith.constant 260 : index
    %c0_58 = arith.constant 0 : index
    %172 = vector.load %arg4[%c260, %c0_58] : memref<271x32xf32, #tpu.memory_space<vmem>>, vector<1x32xf32>
    %173 = vector.broadcast %172 : vector<1x32xf32> to vector<128x32xf32>
    %174 = arith.addf %171, %173 : vector<128x32xf32>
    %175 = arith.addf %169, %174 : vector<128x32xf32>
    %c264 = arith.constant 264 : index
    %c0_59 = arith.constant 0 : index
    %176 = vector.load %arg4[%c264, %c0_59] : memref<271x32xf32, #tpu.memory_space<vmem>>, vector<1x32xf32>
    %177 = vector.broadcast %176 : vector<1x32xf32> to vector<128x32xf32>
    %178 = arith.mulf %175, %177 : vector<128x32xf32>
    %c267 = arith.constant 267 : index
    %c0_60 = arith.constant 0 : index
    %179 = vector.load %arg4[%c267, %c0_60] : memref<271x32xf32, #tpu.memory_space<vmem>>, vector<1x32xf32>
    %180 = vector.broadcast %179 : vector<1x32xf32> to vector<128x32xf32>
    %181 = arith.addf %178, %180 : vector<128x32xf32>
    %cst_61 = arith.constant 5.000000e-01 : f32
    %182 = vector.broadcast %cst_61 : f32 to vector<128x32xf32>
    %183 = arith.mulf %182, %181 : vector<128x32xf32>
    %cst_62 = arith.constant 4.471500e-02 : f32
    %184 = vector.broadcast %cst_62 : f32 to vector<128x32xf32>
    %185 = arith.mulf %184, %181 : vector<128x32xf32>
    %186 = arith.mulf %185, %181 : vector<128x32xf32>
    %187 = arith.mulf %186, %181 : vector<128x32xf32>
    %188 = arith.addf %181, %187 : vector<128x32xf32>
    %cst_63 = arith.constant 0.797884583 : f32
    %189 = vector.broadcast %cst_63 : f32 to vector<128x32xf32>
    %190 = arith.mulf %189, %188 : vector<128x32xf32>
    %191 = math.tanh %190 : vector<128x32xf32>
    %cst_64 = arith.constant 1.000000e+00 : f32
    %192 = vector.broadcast %cst_64 : f32 to vector<128x32xf32>
    %193 = arith.addf %192, %191 : vector<128x32xf32>
    %194 = arith.mulf %183, %193 : vector<128x32xf32>
    %cst_65 = arith.constant dense<0.000000e+00> : vector<128x128xf32>
    %195 = tpu.matmul %194, %4, %cst_65 {dimension_numbers = #tpu.dot_dimension_numbers<[1], [0], [0], [1], [0, 0, 1, 1], [], []>} : vector<128x32xf32>, vector<32x128xf32>, vector<128x128xf32> -> vector<128x128xf32>
    %196 = arith.mulf %78, %195 : vector<128x128xf32>
    %cst_66 = arith.constant dense<0.000000e+00> : vector<8x128xf32>
    %197 = tpu.matmul %2, %196, %cst_66 {dimension_numbers = #tpu.dot_dimension_numbers<[1], [0], [0], [1], [0, 0, 1, 1], [], []>} : vector<8x128xf32>, vector<128x128xf32>, vector<8x128xf32> -> vector<8x128xf32>
    %cst_67 = arith.constant dense<0.000000e+00> : vector<8x128xf32>
    %198 = tpu.matmul %197, %3, %cst_67 {dimension_numbers = #tpu.dot_dimension_numbers<[1], [0], [0], [1], [0, 0, 1, 1], [], []>} : vector<8x128xf32>, vector<128x128xf32>, vector<8x128xf32> -> vector<8x128xf32>
    %199 = vector.extract_strided_slice %198 {offsets = [0, 0], sizes = [1, 128], strides = [1, 1]} : vector<8x128xf32> to vector<1x128xf32>
    %200 = vector.shape_cast %199 : vector<1x128xf32> to vector<1x128xf32>
    %201 = vector.broadcast %200 : vector<1x128xf32> to vector<128x128xf32>
    %c64_i32_68 = arith.constant 64 : i32
    %202 = vector.broadcast %c64_i32_68 : i32 to vector<128x128xi32>
    %203 = arith.cmpi sge, %114, %202 : vector<128x128xi32>
    %204 = vector.extract_strided_slice %198 {offsets = [1, 0], sizes = [1, 128], strides = [1, 1]} : vector<8x128xf32> to vector<1x128xf32>
    %205 = vector.shape_cast %204 : vector<1x128xf32> to vector<1x128xf32>
    %206 = vector.broadcast %205 : vector<1x128xf32> to vector<128x128xf32>
    %207 = arith.select %203, %206, %201 : vector<128x128xi1>, vector<128x128xf32>
    %208 = arith.mulf %74, %207 : vector<128x128xf32>
    %cst_69 = arith.constant dense<0.000000e+00> : vector<128x32xf32>
    %209 = tpu.matmul %208, %5, %cst_69 {dimension_numbers = #tpu.dot_dimension_numbers<[1], [0], [0], [1], [0, 0, 1, 1], [], []>} : vector<128x128xf32>, vector<128x32xf32>, vector<128x32xf32> -> vector<128x32xf32>
    %c192 = arith.constant 192 : index
    %c0_70 = arith.constant 0 : index
    %210 = vector.load %arg4[%c192, %c0_70] : memref<271x32xf32, #tpu.memory_space<vmem>>, vector<32x32xf32>
    %cst_71 = arith.constant dense<0.000000e+00> : vector<128x32xf32>
    %211 = tpu.matmul %194, %210, %cst_71 {dimension_numbers = #tpu.dot_dimension_numbers<[1], [0], [0], [1], [0, 0, 1, 1], [], []>} : vector<128x32xf32>, vector<32x32xf32>, vector<128x32xf32> -> vector<128x32xf32>
    %c261 = arith.constant 261 : index
    %c0_72 = arith.constant 0 : index
    %212 = vector.load %arg4[%c261, %c0_72] : memref<271x32xf32, #tpu.memory_space<vmem>>, vector<1x32xf32>
    %213 = vector.broadcast %212 : vector<1x32xf32> to vector<128x32xf32>
    %214 = arith.addf %211, %213 : vector<128x32xf32>
    %215 = arith.addf %209, %214 : vector<128x32xf32>
    %c265 = arith.constant 265 : index
    %c0_73 = arith.constant 0 : index
    %216 = vector.load %arg4[%c265, %c0_73] : memref<271x32xf32, #tpu.memory_space<vmem>>, vector<1x32xf32>
    %217 = vector.broadcast %216 : vector<1x32xf32> to vector<128x32xf32>
    %218 = arith.mulf %215, %217 : vector<128x32xf32>
    %c268 = arith.constant 268 : index
    %c0_74 = arith.constant 0 : index
    %219 = vector.load %arg4[%c268, %c0_74] : memref<271x32xf32, #tpu.memory_space<vmem>>, vector<1x32xf32>
    %220 = vector.broadcast %219 : vector<1x32xf32> to vector<128x32xf32>
    %221 = arith.addf %218, %220 : vector<128x32xf32>
    %cst_75 = arith.constant 5.000000e-01 : f32
    %222 = vector.broadcast %cst_75 : f32 to vector<128x32xf32>
    %223 = arith.mulf %222, %221 : vector<128x32xf32>
    %cst_76 = arith.constant 4.471500e-02 : f32
    %224 = vector.broadcast %cst_76 : f32 to vector<128x32xf32>
    %225 = arith.mulf %224, %221 : vector<128x32xf32>
    %226 = arith.mulf %225, %221 : vector<128x32xf32>
    %227 = arith.mulf %226, %221 : vector<128x32xf32>
    %228 = arith.addf %221, %227 : vector<128x32xf32>
    %cst_77 = arith.constant 0.797884583 : f32
    %229 = vector.broadcast %cst_77 : f32 to vector<128x32xf32>
    %230 = arith.mulf %229, %228 : vector<128x32xf32>
    %231 = math.tanh %230 : vector<128x32xf32>
    %cst_78 = arith.constant 1.000000e+00 : f32
    %232 = vector.broadcast %cst_78 : f32 to vector<128x32xf32>
    %233 = arith.addf %232, %231 : vector<128x32xf32>
    %234 = arith.mulf %223, %233 : vector<128x32xf32>
    %cst_79 = arith.constant dense<0.000000e+00> : vector<128x128xf32>
    %235 = tpu.matmul %234, %4, %cst_79 {dimension_numbers = #tpu.dot_dimension_numbers<[1], [0], [0], [1], [0, 0, 1, 1], [], []>} : vector<128x32xf32>, vector<32x128xf32>, vector<128x128xf32> -> vector<128x128xf32>
    %236 = arith.mulf %101, %235 : vector<128x128xf32>
    %cst_80 = arith.constant dense<0.000000e+00> : vector<8x128xf32>
    %237 = tpu.matmul %2, %236, %cst_80 {dimension_numbers = #tpu.dot_dimension_numbers<[1], [0], [0], [1], [0, 0, 1, 1], [], []>} : vector<8x128xf32>, vector<128x128xf32>, vector<8x128xf32> -> vector<8x128xf32>
    %cst_81 = arith.constant dense<0.000000e+00> : vector<8x128xf32>
    %238 = tpu.matmul %237, %3, %cst_81 {dimension_numbers = #tpu.dot_dimension_numbers<[1], [0], [0], [1], [0, 0, 1, 1], [], []>} : vector<8x128xf32>, vector<128x128xf32>, vector<8x128xf32> -> vector<8x128xf32>
    %239 = vector.extract_strided_slice %238 {offsets = [0, 0], sizes = [1, 128], strides = [1, 1]} : vector<8x128xf32> to vector<1x128xf32>
    %240 = vector.shape_cast %239 : vector<1x128xf32> to vector<1x128xf32>
    %241 = vector.broadcast %240 : vector<1x128xf32> to vector<128x128xf32>
    %c64_i32_82 = arith.constant 64 : i32
    %242 = vector.broadcast %c64_i32_82 : i32 to vector<128x128xi32>
    %243 = arith.cmpi sge, %114, %242 : vector<128x128xi32>
    %244 = vector.extract_strided_slice %238 {offsets = [1, 0], sizes = [1, 128], strides = [1, 1]} : vector<8x128xf32> to vector<1x128xf32>
    %245 = vector.shape_cast %244 : vector<1x128xf32> to vector<1x128xf32>
    %246 = vector.broadcast %245 : vector<1x128xf32> to vector<128x128xf32>
    %247 = arith.select %243, %246, %241 : vector<128x128xi1>, vector<128x128xf32>
    %248 = arith.mulf %97, %247 : vector<128x128xf32>
    %cst_83 = arith.constant dense<0.000000e+00> : vector<128x32xf32>
    %249 = tpu.matmul %248, %5, %cst_83 {dimension_numbers = #tpu.dot_dimension_numbers<[1], [0], [0], [1], [0, 0, 1, 1], [], []>} : vector<128x128xf32>, vector<128x32xf32>, vector<128x32xf32> -> vector<128x32xf32>
    %c224 = arith.constant 224 : index
    %c0_84 = arith.constant 0 : index
    %250 = vector.load %arg4[%c224, %c0_84] : memref<271x32xf32, #tpu.memory_space<vmem>>, vector<32x32xf32>
    %cst_85 = arith.constant dense<0.000000e+00> : vector<128x32xf32>
    %251 = tpu.matmul %234, %250, %cst_85 {dimension_numbers = #tpu.dot_dimension_numbers<[1], [0], [0], [1], [0, 0, 1, 1], [], []>} : vector<128x32xf32>, vector<32x32xf32>, vector<128x32xf32> -> vector<128x32xf32>
    %c262 = arith.constant 262 : index
    %c0_86 = arith.constant 0 : index
    %252 = vector.load %arg4[%c262, %c0_86] : memref<271x32xf32, #tpu.memory_space<vmem>>, vector<1x32xf32>
    %253 = vector.broadcast %252 : vector<1x32xf32> to vector<128x32xf32>
    %254 = arith.addf %251, %253 : vector<128x32xf32>
    %255 = arith.addf %249, %254 : vector<128x32xf32>
    %c269 = arith.constant 269 : index
    %c0_87 = arith.constant 0 : index
    %256 = vector.load %arg4[%c269, %c0_87] : memref<271x32xf32, #tpu.memory_space<vmem>>, vector<1x32xf32>
    %cst_88 = arith.constant dense<0.000000e+00> : vector<1x128xf32>
    %257 = tpu.matmul %256, %255, %cst_88 {dimension_numbers = #tpu.dot_dimension_numbers<[1], [1], [0], [0], [0, 0, 1, 0], [], []>} : vector<1x32xf32>, vector<128x32xf32>, vector<1x128xf32> -> vector<1x128xf32>
    %c270 = arith.constant 270 : index
    %c0_89 = arith.constant 0 : index
    %258 = vector.load %arg4[%c270, %c0_89] : memref<271x32xf32, #tpu.memory_space<vmem>>, vector<1x1xf32>
    %259 = vector.broadcast %258 : vector<1x1xf32> to vector<1x128xf32>
    %260 = arith.addf %257, %259 : vector<1x128xf32>
    %c0_90 = arith.constant 0 : index
    %c0_91 = arith.constant 0 : index
    %261 = vector.load %arg5[%c0_90, %c0_91] : memref<1x128xf32, #tpu.memory_space<vmem>>, vector<1x128xf32>
    tpu.vector_store %arg5[%c0_90, %c0_91], %260 {strides = array<i32>} : memref<1x128xf32, #tpu.memory_space<vmem>>, vector<1x128xf32>,
    return
  }
  func.func @transform_0(%arg0: i32) -> (i32, i32) {
    %c0_i32 = arith.constant 0 : i32
    %c0_i32_0 = arith.constant 0 : i32
    %c0_i32_1 = arith.constant 0 : i32
    return %c0_i32, %c0_i32_0 : i32, i32
  }
  func.func @transform_1(%arg0: i32) -> (i32, i32) {
    %c0_i32 = arith.constant 0 : i32
    %c0_i32_0 = arith.constant 0 : i32
    %c0_i32_1 = arith.constant 0 : i32
    return %c0_i32, %c0_i32_0 : i32, i32
  }
  func.func @transform_2(%arg0: i32) -> (i32, i32) {
    %c0_i32 = arith.constant 0 : i32
    %c0_i32_0 = arith.constant 0 : i32
    %c0_i32_1 = arith.constant 0 : i32
    return %c0_i32, %c0_i32_0 : i32, i32
  }
  func.func @transform_3(%arg0: i32) -> (i32, i32) {
    %c0_i32 = arith.constant 0 : i32
    %c0_i32_0 = arith.constant 0 : i32
    %c0_i32_1 = arith.constant 0 : i32
    return %c0_i32, %c0_i32_0 : i32, i32
  }
  func.func @transform_4(%arg0: i32) -> (i32, i32) {
    %c0_i32 = arith.constant 0 : i32
    %c0_i32_0 = arith.constant 0 : i32
    %c0_i32_1 = arith.constant 0 : i32
    return %c0_i32, %c0_i32_0 : i32, i32
  }
}

</mosaic_0001>

<llo_original>
// kernel: lrnol_forward.1
$region0: #{lrnol_forward.1}
  #allocation0 [shape = 'u32[]', space=smem, size = 0x4, offset = 0x4, fixed_abs, tag = 'smem constant byte address 0x4 - core index']
  #allocation1 [shape = 'u32[144,128]{1,0:T(1,128)}', space=vmem, size = 0x12000, scoped, tag = 'internal scratch']
  %s0 = inlined_call_operand.vmem [shape: f32[128,2], index: 0, kind: input, shape index: {}]
  %s1 = inlined_call_operand.vmem [shape: f32[512,256], index: 1, kind: input, shape index: {}]
  %s2 = inlined_call_operand.vmem [shape: f32[192,128], index: 2, kind: input, shape index: {}]
  %s3 = inlined_call_operand.vmem [shape: f32[271,32], index: 3, kind: input, shape index: {}]
  %s4 = inlined_call_operand.vmem [shape: f32[1,128], index: 4, kind: output, shape index: {}]
  %s5 = sld [smem:[#allocation0]]
  $region26: #{lrnol_forward.1} parent=0
    _
  %s7 = ssub.s32 1, %s5
  %s8 = scalar_select 0, %s7, %s5
  // Predicated region
  $region2: #{lrnol_forward.1} parent=0 // pred_check
    _
  $region3: #{lrnol_forward.1} parent=0 // pred_check_branch
    %10 = sbr.rel (0) target = $region5
  $region4: #{lrnol_forward.1} parent=0 // pred_region
    _
  $region5: #{lrnol_forward.1} parent=0 // pred_fallthru
    _
  // Predicated region
  $region6: #{lrnol_forward.1} parent=0 // pred_check
    _
  $region7: #{lrnol_forward.1} parent=0 // pred_check_branch
    %12 = sbr.rel (0) target = $region9
  $region8: #{lrnol_forward.1} parent=0 // pred_region
    _
  $region9: #{lrnol_forward.1} parent=0 // pred_fallthru
    _
  // Predicated region
  $region10: #{lrnol_forward.1} parent=0 // pred_check
    _
  $region11: #{lrnol_forward.1} parent=0 // pred_check_branch
    %14 = sbr.rel (0) target = $region13
  $region12: #{lrnol_forward.1} parent=0 // pred_region
    _
  $region13: #{lrnol_forward.1} parent=0 // pred_fallthru
    _
  // Predicated region
  $region14: #{lrnol_forward.1} parent=0 // pred_check
    _
  $region15: #{lrnol_forward.1} parent=0 // pred_check_branch
    %16 = sbr.rel (0) target = $region17
  $region16: #{lrnol_forward.1} parent=0 // pred_region
    _
  $region17: #{lrnol_forward.1} parent=0 // pred_fallthru
    _
  %v17 = vld [vmem:[%s0] sm:$0xff]
  %v18 = vld [vmem:[%s0 + $0x8] sm:$0xff]
  %v19 = vld [vmem:[%s0 + $0x10] sm:$0xff]
  %v20 = vld [vmem:[%s0 + $0x18] sm:$0xff]
  %v21 = vld [vmem:[%s0 + $0x20] sm:$0xff]
  %v22 = vld [vmem:[%s0 + $0x28] sm:$0xff]
  %v23 = vld [vmem:[%s0 + $0x30] sm:$0xff]
  %v24 = vld [vmem:[%s0 + $0x38] sm:$0xff]
  %v25 = vld [vmem:[%s0 + $0x40] sm:$0xff]
  %v26 = vld [vmem:[%s0 + $0x48] sm:$0xff]
  %v27 = vld [vmem:[%s0 + $0x50] sm:$0xff]
  %v28 = vld [vmem:[%s0 + $0x58] sm:$0xff]
  %v29 = vld [vmem:[%s0 + $0x60] sm:$0xff]
  %v30 = vld [vmem:[%s0 + $0x68] sm:$0xff]
  %v31 = vld [vmem:[%s0 + $0x70] sm:$0xff]
  %v32 = vld [vmem:[%s0 + $0x78] sm:$0xff]
  %v33 = vld [vmem:[%s2 + $0x18] sm:$0xff]
  %v34 = vld [vmem:[%s2 + $0x20] sm:$0xff]
  %v35 = vld [vmem:[%s2 + $0x28] sm:$0xff]
  %v36 = vld [vmem:[%s2 + $0x30] sm:$0xff]
  %v37 = vld [vmem:[%s2 + $0x38] sm:$0xff]
  %v38 = vld [vmem:[%s2 + $0x40] sm:$0xff]
  %v39 = vld [vmem:[%s2 + $0x48] sm:$0xff]
  %v40 = vld [vmem:[%s2 + $0x50] sm:$0xff]
  %v41 = vld [vmem:[%s2 + $0x58] sm:$0xff]
  %v42 = vld [vmem:[%s2 + $0x60] sm:$0xff]
  %v43 = vld [vmem:[%s2 + $0x68] sm:$0xff]
  %v44 = vld [vmem:[%s2 + $0x70] sm:$0xff]
  %v45 = vld [vmem:[%s2 + $0x78] sm:$0xff]
  %v46 = vld [vmem:[%s2 + $0x80] sm:$0xff]
  %v47 = vld [vmem:[%s2 + $0x88] sm:$0xff]
  %v48 = vld [vmem:[%s2 + $0x90] sm:$0xff]
  %v49 = vld [vmem:[%s2 + $0x98] sm:$0xff]
  %v50 = vld [vmem:[%s2 + $0xa0] sm:$0xff]
  %v51 = vld [vmem:[%s2 + $0xa8] sm:$0xff]
  %v52 = vld [vmem:[%s2 + $0xb0] sm:$0xff]
  %v53 = vld [vmem:[%s2 + $0xb8] sm:$0xff]
  %v54 = vld [vmem:[%s3] sm:$0xff]
  %v55 = vld [vmem:[%s3 + $0x8] sm:$0xff]
  %v56 = vld [vmem:[%s3 + $0x10] sm:$0xff]
  %v57 = vld [vmem:[%s3 + $0x18] sm:$0xff]
  %v58 = vld [vmem:[%s3 + $0x20] sm:$0xff]
  %v59 = vld [vmem:[%s3 + $0x28] sm:$0xff]
  %v60 = vld [vmem:[%s3 + $0x30] sm:$0xff]
  %v61 = vld [vmem:[%s3 + $0x38] sm:$0xff]
  %v62 = vld [vmem:[%s3 + $0x40] sm:$0xff]
  %v63 = vld [vmem:[%s3 + $0x48] sm:$0xff]
  %v64 = vld [vmem:[%s3 + $0x50] sm:$0xff]
  %v65 = vld [vmem:[%s3 + $0x58] sm:$0xff]
  %v66 = vld [vmem:[%s3 + $0x60] sm:$0xff]
  %v67 = vld [vmem:[%s3 + $0x68] sm:$0xff]
  %v68 = vld [vmem:[%s3 + $0x70] sm:$0xff]
  %v69 = vld [vmem:[%s3 + $0x78] sm:$0xff]
  %71 = vset.pattern.permute.xlu0 0
  %72 = vperm.xlu0 %71, %v17
  %v73 = vpop.permute.xlu0 %72
  %76 = vset.pattern.permute.xlu0 0
  %77 = vperm.xlu0 %76, %v18
  %v78 = vpop.permute.xlu0 %77
  %81 = vset.pattern.permute.xlu0 0
  %82 = vperm.xlu0 %81, %v19
  %v83 = vpop.permute.xlu0 %82
  %86 = vset.pattern.permute.xlu0 0
  %87 = vperm.xlu0 %86, %v20
  %v88 = vpop.permute.xlu0 %87
  %91 = vset.pattern.permute.xlu0 0
  %92 = vperm.xlu0 %91, %v21
  %v93 = vpop.permute.xlu0 %92
  %96 = vset.pattern.permute.xlu0 0
  %97 = vperm.xlu0 %96, %v22
  %v98 = vpop.permute.xlu0 %97
  %101 = vset.pattern.permute.xlu0 0
  %102 = vperm.xlu0 %101, %v23
  %v103 = vpop.permute.xlu0 %102
  %106 = vset.pattern.permute.xlu0 0
  %107 = vperm.xlu0 %106, %v24
  %v108 = vpop.permute.xlu0 %107
  %111 = vset.pattern.permute.xlu0 0
  %112 = vperm.xlu0 %111, %v25
  %v113 = vpop.permute.xlu0 %112
  %116 = vset.pattern.permute.xlu0 0
  %117 = vperm.xlu0 %116, %v26
  %v118 = vpop.permute.xlu0 %117
  %121 = vset.pattern.permute.xlu0 0
  %122 = vperm.xlu0 %121, %v27
  %v123 = vpop.permute.xlu0 %122
  %126 = vset.pattern.permute.xlu0 0
  %127 = vperm.xlu0 %126, %v28
  %v128 = vpop.permute.xlu0 %127
  %131 = vset.pattern.permute.xlu0 0
  %132 = vperm.xlu0 %131, %v29
  %v133 = vpop.permute.xlu0 %132
  %136 = vset.pattern.permute.xlu0 0
  %137 = vperm.xlu0 %136, %v30
  %v138 = vpop.permute.xlu0 %137
  %141 = vset.pattern.permute.xlu0 0
  %142 = vperm.xlu0 %141, %v31
  %v143 = vpop.permute.xlu0 %142
  %146 = vset.pattern.permute.xlu0 0
  %147 = vperm.xlu0 %146, %v32
  %v148 = vpop.permute.xlu0 %147
  %150 = vset.pattern.permute.xlu0 1
  %151 = vperm.xlu0 %150, %v17
  %v152 = vpop.permute.xlu0 %151
  %154 = vset.pattern.permute.xlu0 1
  %155 = vperm.xlu0 %154, %v18
  %v156 = vpop.permute.xlu0 %155
  %158 = vset.pattern.permute.xlu0 1
  %159 = vperm.xlu0 %158, %v19
  %v160 = vpop.permute.xlu0 %159
  %162 = vset.pattern.permute.xlu0 1
  %163 = vperm.xlu0 %162, %v20
  %v164 = vpop.permute.xlu0 %163
  %166 = vset.pattern.permute.xlu0 1
  %167 = vperm.xlu0 %166, %v21
  %v168 = vpop.permute.xlu0 %167
  %170 = vset.pattern.permute.xlu0 1
  %171 = vperm.xlu0 %170, %v22
  %v172 = vpop.permute.xlu0 %171
  %174 = vset.pattern.permute.xlu0 1
  %175 = vperm.xlu0 %174, %v23
  %v176 = vpop.permute.xlu0 %175
  %178 = vset.pattern.permute.xlu0 1
  %179 = vperm.xlu0 %178, %v24
  %v180 = vpop.permute.xlu0 %179
  %182 = vset.pattern.permute.xlu0 1
  %183 = vperm.xlu0 %182, %v25
  %v184 = vpop.permute.xlu0 %183
  %186 = vset.pattern.permute.xlu0 1
  %187 = vperm.xlu0 %186, %v26
  %v188 = vpop.permute.xlu0 %187
  %190 = vset.pattern.permute.xlu0 1
  %191 = vperm.xlu0 %190, %v27
  %v192 = vpop.permute.xlu0 %191
  %194 = vset.pattern.permute.xlu0 1
  %195 = vperm.xlu0 %194, %v28
  %v196 = vpop.permute.xlu0 %195
  %198 = vset.pattern.permute.xlu0 1
  %199 = vperm.xlu0 %198, %v29
  %v200 = vpop.permute.xlu0 %199
  %202 = vset.pattern.permute.xlu0 1
  %203 = vperm.xlu0 %202, %v30
  %v204 = vpop.permute.xlu0 %203
  %206 = vset.pattern.permute.xlu0 1
  %207 = vperm.xlu0 %206, %v31
  %v208 = vpop.permute.xlu0 %207
  %210 = vset.pattern.permute.xlu0 1
  %211 = vperm.xlu0 %210, %v32
  %v212 = vpop.permute.xlu0 %211
  %v214 = vld [vmem:[%s2] sm:$0x7]
  %v215 = vlaneseq
  %v216 = vshrl.u32 %v215, 7
  %v217 = vsub.s32 0, %v216
  %v218 = vrot.slane %v214, %v217
  %v219 = vmul.f32 %v73, %v218
  %v220 = vmul.f32 %v78, %v218
  %v221 = vmul.f32 %v83, %v218
  %v222 = vmul.f32 %v88, %v218
  %v223 = vmul.f32 %v93, %v218
  %v224 = vmul.f32 %v98, %v218
  %v225 = vmul.f32 %v103, %v218
  %v226 = vmul.f32 %v108, %v218
  %v227 = vmul.f32 %v113, %v218
  %v228 = vmul.f32 %v118, %v218
  %v229 = vmul.f32 %v123, %v218
  %v230 = vmul.f32 %v128, %v218
  %v231 = vmul.f32 %v133, %v218
  %v232 = vmul.f32 %v138, %v218
  %v233 = vmul.f32 %v143, %v218
  %v234 = vmul.f32 %v148, %v218
  %v235 = vlaneseq
  %v236 = vshrl.u32 %v235, 7
  %v237 = vsub.s32 1, %v236
  %v238 = vrot.slane %v214, %v237
  %v239 = vmul.f32 %v152, %v238
  %v240 = vmul.f32 %v156, %v238
  %v241 = vmul.f32 %v160, %v238
  %v242 = vmul.f32 %v164, %v238
  %v243 = vmul.f32 %v168, %v238
  %v244 = vmul.f32 %v172, %v238
  %v245 = vmul.f32 %v176, %v238
  %v246 = vmul.f32 %v180, %v238
  %v247 = vmul.f32 %v184, %v238
  %v248 = vmul.f32 %v188, %v238
  %v249 = vmul.f32 %v192, %v238
  %v250 = vmul.f32 %v196, %v238
  %v251 = vmul.f32 %v200, %v238
  %v252 = vmul.f32 %v204, %v238
  %v253 = vmul.f32 %v208, %v238
  %v254 = vmul.f32 %v212, %v238
  %v255 = vadd.f32 %v219, %v239
  %v256 = vadd.f32 %v220, %v240
  %v257 = vadd.f32 %v221, %v241
  %v258 = vadd.f32 %v222, %v242
  %v259 = vadd.f32 %v223, %v243
  %v260 = vadd.f32 %v224, %v244
  %v261 = vadd.f32 %v225, %v245
  %v262 = vadd.f32 %v226, %v246
  %v263 = vadd.f32 %v227, %v247
  %v264 = vadd.f32 %v228, %v248
  %v265 = vadd.f32 %v229, %v249
  %v266 = vadd.f32 %v230, %v250
  %v267 = vadd.f32 %v231, %v251
  %v268 = vadd.f32 %v232, %v252
  %v269 = vadd.f32 %v233, %v253
  %v270 = vadd.f32 %v234, %v254
  %v271 = vlaneseq
  %v272 = vshrl.u32 %v271, 7
  %v273 = vsub.s32 2, %v272
  %v274 = vrot.slane %v214, %v273
  %v275 = vadd.f32 %v255, %v274
  %v276 = vadd.f32 %v256, %v274
  %v277 = vadd.f32 %v257, %v274
  %v278 = vadd.f32 %v258, %v274
  %v279 = vadd.f32 %v259, %v274
  %v280 = vadd.f32 %v260, %v274
  %v281 = vadd.f32 %v261, %v274
  %v282 = vadd.f32 %v262, %v274
  %v283 = vadd.f32 %v263, %v274
  %v284 = vadd.f32 %v264, %v274
  %v285 = vadd.f32 %v265, %v274
  %v286 = vadd.f32 %v266, %v274
  %v287 = vadd.f32 %v267, %v274
  %v288 = vadd.f32 %v268, %v274
  %v289 = vadd.f32 %v269, %v274
  %v290 = vadd.f32 %v270, %v274
  %v291 = vmax.f32 %v275, 0.0
  %v292 = vmax.f32 %v276, 0.0
  %v293 = vmax.f32 %v277, 0.0
  %v294 = vmax.f32 %v278, 0.0
  %v295 = vmax.f32 %v279, 0.0
  %v296 = vmax.f32 %v280, 0.0
  %v297 = vmax.f32 %v281, 0.0
  %v298 = vmax.f32 %v282, 0.0
  %v299 = vmax.f32 %v283, 0.0
  %v300 = vmax.f32 %v284, 0.0
  %v301 = vmax.f32 %v285, 0.0
  %v302 = vmax.f32 %v286, 0.0
  %v303 = vmax.f32 %v287, 0.0
  %v304 = vmax.f32 %v288, 0.0
  %v305 = vmax.f32 %v289, 0.0
  %v306 = vmax.f32 %v290, 0.0
  %v307 = vld [vmem:[%s1] sm:$0xff]
  %v308 = vld [vmem:[%s1 + $0x8] sm:$0xff]
  %v309 = vld [vmem:[%s1 + $0x10] sm:$0xff]
  %v310 = vld [vmem:[%s1 + $0x18] sm:$0xff]
  %v311 = vld [vmem:[%s1 + $0x20] sm:$0xff]
  %v312 = vld [vmem:[%s1 + $0x28] sm:$0xff]
  %v313 = vld [vmem:[%s1 + $0x30] sm:$0xff]
  %v314 = vld [vmem:[%s1 + $0x38] sm:$0xff]
  %v315 = vld [vmem:[%s1 + $0x40] sm:$0xff]
  %v316 = vld [vmem:[%s1 + $0x48] sm:$0xff]
  %v317 = vld [vmem:[%s1 + $0x50] sm:$0xff]
  %v318 = vld [vmem:[%s1 + $0x58] sm:$0xff]
  %v319 = vld [vmem:[%s1 + $0x60] sm:$0xff]
  %v320 = vld [vmem:[%s1 + $0x68] sm:$0xff]
  %v321 = vld [vmem:[%s1 + $0x70] sm:$0xff]
  %v322 = vld [vmem:[%s1 + $0x78] sm:$0xff]
  %v323 = vld [vmem:[%s1 + $0x80] sm:$0xff]
  %v324 = vld [vmem:[%s1 + $0x88] sm:$0xff]
  %v325 = vld [vmem:[%s1 + $0x90] sm:$0xff]
  %v326 = vld [vmem:[%s1 + $0x98] sm:$0xff]
  %v327 = vld [vmem:[%s1 + $0xa0] sm:$0xff]
  %v328 = vld [vmem:[%s1 + $0xa8] sm:$0xff]
  %v329 = vld [vmem:[%s1 + $0xb0] sm:$0xff]
  %v330 = vld [vmem:[%s1 + $0xb8] sm:$0xff]
  %v331 = vld [vmem:[%s1 + $0xc0] sm:$0xff]
  %v332 = vld [vmem:[%s1 + $0xc8] sm:$0xff]
  %v333 = vld [vmem:[%s1 + $0xd0] sm:$0xff]
  %v334 = vld [vmem:[%s1 + $0xd8] sm:$0xff]
  %v335 = vld [vmem:[%s1 + $0xe0] sm:$0xff]
  %v336 = vld [vmem:[%s1 + $0xe8] sm:$0xff]
  %v337 = vld [vmem:[%s1 + $0xf0] sm:$0xff]
  %v338 = vld [vmem:[%s1 + $0xf8] sm:$0xff]
  %339 = vmatprep.subr.mxu0 %v338
  %340 = vmatpush1.msra.mxu0 %v337
  %341 = vmatprep.subr.mxu0 %v336
  %342 = vmatpush1.msra.mxu0 %v335
  %343 = vmatprep.subr.mxu0 %v334
  %344 = vmatpush1.msra.mxu0 %v333
  %345 = vmatprep.subr.mxu0 %v332
  %346 = vmatpush1.msra.mxu0 %v331
  %347 = vmatprep.subr.mxu0 %v330
  %348 = vmatpush1.msra.mxu0 %v329
  %349 = vmatprep.subr.mxu0 %v328
  %350 = vmatpush1.msra.mxu0 %v327
  %351 = vmatprep.subr.mxu0 %v326
  %352 = vmatpush1.msra.mxu0 %v325
  %353 = vmatprep.subr.mxu0 %v324
  %354 = vmatpush1.msra.mxu0 %v323
  %355 = vmatprep.subr.mxu0 %v322
  %356 = vmatpush1.msra.mxu0 %v321
  %357 = vmatprep.subr.mxu0 %v320
  %358 = vmatpush1.msra.mxu0 %v319
  %359 = vmatprep.subr.mxu0 %v318
  %360 = vmatpush1.msra.mxu0 %v317
  %361 = vmatprep.subr.mxu0 %v316
  %362 = vmatpush1.msra.mxu0 %v315
  %363 = vmatprep.subr.mxu0 %v314
  %364 = vmatpush1.msra.mxu0 %v313
  %365 = vmatprep.subr.mxu0 %v312
  %366 = vmatpush1.msra.mxu0 %v311
  %367 = vmatprep.subr.mxu0 %v310
  %368 = vmatpush1.msra.mxu0 %v309
  %369 = vmatprep.subr.mxu0 %v308
  %370 = vmatpush1.msra.mxu0 %v307
  %371 = vmatprep.subr.mxu0 0.0
  %372 = vmatpush2.msra.mxu0 0.0
  %373 = vmatprep.subr.mxu0 0.0
  %374 = vmatpush2.msra.mxu0 0.0
  %375 = vmatprep.subr.mxu0 0.0
  %376 = vmatpush2.msra.mxu0 0.0
  %377 = vmatprep.subr.mxu0 0.0
  %378 = vmatpush2.msra.mxu0 0.0
  %379 = vmatprep.subr.mxu0 0.0
  %380 = vmatpush2.msra.mxu0 0.0
  %381 = vmatprep.subr.mxu0 0.0
  %382 = vmatpush2.msra.mxu0 0.0
  %383 = vmatprep.subr.mxu0 0.0
  %384 = vmatpush2.msra.mxu0 0.0
  %385 = vmatprep.subr.mxu0 0.0
  %386 = vmatpush2.msra.mxu0 0.0
  %387 = vmatprep.subr.mxu0 0.0
  %388 = vmatpush2.msra.mxu0 0.0
  %389 = vmatprep.subr.mxu0 0.0
  %390 = vmatpush2.msra.mxu0 0.0
  %391 = vmatprep.subr.mxu0 0.0
  %392 = vmatpush2.msra.mxu0 0.0
  %393 = vmatprep.subr.mxu0 0.0
  %394 = vmatpush2.msra.mxu0 0.0
  %395 = vmatprep.subr.mxu0 0.0
  %396 = vmatpush2.msra.mxu0 0.0
  %397 = vmatprep.subr.mxu0 0.0
  %398 = vmatpush2.msra.mxu0 0.0
  %399 = vmatprep.subr.mxu0 0.0
  %400 = vmatpush2.msra.mxu0 0.0
  %401 = vmatprep.subr.mxu0 0.0
  %402 = vmatpush2.msra.mxu0 0.0
  %403 = vmatprep.mubr.f32.mxu0 0.0
  %404 = vmatmul.mubr.f32.gmra.mxu0 %v291
  %v405 = vpop.f32.mrf.mxu0
  %v406 = vadd.f32 0.0, %v405
  %v407 = vpop.f32.mrf.mxu0
  %v408 = vadd.f32 0.0, %v407
  %409 = vmatprep.mubr.f32.mxu0 0.0
  %410 = vmatmul.mubr.f32.gmra.mxu0 %v292
  %v411 = vpop.f32.mrf.mxu0
  %v412 = vadd.f32 0.0, %v411
  %v413 = vpop.f32.mrf.mxu0
  %v414 = vadd.f32 0.0, %v413
  %415 = vmatprep.mubr.f32.mxu0 0.0
  %416 = vmatmul.mubr.f32.gmra.mxu0 %v293
  %v417 = vpop.f32.mrf.mxu0
  %v418 = vadd.f32 0.0, %v417
  %v419 = vpop.f32.mrf.mxu0
  %v420 = vadd.f32 0.0, %v419
  %421 = vmatprep.mubr.f32.mxu0 0.0
  %422 = vmatmul.mubr.f32.gmra.mxu0 %v294
  %v423 = vpop.f32.mrf.mxu0
  %v424 = vadd.f32 0.0, %v423
  %v425 = vpop.f32.mrf.mxu0
  %v426 = vadd.f32 0.0, %v425
  %427 = vmatprep.mubr.f32.mxu0 0.0
  %428 = vmatmul.mubr.f32.gmra.mxu0 %v295
  %v429 = vpop.f32.mrf.mxu0
  %v430 = vadd.f32 0.0, %v429
  %v431 = vpop.f32.mrf.mxu0
  %v432 = vadd.f32 0.0, %v431
  %433 = vmatprep.mubr.f32.mxu0 0.0
  %434 = vmatmul.mubr.f32.gmra.mxu0 %v296
  %v435 = vpop.f32.mrf.mxu0
  %v436 = vadd.f32 0.0, %v435
  %v437 = vpop.f32.mrf.mxu0
  %v438 = vadd.f32 0.0, %v437
  %439 = vmatprep.mubr.f32.mxu0 0.0
  %440 = vmatmul.mubr.f32.gmra.mxu0 %v297
  %v441 = vpop.f32.mrf.mxu0
  %v442 = vadd.f32 0.0, %v441
  %v443 = vpop.f32.mrf.mxu0
  %v444 = vadd.f32 0.0, %v443
  %445 = vmatprep.mubr.f32.mxu0 0.0
  %446 = vmatmul.mubr.f32.gmra.mxu0 %v298
  %v447 = vpop.f32.mrf.mxu0
  %v448 = vadd.f32 0.0, %v447
  %v449 = vpop.f32.mrf.mxu0
  %v450 = vadd.f32 0.0, %v449
  %451 = vmatprep.mubr.f32.mxu0 0.0
  %452 = vmatmul.mubr.f32.gmra.mxu0 %v299
  %v453 = vpop.f32.mrf.mxu0
  %v454 = vadd.f32 0.0, %v453
  %v455 = vpop.f32.mrf.mxu0
  %v456 = vadd.f32 0.0, %v455
  %457 = vmatprep.mubr.f32.mxu0 0.0
  %458 = vmatmul.mubr.f32.gmra.mxu0 %v300
  %v459 = vpop.f32.mrf.mxu0
  %v460 = vadd.f32 0.0, %v459
  %v461 = vpop.f32.mrf.mxu0
  %v462 = vadd.f32 0.0, %v461
  %463 = vmatprep.mubr.f32.mxu0 0.0
  %464 = vmatmul.mubr.f32.gmra.mxu0 %v301
  %v465 = vpop.f32.mrf.mxu0
  %v466 = vadd.f32 0.0, %v465
  %v467 = vpop.f32.mrf.mxu0
  %v468 = vadd.f32 0.0, %v467
  %469 = vmatprep.mubr.f32.mxu0 0.0
  %470 = vmatmul.mubr.f32.gmra.mxu0 %v302
  %v471 = vpop.f32.mrf.mxu0
  %v472 = vadd.f32 0.0, %v471
  %v473 = vpop.f32.mrf.mxu0
  %v474 = vadd.f32 0.0, %v473
  %475 = vmatprep.mubr.f32.mxu0 0.0
  %476 = vmatmul.mubr.f32.gmra.mxu0 %v303
  %v477 = vpop.f32.mrf.mxu0
  %v478 = vadd.f32 0.0, %v477
  %v479 = vpop.f32.mrf.mxu0
  %v480 = vadd.f32 0.0, %v479
  %481 = vmatprep.mubr.f32.mxu0 0.0
  %482 = vmatmul.mubr.f32.gmra.mxu0 %v304
  %v483 = vpop.f32.mrf.mxu0
  %v484 = vadd.f32 0.0, %v483
  %v485 = vpop.f32.mrf.mxu0
  %v486 = vadd.f32 0.0, %v485
  %487 = vmatprep.mubr.f32.mxu0 0.0
  %488 = vmatmul.mubr.f32.gmra.mxu0 %v305
  %v489 = vpop.f32.mrf.mxu0
  %v490 = vadd.f32 0.0, %v489
  %v491 = vpop.f32.mrf.mxu0
  %v492 = vadd.f32 0.0, %v491
  %493 = vmatprep.mubr.f32.mxu0 0.0
  %494 = vmatmul.mubr.f32.gmra.mxu0 %v306
  %v495 = vpop.f32.mrf.mxu0
  %v496 = vadd.f32 0.0, %v495
  %v497 = vpop.f32.mrf.mxu0
  %v498 = vadd.f32 0.0, %v497
  %499 = vdwg.mxu0
  %v500 = vld [vmem:[%s2 + $0x10] sm:$0x1]
  %v501 = vlaneseq
  %v502 = vshrl.u32 %v501, 7
  %v503 = vsub.s32 0, %v502
  %v504 = vrot.slane %v500, %v503
  %v505 = vadd.f32 %v406, %v504
  %v506 = vadd.f32 %v412, %v504
  %v507 = vadd.f32 %v418, %v504
  %v508 = vadd.f32 %v424, %v504
  %v509 = vadd.f32 %v430, %v504
  %v510 = vadd.f32 %v436, %v504
  %v511 = vadd.f32 %v442, %v504
  %v512 = vadd.f32 %v448, %v504
  %v513 = vadd.f32 %v454, %v504
  %v514 = vadd.f32 %v460, %v504
  %v515 = vadd.f32 %v466, %v504
  %v516 = vadd.f32 %v472, %v504
  %v517 = vadd.f32 %v478, %v504
  %v518 = vadd.f32 %v484, %v504
  %v519 = vadd.f32 %v490, %v504
  %v520 = vadd.f32 %v496, %v504
  %v521 = vld [vmem:[%s2 + $0x11] sm:$0x1]
  %v522 = vlaneseq
  %v523 = vshrl.u32 %v522, 7
  %v524 = vsub.s32 0, %v523
  %v525 = vrot.slane %v521, %v524
  %v526 = vadd.f32 %v408, %v525
  %v527 = vadd.f32 %v414, %v525
  %v528 = vadd.f32 %v420, %v525
  %v529 = vadd.f32 %v426, %v525
  %v530 = vadd.f32 %v432, %v525
  %v531 = vadd.f32 %v438, %v525
  %v532 = vadd.f32 %v444, %v525
  %v533 = vadd.f32 %v450, %v525
  %v534 = vadd.f32 %v456, %v525
  %v535 = vadd.f32 %v462, %v525
  %v536 = vadd.f32 %v468, %v525
  %v537 = vadd.f32 %v474, %v525
  %v538 = vadd.f32 %v480, %v525
  %v539 = vadd.f32 %v486, %v525
  %v540 = vadd.f32 %v492, %v525
  %v541 = vadd.f32 %v498, %v525
  %v542 = vld [vmem:[%s2 + $0x3] sm:$0x7]
  %v543 = vlaneseq
  %v544 = vshrl.u32 %v543, 7
  %v545 = vsub.s32 0, %v544
  %v546 = vrot.slane %v542, %v545
  %v547 = vmul.f32 %v73, %v546
  %v548 = vmul.f32 %v78, %v546
  %v549 = vmul.f32 %v83, %v546
  %v550 = vmul.f32 %v88, %v546
  %v551 = vmul.f32 %v93, %v546
  %v552 = vmul.f32 %v98, %v546
  %v553 = vmul.f32 %v103, %v546
  %v554 = vmul.f32 %v108, %v546
  %v555 = vmul.f32 %v113, %v546
  %v556 = vmul.f32 %v118, %v546
  %v557 = vmul.f32 %v123, %v546
  %v558 = vmul.f32 %v128, %v546
  %v559 = vmul.f32 %v133, %v546
  %v560 = vmul.f32 %v138, %v546
  %v561 = vmul.f32 %v143, %v546
  %v562 = vmul.f32 %v148, %v546
  %v563 = vlaneseq
  %v564 = vshrl.u32 %v563, 7
  %v565 = vsub.s32 1, %v564
  %v566 = vrot.slane %v542, %v565
  %v567 = vmul.f32 %v152, %v566
  %v568 = vmul.f32 %v156, %v566
  %v569 = vmul.f32 %v160, %v566
  %v570 = vmul.f32 %v164, %v566
  %v571 = vmul.f32 %v168, %v566
  %v572 = vmul.f32 %v172, %v566
  %v573 = vmul.f32 %v176, %v566
  %v574 = vmul.f32 %v180, %v566
  %v575 = vmul.f32 %v184, %v566
  %v576 = vmul.f32 %v188, %v566
  %v577 = vmul.f32 %v192, %v566
  %v578 = vmul.f32 %v196, %v566
  %v579 = vmul.f32 %v200, %v566
  %v580 = vmul.f32 %v204, %v566
  %v581 = vmul.f32 %v208, %v566
  %v582 = vmul.f32 %v212, %v566
  %v583 = vadd.f32 %v547, %v567
  %v584 = vadd.f32 %v548, %v568
  %v585 = vadd.f32 %v549, %v569
  %v586 = vadd.f32 %v550, %v570
  %v587 = vadd.f32 %v551, %v571
  %v588 = vadd.f32 %v552, %v572
  %v589 = vadd.f32 %v553, %v573
  %v590 = vadd.f32 %v554, %v574
  %v591 = vadd.f32 %v555, %v575
  %v592 = vadd.f32 %v556, %v576
  %v593 = vadd.f32 %v557, %v577
  %v594 = vadd.f32 %v558, %v578
  %v595 = vadd.f32 %v559, %v579
  %v596 = vadd.f32 %v560, %v580
  %v597 = vadd.f32 %v561, %v581
  %v598 = vadd.f32 %v562, %v582
  %v599 = vlaneseq
  %v600 = vshrl.u32 %v599, 7
  %v601 = vsub.s32 2, %v600
  %v602 = vrot.slane %v542, %v601
  %v603 = vadd.f32 %v583, %v602
  %v604 = vadd.f32 %v584, %v602
  %v605 = vadd.f32 %v585, %v602
  %v606 = vadd.f32 %v586, %v602
  %v607 = vadd.f32 %v587, %v602
  %v608 = vadd.f32 %v588, %v602
  %v609 = vadd.f32 %v589, %v602
  %v610 = vadd.f32 %v590, %v602
  %v611 = vadd.f32 %v591, %v602
  %v612 = vadd.f32 %v592, %v602
  %v613 = vadd.f32 %v593, %v602
  %v614 = vadd.f32 %v594, %v602
  %v615 = vadd.f32 %v595, %v602
  %v616 = vadd.f32 %v596, %v602
  %v617 = vadd.f32 %v597, %v602
  %v618 = vadd.f32 %v598, %v602
  %v619 = vmax.f32 %v603, 0.0
  %v620 = vmax.f32 %v604, 0.0
  %v621 = vmax.f32 %v605, 0.0
  %v622 = vmax.f32 %v606, 0.0
  %v623 = vmax.f32 %v607, 0.0
  %v624 = vmax.f32 %v608, 0.0
  %v625 = vmax.f32 %v609, 0.0
  %v626 = vmax.f32 %v610, 0.0
  %v627 = vmax.f32 %v611, 0.0
  %v628 = vmax.f32 %v612, 0.0
  %v629 = vmax.f32 %v613, 0.0
  %v630 = vmax.f32 %v614, 0.0
  %v631 = vmax.f32 %v615, 0.0
  %v632 = vmax.f32 %v616, 0.0
  %v633 = vmax.f32 %v617, 0.0
  %v634 = vmax.f32 %v618, 0.0
  %v635 = vld [vmem:[%s1 + $0x100] sm:$0xff]
  %v636 = vld [vmem:[%s1 + $0x108] sm:$0xff]
  %v637 = vld [vmem:[%s1 + $0x110] sm:$0xff]
  %v638 = vld [vmem:[%s1 + $0x118] sm:$0xff]
  %v639 = vld [vmem:[%s1 + $0x120] sm:$0xff]
  %v640 = vld [vmem:[%s1 + $0x128] sm:$0xff]
  %v641 = vld [vmem:[%s1 + $0x130] sm:$0xff]
  %v642 = vld [vmem:[%s1 + $0x138] sm:$0xff]
  %v643 = vld [vmem:[%s1 + $0x140] sm:$0xff]
  %v644 = vld [vmem:[%s1 + $0x148] sm:$0xff]
  %v645 = vld [vmem:[%s1 + $0x150] sm:$0xff]
  %v646 = vld [vmem:[%s1 + $0x158] sm:$0xff]
  %v647 = vld [vmem:[%s1 + $0x160] sm:$0xff]
  %v648 = vld [vmem:[%s1 + $0x168] sm:$0xff]
  %v649 = vld [vmem:[%s1 + $0x170] sm:$0xff]
  %v650 = vld [vmem:[%s1 + $0x178] sm:$0xff]
  %v651 = vld [vmem:[%s1 + $0x180] sm:$0xff]
  %v652 = vld [vmem:[%s1 + $0x188] sm:$0xff]
  %v653 = vld [vmem:[%s1 + $0x190] sm:$0xff]
  %v654 = vld [vmem:[%s1 + $0x198] sm:$0xff]
  %v655 = vld [vmem:[%s1 + $0x1a0] sm:$0xff]
  %v656 = vld [vmem:[%s1 + $0x1a8] sm:$0xff]
  %v657 = vld [vmem:[%s1 + $0x1b0] sm:$0xff]
  %v658 = vld [vmem:[%s1 + $0x1b8] sm:$0xff]
  %v659 = vld [vmem:[%s1 + $0x1c0] sm:$0xff]
  %v660 = vld [vmem:[%s1 + $0x1c8] sm:$0xff]
  %v661 = vld [vmem:[%s1 + $0x1d0] sm:$0xff]
  %v662 = vld [vmem:[%s1 + $0x1d8] sm:$0xff]
  %v663 = vld [vmem:[%s1 + $0x1e0] sm:$0xff]
  %v664 = vld [vmem:[%s1 + $0x1e8] sm:$0xff]
  %v665 = vld [vmem:[%s1 + $0x1f0] sm:$0xff]
  %v666 = vld [vmem:[%s1 + $0x1f8] sm:$0xff]
  %667 = vmatprep.subr.mxu0 %v666
  %668 = vmatpush1.msra.mxu0 %v665
  %669 = vmatprep.subr.mxu0 %v664
  %670 = vmatpush1.msra.mxu0 %v663
  %671 = vmatprep.subr.mxu0 %v662
  %672 = vmatpush1.msra.mxu0 %v661
  %673 = vmatprep.subr.mxu0 %v660
  %674 = vmatpush1.msra.mxu0 %v659
  %675 = vmatprep.subr.mxu0 %v658
  %676 = vmatpush1.msra.mxu0 %v657
  %677 = vmatprep.subr.mxu0 %v656
  %678 = vmatpush1.msra.mxu0 %v655
  %679 = vmatprep.subr.mxu0 %v654
  %680 = vmatpush1.msra.mxu0 %v653
  %681 = vmatprep.subr.mxu0 %v652
  %682 = vmatpush1.msra.mxu0 %v651
  %683 = vmatprep.subr.mxu0 %v650
  %684 = vmatpush1.msra.mxu0 %v649
  %685 = vmatprep.subr.mxu0 %v648
  %686 = vmatpush1.msra.mxu0 %v647
  %687 = vmatprep.subr.mxu0 %v646
  %688 = vmatpush1.msra.mxu0 %v645
  %689 = vmatprep.subr.mxu0 %v644
  %690 = vmatpush1.msra.mxu0 %v643
  %691 = vmatprep.subr.mxu0 %v642
  %692 = vmatpush1.msra.mxu0 %v641
  %693 = vmatprep.subr.mxu0 %v640
  %694 = vmatpush1.msra.mxu0 %v639
  %695 = vmatprep.subr.mxu0 %v638
  %696 = vmatpush1.msra.mxu0 %v637
  %697 = vmatprep.subr.mxu0 %v636
  %698 = vmatpush1.msra.mxu0 %v635
  %699 = vmatprep.subr.mxu0 0.0
  %700 = vmatpush2.msra.mxu0 0.0
  %701 = vmatprep.subr.mxu0 0.0
  %702 = vmatpush2.msra.mxu0 0.0
  %703 = vmatprep.subr.mxu0 0.0
  %704 = vmatpush2.msra.mxu0 0.0
  %705 = vmatprep.subr.mxu0 0.0
  %706 = vmatpush2.msra.mxu0 0.0
  %707 = vmatprep.subr.mxu0 0.0
  %708 = vmatpush2.msra.mxu0 0.0
  %709 = vmatprep.subr.mxu0 0.0
  %710 = vmatpush2.msra.mxu0 0.0
  %711 = vmatprep.subr.mxu0 0.0
  %712 = vmatpush2.msra.mxu0 0.0
  %713 = vmatprep.subr.mxu0 0.0
  %714 = vmatpush2.msra.mxu0 0.0
  %715 = vmatprep.subr.mxu0 0.0
  %716 = vmatpush2.msra.mxu0 0.0
  %717 = vmatprep.subr.mxu0 0.0
  %718 = vmatpush2.msra.mxu0 0.0
  %719 = vmatprep.subr.mxu0 0.0
  %720 = vmatpush2.msra.mxu0 0.0
  %721 = vmatprep.subr.mxu0 0.0
  %722 = vmatpush2.msra.mxu0 0.0
  %723 = vmatprep.subr.mxu0 0.0
  %724 = vmatpush2.msra.mxu0 0.0
  %725 = vmatprep.subr.mxu0 0.0
  %726 = vmatpush2.msra.mxu0 0.0
  %727 = vmatprep.subr.mxu0 0.0
  %728 = vmatpush2.msra.mxu0 0.0
  %729 = vmatprep.subr.mxu0 0.0
  %730 = vmatpush2.msra.mxu0 0.0
  %731 = vmatprep.mubr.f32.mxu0 0.0
  %732 = vmatmul.mubr.f32.gmra.mxu0 %v619
  %v733 = vpop.f32.mrf.mxu0
  %v734 = vadd.f32 0.0, %v733
  %v735 = vpop.f32.mrf.mxu0
  %v736 = vadd.f32 0.0, %v735
  %737 = vmatprep.mubr.f32.mxu0 0.0
  %738 = vmatmul.mubr.f32.gmra.mxu0 %v620
  %v739 = vpop.f32.mrf.mxu0
  %v740 = vadd.f32 0.0, %v739
  %v741 = vpop.f32.mrf.mxu0
  %v742 = vadd.f32 0.0, %v741
  %743 = vmatprep.mubr.f32.mxu0 0.0
  %744 = vmatmul.mubr.f32.gmra.mxu0 %v621
  %v745 = vpop.f32.mrf.mxu0
  %v746 = vadd.f32 0.0, %v745
  %v747 = vpop.f32.mrf.mxu0
  %v748 = vadd.f32 0.0, %v747
  %749 = vmatprep.mubr.f32.mxu0 0.0
  %750 = vmatmul.mubr.f32.gmra.mxu0 %v622
  %v751 = vpop.f32.mrf.mxu0
  %v752 = vadd.f32 0.0, %v751
  %v753 = vpop.f32.mrf.mxu0
  %v754 = vadd.f32 0.0, %v753
  %755 = vmatprep.mubr.f32.mxu0 0.0
  %756 = vmatmul.mubr.f32.gmra.mxu0 %v623
  %v757 = vpop.f32.mrf.mxu0
  %v758 = vadd.f32 0.0, %v757
  %v759 = vpop.f32.mrf.mxu0
  %v760 = vadd.f32 0.0, %v759
  %761 = vmatprep.mubr.f32.mxu0 0.0
  %762 = vmatmul.mubr.f32.gmra.mxu0 %v624
  %v763 = vpop.f32.mrf.mxu0
  %v764 = vadd.f32 0.0, %v763
  %v765 = vpop.f32.mrf.mxu0
  %v766 = vadd.f32 0.0, %v765
  %767 = vmatprep.mubr.f32.mxu0 0.0
  %768 = vmatmul.mubr.f32.gmra.mxu0 %v625
  %v769 = vpop.f32.mrf.mxu0
  %v770 = vadd.f32 0.0, %v769
  %v771 = vpop.f32.mrf.mxu0
  %v772 = vadd.f32 0.0, %v771
  %773 = vmatprep.mubr.f32.mxu0 0.0
  %774 = vmatmul.mubr.f32.gmra.mxu0 %v626
  %v775 = vpop.f32.mrf.mxu0
  %v776 = vadd.f32 0.0, %v775
  %v777 = vpop.f32.mrf.mxu0
  %v778 = vadd.f32 0.0, %v777
  %779 = vmatprep.mubr.f32.mxu0 0.0
  %780 = vmatmul.mubr.f32.gmra.mxu0 %v627
  %v781 = vpop.f32.mrf.mxu0
  %v782 = vadd.f32 0.0, %v781
  %v783 = vpop.f32.mrf.mxu0
  %v784 = vadd.f32 0.0, %v783
  %785 = vmatprep.mubr.f32.mxu0 0.0
  %786 = vmatmul.mubr.f32.gmra.mxu0 %v628
  %v787 = vpop.f32.mrf.mxu0
  %v788 = vadd.f32 0.0, %v787
  %v789 = vpop.f32.mrf.mxu0
  %v790 = vadd.f32 0.0, %v789
  %791 = vmatprep.mubr.f32.mxu0 0.0
  %792 = vmatmul.mubr.f32.gmra.mxu0 %v629
  %v793 = vpop.f32.mrf.mxu0
  %v794 = vadd.f32 0.0, %v793
  %v795 = vpop.f32.mrf.mxu0
  %v796 = vadd.f32 0.0, %v795
  %797 = vmatprep.mubr.f32.mxu0 0.0
  %798 = vmatmul.mubr.f32.gmra.mxu0 %v630
  %v799 = vpop.f32.mrf.mxu0
  %v800 = vadd.f32 0.0, %v799
  %v801 = vpop.f32.mrf.mxu0
  %v802 = vadd.f32 0.0, %v801
  %803 = vmatprep.mubr.f32.mxu0 0.0
  %804 = vmatmul.mubr.f32.gmra.mxu0 %v631
  %v805 = vpop.f32.mrf.mxu0
  %v806 = vadd.f32 0.0, %v805
  %v807 = vpop.f32.mrf.mxu0
  %v808 = vadd.f32 0.0, %v807
  %809 = vmatprep.mubr.f32.mxu0 0.0
  %810 = vmatmul.mubr.f32.gmra.mxu0 %v632
  %v811 = vpop.f32.mrf.mxu0
  %v812 = vadd.f32 0.0, %v811
  %v813 = vpop.f32.mrf.mxu0
  %v814 = vadd.f32 0.0, %v813
  %815 = vmatprep.mubr.f32.mxu0 0.0
  %816 = vmatmul.mubr.f32.gmra.mxu0 %v633
  %v817 = vpop.f32.mrf.mxu0
  %v818 = vadd.f32 0.0, %v817
  %v819 = vpop.f32.mrf.mxu0
  %v820 = vadd.f32 0.0, %v819
  %821 = vmatprep.mubr.f32.mxu0 0.0
  %822 = vmatmul.mubr.f32.gmra.mxu0 %v634
  %v823 = vpop.f32.mrf.mxu0
  %v824 = vadd.f32 0.0, %v823
  %v825 = vpop.f32.mrf.mxu0
  %v826 = vadd.f32 0.0, %v825
  %827 = vdwg.mxu0
  %v828 = vld [vmem:[%s2 + $0x12] sm:$0x1]
  %v829 = vlaneseq
  %v830 = vshrl.u32 %v829, 7
  %v831 = vsub.s32 0, %v830
  %v832 = vrot.slane %v828, %v831
  %v833 = vadd.f32 %v734, %v832
  %v834 = vadd.f32 %v740, %v832
  %v835 = vadd.f32 %v746, %v832
  %v836 = vadd.f32 %v752, %v832
  %v837 = vadd.f32 %v758, %v832
  %v838 = vadd.f32 %v764, %v832
  %v839 = vadd.f32 %v770, %v832
  %v840 = vadd.f32 %v776, %v832
  %v841 = vadd.f32 %v782, %v832
  %v842 = vadd.f32 %v788, %v832
  %v843 = vadd.f32 %v794, %v832
  %v844 = vadd.f32 %v800, %v832
  %v845 = vadd.f32 %v806, %v832
  %v846 = vadd.f32 %v812, %v832
  %v847 = vadd.f32 %v818, %v832
  %v848 = vadd.f32 %v824, %v832
  %v849 = vld [vmem:[%s2 + $0x13] sm:$0x1]
  %v850 = vlaneseq
  %v851 = vshrl.u32 %v850, 7
  %v852 = vsub.s32 0, %v851
  %v853 = vrot.slane %v849, %v852
  %v854 = vadd.f32 %v736, %v853
  %v855 = vadd.f32 %v742, %v853
  %v856 = vadd.f32 %v748, %v853
  %v857 = vadd.f32 %v754, %v853
  %v858 = vadd.f32 %v760, %v853
  %v859 = vadd.f32 %v766, %v853
  %v860 = vadd.f32 %v772, %v853
  %v861 = vadd.f32 %v778, %v853
  %v862 = vadd.f32 %v784, %v853
  %v863 = vadd.f32 %v790, %v853
  %v864 = vadd.f32 %v796, %v853
  %v865 = vadd.f32 %v802, %v853
  %v866 = vadd.f32 %v808, %v853
  %v867 = vadd.f32 %v814, %v853
  %v868 = vadd.f32 %v820, %v853
  %v869 = vadd.f32 %v826, %v853
  %v870 = vld [vmem:[%s2 + $0x6] sm:$0x7]
  %v871 = vlaneseq
  %v872 = vshrl.u32 %v871, 7
  %v873 = vsub.s32 0, %v872
  %v874 = vrot.slane %v870, %v873
  %v875 = vmul.f32 %v73, %v874
  %v876 = vmul.f32 %v78, %v874
  %v877 = vmul.f32 %v83, %v874
  %v878 = vmul.f32 %v88, %v874
  %v879 = vmul.f32 %v93, %v874
  %v880 = vmul.f32 %v98, %v874
  %v881 = vmul.f32 %v103, %v874
  %v882 = vmul.f32 %v108, %v874
  %v883 = vmul.f32 %v113, %v874
  %v884 = vmul.f32 %v118, %v874
  %v885 = vmul.f32 %v123, %v874
  %v886 = vmul.f32 %v128, %v874
  %v887 = vmul.f32 %v133, %v874
  %v888 = vmul.f32 %v138, %v874
  %v889 = vmul.f32 %v143, %v874
  %v890 = vmul.f32 %v148, %v874
  %v891 = vlaneseq
  %v892 = vshrl.u32 %v891, 7
  %v893 = vsub.s32 1, %v892
  %v894 = vrot.slane %v870, %v893
  %v895 = vmul.f32 %v152, %v894
  %v896 = vmul.f32 %v156, %v894
  %v897 = vmul.f32 %v160, %v894
  %v898 = vmul.f32 %v164, %v894
  %v899 = vmul.f32 %v168, %v894
  %v900 = vmul.f32 %v172, %v894
  %v901 = vmul.f32 %v176, %v894
  %v902 = vmul.f32 %v180, %v894
  %v903 = vmul.f32 %v184, %v894
  %v904 = vmul.f32 %v188, %v894
  %v905 = vmul.f32 %v192, %v894
  %v906 = vmul.f32 %v196, %v894
  %v907 = vmul.f32 %v200, %v894
  %v908 = vmul.f32 %v204, %v894
  %v909 = vmul.f32 %v208, %v894
  %v910 = vmul.f32 %v212, %v894
  %v911 = vadd.f32 %v875, %v895
  %v912 = vadd.f32 %v876, %v896
  %v913 = vadd.f32 %v877, %v897
  %v914 = vadd.f32 %v878, %v898
  %v915 = vadd.f32 %v879, %v899
  %v916 = vadd.f32 %v880, %v900
  %v917 = vadd.f32 %v881, %v901
  %v918 = vadd.f32 %v882, %v902
  %v919 = vadd.f32 %v883, %v903
  %v920 = vadd.f32 %v884, %v904
  %v921 = vadd.f32 %v885, %v905
  %v922 = vadd.f32 %v886, %v906
  %v923 = vadd.f32 %v887, %v907
  %v924 = vadd.f32 %v888, %v908
  %v925 = vadd.f32 %v889, %v909
  %v926 = vadd.f32 %v890, %v910
  %v927 = vlaneseq
  %v928 = vshrl.u32 %v927, 7
  %v929 = vsub.s32 2, %v928
  %v930 = vrot.slane %v870, %v929
  %v931 = vadd.f32 %v911, %v930
  %v932 = vadd.f32 %v912, %v930
  %v933 = vadd.f32 %v913, %v930
  %v934 = vadd.f32 %v914, %v930
  %v935 = vadd.f32 %v915, %v930
  %v936 = vadd.f32 %v916, %v930
  %v937 = vadd.f32 %v917, %v930
  %v938 = vadd.f32 %v918, %v930
  %v939 = vadd.f32 %v919, %v930
  %v940 = vadd.f32 %v920, %v930
  %v941 = vadd.f32 %v921, %v930
  %v942 = vadd.f32 %v922, %v930
  %v943 = vadd.f32 %v923, %v930
  %v944 = vadd.f32 %v924, %v930
  %v945 = vadd.f32 %v925, %v930
  %v946 = vadd.f32 %v926, %v930
  %v947 = vmax.f32 %v931, 0.0
  %v948 = vmax.f32 %v932, 0.0
  %v949 = vmax.f32 %v933, 0.0
  %v950 = vmax.f32 %v934, 0.0
  %v951 = vmax.f32 %v935, 0.0
  %v952 = vmax.f32 %v936, 0.0
  %v953 = vmax.f32 %v937, 0.0
  %v954 = vmax.f32 %v938, 0.0
  %v955 = vmax.f32 %v939, 0.0
  %v956 = vmax.f32 %v940, 0.0
  %v957 = vmax.f32 %v941, 0.0
  %v958 = vmax.f32 %v942, 0.0
  %v959 = vmax.f32 %v943, 0.0
  %v960 = vmax.f32 %v944, 0.0
  %v961 = vmax.f32 %v945, 0.0
  %v962 = vmax.f32 %v946, 0.0
  %v963 = vld [vmem:[%s1 + $0x200] sm:$0xff]
  %v964 = vld [vmem:[%s1 + $0x208] sm:$0xff]
  %v965 = vld [vmem:[%s1 + $0x210] sm:$0xff]
  %v966 = vld [vmem:[%s1 + $0x218] sm:$0xff]
  %v967 = vld [vmem:[%s1 + $0x220] sm:$0xff]
  %v968 = vld [vmem:[%s1 + $0x228] sm:$0xff]
  %v969 = vld [vmem:[%s1 + $0x230] sm:$0xff]
  %v970 = vld [vmem:[%s1 + $0x238] sm:$0xff]
  %v971 = vld [vmem:[%s1 + $0x240] sm:$0xff]
  %v972 = vld [vmem:[%s1 + $0x248] sm:$0xff]
  %v973 = vld [vmem:[%s1 + $0x250] sm:$0xff]
  %v974 = vld [vmem:[%s1 + $0x258] sm:$0xff]
  %v975 = vld [vmem:[%s1 + $0x260] sm:$0xff]
  %v976 = vld [vmem:[%s1 + $0x268] sm:$0xff]
  %v977 = vld [vmem:[%s1 + $0x270] sm:$0xff]
  %v978 = vld [vmem:[%s1 + $0x278] sm:$0xff]
  %v979 = vld [vmem:[%s1 + $0x280] sm:$0xff]
  %v980 = vld [vmem:[%s1 + $0x288] sm:$0xff]
  %v981 = vld [vmem:[%s1 + $0x290] sm:$0xff]
  %v982 = vld [vmem:[%s1 + $0x298] sm:$0xff]
  %v983 = vld [vmem:[%s1 + $0x2a0] sm:$0xff]
  %v984 = vld [vmem:[%s1 + $0x2a8] sm:$0xff]
  %v985 = vld [vmem:[%s1 + $0x2b0] sm:$0xff]
  %v986 = vld [vmem:[%s1 + $0x2b8] sm:$0xff]
  %v987 = vld [vmem:[%s1 + $0x2c0] sm:$0xff]
  %v988 = vld [vmem:[%s1 + $0x2c8] sm:$0xff]
  %v989 = vld [vmem:[%s1 + $0x2d0] sm:$0xff]
  %v990 = vld [vmem:[%s1 + $0x2d8] sm:$0xff]
  %v991 = vld [vmem:[%s1 + $0x2e0] sm:$0xff]
  %v992 = vld [vmem:[%s1 + $0x2e8] sm:$0xff]
  %v993 = vld [vmem:[%s1 + $0x2f0] sm:$0xff]
  %v994 = vld [vmem:[%s1 + $0x2f8] sm:$0xff]
  %995 = vmatprep.subr.mxu0 %v994
  %996 = vmatpush1.msra.mxu0 %v993
  %997 = vmatprep.subr.mxu0 %v992
  %998 = vmatpush1.msra.mxu0 %v991
  %999 = vmatprep.subr.mxu0 %v990
  %1000 = vmatpush1.msra.mxu0 %v989
  %1001 = vmatprep.subr.mxu0 %v988
  %1002 = vmatpush1.msra.mxu0 %v987
  %1003 = vmatprep.subr.mxu0 %v986
  %1004 = vmatpush1.msra.mxu0 %v985
  %1005 = vmatprep.subr.mxu0 %v984
  %1006 = vmatpush1.msra.mxu0 %v983
  %1007 = vmatprep.subr.mxu0 %v982
  %1008 = vmatpush1.msra.mxu0 %v981
  %1009 = vmatprep.subr.mxu0 %v980
  %1010 = vmatpush1.msra.mxu0 %v979
  %1011 = vmatprep.subr.mxu0 %v978
  %1012 = vmatpush1.msra.mxu0 %v977
  %1013 = vmatprep.subr.mxu0 %v976
  %1014 = vmatpush1.msra.mxu0 %v975
  %1015 = vmatprep.subr.mxu0 %v974
  %1016 = vmatpush1.msra.mxu0 %v973
  %1017 = vmatprep.subr.mxu0 %v972
  %1018 = vmatpush1.msra.mxu0 %v971
  %1019 = vmatprep.subr.mxu0 %v970
  %1020 = vmatpush1.msra.mxu0 %v969
  %1021 = vmatprep.subr.mxu0 %v968
  %1022 = vmatpush1.msra.mxu0 %v967
  %1023 = vmatprep.subr.mxu0 %v966
  %1024 = vmatpush1.msra.mxu0 %v965
  %1025 = vmatprep.subr.mxu0 %v964
  %1026 = vmatpush1.msra.mxu0 %v963
  %1027 = vmatprep.subr.mxu0 0.0
  %1028 = vmatpush2.msra.mxu0 0.0
  %1029 = vmatprep.subr.mxu0 0.0
  %1030 = vmatpush2.msra.mxu0 0.0
  %1031 = vmatprep.subr.mxu0 0.0
  %1032 = vmatpush2.msra.mxu0 0.0
  %1033 = vmatprep.subr.mxu0 0.0
  %1034 = vmatpush2.msra.mxu0 0.0
  %1035 = vmatprep.subr.mxu0 0.0
  %1036 = vmatpush2.msra.mxu0 0.0
  %1037 = vmatprep.subr.mxu0 0.0
  %1038 = vmatpush2.msra.mxu0 0.0
  %1039 = vmatprep.subr.mxu0 0.0
  %1040 = vmatpush2.msra.mxu0 0.0
  %1041 = vmatprep.subr.mxu0 0.0
  %1042 = vmatpush2.msra.mxu0 0.0
  %1043 = vmatprep.subr.mxu0 0.0
  %1044 = vmatpush2.msra.mxu0 0.0
  %1045 = vmatprep.subr.mxu0 0.0
  %1046 = vmatpush2.msra.mxu0 0.0
  %1047 = vmatprep.subr.mxu0 0.0
  %1048 = vmatpush2.msra.mxu0 0.0
  %1049 = vmatprep.subr.mxu0 0.0
  %1050 = vmatpush2.msra.mxu0 0.0
  %1051 = vmatprep.subr.mxu0 0.0
  %1052 = vmatpush2.msra.mxu0 0.0
  %1053 = vmatprep.subr.mxu0 0.0
  %1054 = vmatpush2.msra.mxu0 0.0
  %1055 = vmatprep.subr.mxu0 0.0
  %1056 = vmatpush2.msra.mxu0 0.0
  %1057 = vmatprep.subr.mxu0 0.0
  %1058 = vmatpush2.msra.mxu0 0.0
  %1059 = vmatprep.mubr.f32.mxu0 0.0
  %1060 = vmatmul.mubr.f32.gmra.mxu0 %v947
  %v1061 = vpop.f32.mrf.mxu0
  %v1062 = vadd.f32 0.0, %v1061
  %v1063 = vpop.f32.mrf.mxu0
  %v1064 = vadd.f32 0.0, %v1063
  %1065 = vmatprep.mubr.f32.mxu0 0.0
  %1066 = vmatmul.mubr.f32.gmra.mxu0 %v948
  %v1067 = vpop.f32.mrf.mxu0
  %v1068 = vadd.f32 0.0, %v1067
  %v1069 = vpop.f32.mrf.mxu0
  %v1070 = vadd.f32 0.0, %v1069
  %1071 = vmatprep.mubr.f32.mxu0 0.0
  %1072 = vmatmul.mubr.f32.gmra.mxu0 %v949
  %v1073 = vpop.f32.mrf.mxu0
  %v1074 = vadd.f32 0.0, %v1073
  %v1075 = vpop.f32.mrf.mxu0
  %v1076 = vadd.f32 0.0, %v1075
  %1077 = vmatprep.mubr.f32.mxu0 0.0
  %1078 = vmatmul.mubr.f32.gmra.mxu0 %v950
  %v1079 = vpop.f32.mrf.mxu0
  %v1080 = vadd.f32 0.0, %v1079
  %v1081 = vpop.f32.mrf.mxu0
  %v1082 = vadd.f32 0.0, %v1081
  %1083 = vmatprep.mubr.f32.mxu0 0.0
  %1084 = vmatmul.mubr.f32.gmra.mxu0 %v951
  %v1085 = vpop.f32.mrf.mxu0
  %v1086 = vadd.f32 0.0, %v1085
  %v1087 = vpop.f32.mrf.mxu0
  %v1088 = vadd.f32 0.0, %v1087
  %1089 = vmatprep.mubr.f32.mxu0 0.0
  %1090 = vmatmul.mubr.f32.gmra.mxu0 %v952
  %v1091 = vpop.f32.mrf.mxu0
  %v1092 = vadd.f32 0.0, %v1091
  %v1093 = vpop.f32.mrf.mxu0
  %v1094 = vadd.f32 0.0, %v1093
  %1095 = vmatprep.mubr.f32.mxu0 0.0
  %1096 = vmatmul.mubr.f32.gmra.mxu0 %v953
  %v1097 = vpop.f32.mrf.mxu0
  %v1098 = vadd.f32 0.0, %v1097
  %v1099 = vpop.f32.mrf.mxu0
  %v1100 = vadd.f32 0.0, %v1099
  %1101 = vmatprep.mubr.f32.mxu0 0.0
  %1102 = vmatmul.mubr.f32.gmra.mxu0 %v954
  %v1103 = vpop.f32.mrf.mxu0
  %v1104 = vadd.f32 0.0, %v1103
  %v1105 = vpop.f32.mrf.mxu0
  %v1106 = vadd.f32 0.0, %v1105
  %1107 = vmatprep.mubr.f32.mxu0 0.0
  %1108 = vmatmul.mubr.f32.gmra.mxu0 %v955
  %v1109 = vpop.f32.mrf.mxu0
  %v1110 = vadd.f32 0.0, %v1109
  %v1111 = vpop.f32.mrf.mxu0
  %v1112 = vadd.f32 0.0, %v1111
  %1113 = vmatprep.mubr.f32.mxu0 0.0
  %1114 = vmatmul.mubr.f32.gmra.mxu0 %v956
  %v1115 = vpop.f32.mrf.mxu0
  %v1116 = vadd.f32 0.0, %v1115
  %v1117 = vpop.f32.mrf.mxu0
  %v1118 = vadd.f32 0.0, %v1117
  %1119 = vmatprep.mubr.f32.mxu0 0.0
  %1120 = vmatmul.mubr.f32.gmra.mxu0 %v957
  %v1121 = vpop.f32.mrf.mxu0
  %v1122 = vadd.f32 0.0, %v1121
  %v1123 = vpop.f32.mrf.mxu0
  %v1124 = vadd.f32 0.0, %v1123
  %1125 = vmatprep.mubr.f32.mxu0 0.0
  %1126 = vmatmul.mubr.f32.gmra.mxu0 %v958
  %v1127 = vpop.f32.mrf.mxu0
  %v1128 = vadd.f32 0.0, %v1127
  %v1129 = vpop.f32.mrf.mxu0
  %v1130 = vadd.f32 0.0, %v1129
  %1131 = vmatprep.mubr.f32.mxu0 0.0
  %1132 = vmatmul.mubr.f32.gmra.mxu0 %v959
  %v1133 = vpop.f32.mrf.mxu0
  %v1134 = vadd.f32 0.0, %v1133
  %v1135 = vpop.f32.mrf.mxu0
  %v1136 = vadd.f32 0.0, %v1135
  %1137 = vmatprep.mubr.f32.mxu0 0.0
  %1138 = vmatmul.mubr.f32.gmra.mxu0 %v960
  %v1139 = vpop.f32.mrf.mxu0
  %v1140 = vadd.f32 0.0, %v1139
  %v1141 = vpop.f32.mrf.mxu0
  %v1142 = vadd.f32 0.0, %v1141
  %1143 = vmatprep.mubr.f32.mxu0 0.0
  %1144 = vmatmul.mubr.f32.gmra.mxu0 %v961
  %v1145 = vpop.f32.mrf.mxu0
  %v1146 = vadd.f32 0.0, %v1145
  %v1147 = vpop.f32.mrf.mxu0
  %v1148 = vadd.f32 0.0, %v1147
  %1149 = vmatprep.mubr.f32.mxu0 0.0
  %1150 = vmatmul.mubr.f32.gmra.mxu0 %v962
  %v1151 = vpop.f32.mrf.mxu0
  %v1152 = vadd.f32 0.0, %v1151
  %v1153 = vpop.f32.mrf.mxu0
  %v1154 = vadd.f32 0.0, %v1153
  %1155 = vdwg.mxu0
  %v1156 = vld [vmem:[%s2 + $0x14] sm:$0x1]
  %v1157 = vlaneseq
  %v1158 = vshrl.u32 %v1157, 7
  %v1159 = vsub.s32 0, %v1158
  %v1160 = vrot.slane %v1156, %v1159
  %v1161 = vadd.f32 %v1062, %v1160
  %v1162 = vadd.f32 %v1068, %v1160
  %v1163 = vadd.f32 %v1074, %v1160
  %v1164 = vadd.f32 %v1080, %v1160
  %v1165 = vadd.f32 %v1086, %v1160
  %v1166 = vadd.f32 %v1092, %v1160
  %v1167 = vadd.f32 %v1098, %v1160
  %v1168 = vadd.f32 %v1104, %v1160
  %v1169 = vadd.f32 %v1110, %v1160
  %v1170 = vadd.f32 %v1116, %v1160
  %v1171 = vadd.f32 %v1122, %v1160
  %v1172 = vadd.f32 %v1128, %v1160
  %v1173 = vadd.f32 %v1134, %v1160
  %v1174 = vadd.f32 %v1140, %v1160
  %v1175 = vadd.f32 %v1146, %v1160
  %v1176 = vadd.f32 %v1152, %v1160
  %v1177 = vld [vmem:[%s2 + $0x15] sm:$0x1]
  %v1178 = vlaneseq
  %v1179 = vshrl.u32 %v1178, 7
  %v1180 = vsub.s32 0, %v1179
  %v1181 = vrot.slane %v1177, %v1180
  %v1182 = vadd.f32 %v1064, %v1181
  %v1183 = vadd.f32 %v1070, %v1181
  %v1184 = vadd.f32 %v1076, %v1181
  %v1185 = vadd.f32 %v1082, %v1181
  %v1186 = vadd.f32 %v1088, %v1181
  %v1187 = vadd.f32 %v1094, %v1181
  %v1188 = vadd.f32 %v1100, %v1181
  %v1189 = vadd.f32 %v1106, %v1181
  %v1190 = vadd.f32 %v1112, %v1181
  %v1191 = vadd.f32 %v1118, %v1181
  %v1192 = vadd.f32 %v1124, %v1181
  %v1193 = vadd.f32 %v1130, %v1181
  %v1194 = vadd.f32 %v1136, %v1181
  %v1195 = vadd.f32 %v1142, %v1181
  %v1196 = vadd.f32 %v1148, %v1181
  %v1197 = vadd.f32 %v1154, %v1181
  %v1198 = vld [vmem:[%s2 + $0x9] sm:$0x7]
  %v1199 = vlaneseq
  %v1200 = vshrl.u32 %v1199, 7
  %v1201 = vsub.s32 0, %v1200
  %v1202 = vrot.slane %v1198, %v1201
  %v1203 = vmul.f32 %v73, %v1202
  %v1204 = vmul.f32 %v78, %v1202
  %v1205 = vmul.f32 %v83, %v1202
  %v1206 = vmul.f32 %v88, %v1202
  %v1207 = vmul.f32 %v93, %v1202
  %v1208 = vmul.f32 %v98, %v1202
  %v1209 = vmul.f32 %v103, %v1202
  %v1210 = vmul.f32 %v108, %v1202
  %v1211 = vmul.f32 %v113, %v1202
  %v1212 = vmul.f32 %v118, %v1202
  %v1213 = vmul.f32 %v123, %v1202
  %v1214 = vmul.f32 %v128, %v1202
  %v1215 = vmul.f32 %v133, %v1202
  %v1216 = vmul.f32 %v138, %v1202
  %v1217 = vmul.f32 %v143, %v1202
  %v1218 = vmul.f32 %v148, %v1202
  %v1219 = vlaneseq
  %v1220 = vshrl.u32 %v1219, 7
  %v1221 = vsub.s32 1, %v1220
  %v1222 = vrot.slane %v1198, %v1221
  %v1223 = vmul.f32 %v152, %v1222
  %v1224 = vmul.f32 %v156, %v1222
  %v1225 = vmul.f32 %v160, %v1222
  %v1226 = vmul.f32 %v164, %v1222
  %v1227 = vmul.f32 %v168, %v1222
  %v1228 = vmul.f32 %v172, %v1222
  %v1229 = vmul.f32 %v176, %v1222
  %v1230 = vmul.f32 %v180, %v1222
  %v1231 = vmul.f32 %v184, %v1222
  %v1232 = vmul.f32 %v188, %v1222
  %v1233 = vmul.f32 %v192, %v1222
  %v1234 = vmul.f32 %v196, %v1222
  %v1235 = vmul.f32 %v200, %v1222
  %v1236 = vmul.f32 %v204, %v1222
  %v1237 = vmul.f32 %v208, %v1222
  %v1238 = vmul.f32 %v212, %v1222
  %v1239 = vadd.f32 %v1203, %v1223
  %v1240 = vadd.f32 %v1204, %v1224
  %v1241 = vadd.f32 %v1205, %v1225
  %v1242 = vadd.f32 %v1206, %v1226
  %v1243 = vadd.f32 %v1207, %v1227
  %v1244 = vadd.f32 %v1208, %v1228
  %v1245 = vadd.f32 %v1209, %v1229
  %v1246 = vadd.f32 %v1210, %v1230
  %v1247 = vadd.f32 %v1211, %v1231
  %v1248 = vadd.f32 %v1212, %v1232
  %v1249 = vadd.f32 %v1213, %v1233
  %v1250 = vadd.f32 %v1214, %v1234
  %v1251 = vadd.f32 %v1215, %v1235
  %v1252 = vadd.f32 %v1216, %v1236
  %v1253 = vadd.f32 %v1217, %v1237
  %v1254 = vadd.f32 %v1218, %v1238
  %v1255 = vlaneseq
  %v1256 = vshrl.u32 %v1255, 7
  %v1257 = vsub.s32 2, %v1256
  %v1258 = vrot.slane %v1198, %v1257
  %v1259 = vadd.f32 %v1239, %v1258
  %v1260 = vadd.f32 %v1240, %v1258
  %v1261 = vadd.f32 %v1241, %v1258
  %v1262 = vadd.f32 %v1242, %v1258
  %v1263 = vadd.f32 %v1243, %v1258
  %v1264 = vadd.f32 %v1244, %v1258
  %v1265 = vadd.f32 %v1245, %v1258
  %v1266 = vadd.f32 %v1246, %v1258
  %v1267 = vadd.f32 %v1247, %v1258
  %v1268 = vadd.f32 %v1248, %v1258
  %v1269 = vadd.f32 %v1249, %v1258
  %v1270 = vadd.f32 %v1250, %v1258
  %v1271 = vadd.f32 %v1251, %v1258
  %v1272 = vadd.f32 %v1252, %v1258
  %v1273 = vadd.f32 %v1253, %v1258
  %v1274 = vadd.f32 %v1254, %v1258
  %v1275 = vmax.f32 %v1259, 0.0
  %v1276 = vmax.f32 %v1260, 0.0
  %v1277 = vmax.f32 %v1261, 0.0
  %v1278 = vmax.f32 %v1262, 0.0
  %v1279 = vmax.f32 %v1263, 0.0
  %v1280 = vmax.f32 %v1264, 0.0
  %v1281 = vmax.f32 %v1265, 0.0
  %v1282 = vmax.f32 %v1266, 0.0
  %v1283 = vmax.f32 %v1267, 0.0
  %v1284 = vmax.f32 %v1268, 0.0
  %v1285 = vmax.f32 %v1269, 0.0
  %v1286 = vmax.f32 %v1270, 0.0
  %v1287 = vmax.f32 %v1271, 0.0
  %v1288 = vmax.f32 %v1272, 0.0
  %v1289 = vmax.f32 %v1273, 0.0
  %v1290 = vmax.f32 %v1274, 0.0
  %v1291 = vld [vmem:[%s1 + $0x300] sm:$0xff]
  %v1292 = vld [vmem:[%s1 + $0x308] sm:$0xff]
  %v1293 = vld [vmem:[%s1 + $0x310] sm:$0xff]
  %v1294 = vld [vmem:[%s1 + $0x318] sm:$0xff]
  %v1295 = vld [vmem:[%s1 + $0x320] sm:$0xff]
  %v1296 = vld [vmem:[%s1 + $0x328] sm:$0xff]
  %v1297 = vld [vmem:[%s1 + $0x330] sm:$0xff]
  %v1298 = vld [vmem:[%s1 + $0x338] sm:$0xff]
  %v1299 = vld [vmem:[%s1 + $0x340] sm:$0xff]
  %v1300 = vld [vmem:[%s1 + $0x348] sm:$0xff]
  %v1301 = vld [vmem:[%s1 + $0x350] sm:$0xff]
  %v1302 = vld [vmem:[%s1 + $0x358] sm:$0xff]
  %v1303 = vld [vmem:[%s1 + $0x360] sm:$0xff]
  %v1304 = vld [vmem:[%s1 + $0x368] sm:$0xff]
  %v1305 = vld [vmem:[%s1 + $0x370] sm:$0xff]
  %v1306 = vld [vmem:[%s1 + $0x378] sm:$0xff]
  %v1307 = vld [vmem:[%s1 + $0x380] sm:$0xff]
  %v1308 = vld [vmem:[%s1 + $0x388] sm:$0xff]
  %v1309 = vld [vmem:[%s1 + $0x390] sm:$0xff]
  %v1310 = vld [vmem:[%s1 + $0x398] sm:$0xff]
  %v1311 = vld [vmem:[%s1 + $0x3a0] sm:$0xff]
  %v1312 = vld [vmem:[%s1 + $0x3a8] sm:$0xff]
  %v1313 = vld [vmem:[%s1 + $0x3b0] sm:$0xff]
  %v1314 = vld [vmem:[%s1 + $0x3b8] sm:$0xff]
  %v1315 = vld [vmem:[%s1 + $0x3c0] sm:$0xff]
  %v1316 = vld [vmem:[%s1 + $0x3c8] sm:$0xff]
  %v1317 = vld [vmem:[%s1 + $0x3d0] sm:$0xff]
  %v1318 = vld [vmem:[%s1 + $0x3d8] sm:$0xff]
  %v1319 = vld [vmem:[%s1 + $0x3e0] sm:$0xff]
  %v1320 = vld [vmem:[%s1 + $0x3e8] sm:$0xff]
  %v1321 = vld [vmem:[%s1 + $0x3f0] sm:$0xff]
  %v1322 = vld [vmem:[%s1 + $0x3f8] sm:$0xff]
  %1323 = vmatprep.subr.mxu0 %v1322
  %1324 = vmatpush1.msra.mxu0 %v1321
  %1325 = vmatprep.subr.mxu0 %v1320
  %1326 = vmatpush1.msra.mxu0 %v1319
  %1327 = vmatprep.subr.mxu0 %v1318
  %1328 = vmatpush1.msra.mxu0 %v1317
  %1329 = vmatprep.subr.mxu0 %v1316
  %1330 = vmatpush1.msra.mxu0 %v1315
  %1331 = vmatprep.subr.mxu0 %v1314
  %1332 = vmatpush1.msra.mxu0 %v1313
  %1333 = vmatprep.subr.mxu0 %v1312
  %1334 = vmatpush1.msra.mxu0 %v1311
  %1335 = vmatprep.subr.mxu0 %v1310
  %1336 = vmatpush1.msra.mxu0 %v1309
  %1337 = vmatprep.subr.mxu0 %v1308
  %1338 = vmatpush1.msra.mxu0 %v1307
  %1339 = vmatprep.subr.mxu0 %v1306
  %1340 = vmatpush1.msra.mxu0 %v1305
  %1341 = vmatprep.subr.mxu0 %v1304
  %1342 = vmatpush1.msra.mxu0 %v1303
  %1343 = vmatprep.subr.mxu0 %v1302
  %1344 = vmatpush1.msra.mxu0 %v1301
  %1345 = vmatprep.subr.mxu0 %v1300
  %1346 = vmatpush1.msra.mxu0 %v1299
  %1347 = vmatprep.subr.mxu0 %v1298
  %1348 = vmatpush1.msra.mxu0 %v1297
  %1349 = vmatprep.subr.mxu0 %v1296
  %1350 = vmatpush1.msra.mxu0 %v1295
  %1351 = vmatprep.subr.mxu0 %v1294
  %1352 = vmatpush1.msra.mxu0 %v1293
  %1353 = vmatprep.subr.mxu0 %v1292
  %1354 = vmatpush1.msra.mxu0 %v1291
  %1355 = vmatprep.subr.mxu0 0.0
  %1356 = vmatpush2.msra.mxu0 0.0
  %1357 = vmatprep.subr.mxu0 0.0
  %1358 = vmatpush2.msra.mxu0 0.0
  %1359 = vmatprep.subr.mxu0 0.0
  %1360 = vmatpush2.msra.mxu0 0.0
  %1361 = vmatprep.subr.mxu0 0.0
  %1362 = vmatpush2.msra.mxu0 0.0
  %1363 = vmatprep.subr.mxu0 0.0
  %1364 = vmatpush2.msra.mxu0 0.0
  %1365 = vmatprep.subr.mxu0 0.0
  %1366 = vmatpush2.msra.mxu0 0.0
  %1367 = vmatprep.subr.mxu0 0.0
  %1368 = vmatpush2.msra.mxu0 0.0
  %1369 = vmatprep.subr.mxu0 0.0
  %1370 = vmatpush2.msra.mxu0 0.0
  %1371 = vmatprep.subr.mxu0 0.0
  %1372 = vmatpush2.msra.mxu0 0.0
  %1373 = vmatprep.subr.mxu0 0.0
  %1374 = vmatpush2.msra.mxu0 0.0
  %1375 = vmatprep.subr.mxu0 0.0
  %1376 = vmatpush2.msra.mxu0 0.0
  %1377 = vmatprep.subr.mxu0 0.0
  %1378 = vmatpush2.msra.mxu0 0.0
  %1379 = vmatprep.subr.mxu0 0.0
  %1380 = vmatpush2.msra.mxu0 0.0
  %1381 = vmatprep.subr.mxu0 0.0
  %1382 = vmatpush2.msra.mxu0 0.0
  %1383 = vmatprep.subr.mxu0 0.0
  %1384 = vmatpush2.msra.mxu0 0.0
  %1385 = vmatprep.subr.mxu0 0.0
  %1386 = vmatpush2.msra.mxu0 0.0
  %1387 = vmatprep.mubr.f32.mxu0 0.0
  %1388 = vmatmul.mubr.f32.gmra.mxu0 %v1275
  %v1389 = vpop.f32.mrf.mxu0
  %v1390 = vadd.f32 0.0, %v1389
  %v1391 = vpop.f32.mrf.mxu0
  %v1392 = vadd.f32 0.0, %v1391
  %1393 = vmatprep.mubr.f32.mxu0 0.0
  %1394 = vmatmul.mubr.f32.gmra.mxu0 %v1276
  %v1395 = vpop.f32.mrf.mxu0
  %v1396 = vadd.f32 0.0, %v1395
  %v1397 = vpop.f32.mrf.mxu0
  %v1398 = vadd.f32 0.0, %v1397
  %1399 = vmatprep.mubr.f32.mxu0 0.0
  %1400 = vmatmul.mubr.f32.gmra.mxu0 %v1277
  %v1401 = vpop.f32.mrf.mxu0
  %v1402 = vadd.f32 0.0, %v1401
  %v1403 = vpop.f32.mrf.mxu0
  %v1404 = vadd.f32 0.0, %v1403
  %1405 = vmatprep.mubr.f32.mxu0 0.0
  %1406 = vmatmul.mubr.f32.gmra.mxu0 %v1278
  %v1407 = vpop.f32.mrf.mxu0
  %v1408 = vadd.f32 0.0, %v1407
  %v1409 = vpop.f32.mrf.mxu0
  %v1410 = vadd.f32 0.0, %v1409
  %1411 = vmatprep.mubr.f32.mxu0 0.0
  %1412 = vmatmul.mubr.f32.gmra.mxu0 %v1279
  %v1413 = vpop.f32.mrf.mxu0
  %v1414 = vadd.f32 0.0, %v1413
  %v1415 = vpop.f32.mrf.mxu0
  %v1416 = vadd.f32 0.0, %v1415
  %1417 = vmatprep.mubr.f32.mxu0 0.0
  %1418 = vmatmul.mubr.f32.gmra.mxu0 %v1280
  %v1419 = vpop.f32.mrf.mxu0
  %v1420 = vadd.f32 0.0, %v1419
  %v1421 = vpop.f32.mrf.mxu0
  %v1422 = vadd.f32 0.0, %v1421
  %1423 = vmatprep.mubr.f32.mxu0 0.0
  %1424 = vmatmul.mubr.f32.gmra.mxu0 %v1281
  %v1425 = vpop.f32.mrf.mxu0
  %v1426 = vadd.f32 0.0, %v1425
  %v1427 = vpop.f32.mrf.mxu0
  %v1428 = vadd.f32 0.0, %v1427
  %1429 = vmatprep.mubr.f32.mxu0 0.0
  %1430 = vmatmul.mubr.f32.gmra.mxu0 %v1282
  %v1431 = vpop.f32.mrf.mxu0
  %v1432 = vadd.f32 0.0, %v1431
  %v1433 = vpop.f32.mrf.mxu0
  %v1434 = vadd.f32 0.0, %v1433
  %1435 = vmatprep.mubr.f32.mxu0 0.0
  %1436 = vmatmul.mubr.f32.gmra.mxu0 %v1283
  %v1437 = vpop.f32.mrf.mxu0
  %v1438 = vadd.f32 0.0, %v1437
  %v1439 = vpop.f32.mrf.mxu0
  %v1440 = vadd.f32 0.0, %v1439
  %1441 = vmatprep.mubr.f32.mxu0 0.0
  %1442 = vmatmul.mubr.f32.gmra.mxu0 %v1284
  %v1443 = vpop.f32.mrf.mxu0
  %v1444 = vadd.f32 0.0, %v1443
  %v1445 = vpop.f32.mrf.mxu0
  %v1446 = vadd.f32 0.0, %v1445
  %1447 = vmatprep.mubr.f32.mxu0 0.0
  %1448 = vmatmul.mubr.f32.gmra.mxu0 %v1285
  %v1449 = vpop.f32.mrf.mxu0
  %v1450 = vadd.f32 0.0, %v1449
  %v1451 = vpop.f32.mrf.mxu0
  %v1452 = vadd.f32 0.0, %v1451
  %1453 = vmatprep.mubr.f32.mxu0 0.0
  %1454 = vmatmul.mubr.f32.gmra.mxu0 %v1286
  %v1455 = vpop.f32.mrf.mxu0
  %v1456 = vadd.f32 0.0, %v1455
  %v1457 = vpop.f32.mrf.mxu0
  %v1458 = vadd.f32 0.0, %v1457
  %1459 = vmatprep.mubr.f32.mxu0 0.0
  %1460 = vmatmul.mubr.f32.gmra.mxu0 %v1287
  %v1461 = vpop.f32.mrf.mxu0
  %v1462 = vadd.f32 0.0, %v1461
  %v1463 = vpop.f32.mrf.mxu0
  %v1464 = vadd.f32 0.0, %v1463
  %1465 = vmatprep.mubr.f32.mxu0 0.0
  %1466 = vmatmul.mubr.f32.gmra.mxu0 %v1288
  %v1467 = vpop.f32.mrf.mxu0
  %v1468 = vadd.f32 0.0, %v1467
  %v1469 = vpop.f32.mrf.mxu0
  %v1470 = vadd.f32 0.0, %v1469
  %1471 = vmatprep.mubr.f32.mxu0 0.0
  %1472 = vmatmul.mubr.f32.gmra.mxu0 %v1289
  %v1473 = vpop.f32.mrf.mxu0
  %v1474 = vadd.f32 0.0, %v1473
  %v1475 = vpop.f32.mrf.mxu0
  %v1476 = vadd.f32 0.0, %v1475
  %1477 = vmatprep.mubr.f32.mxu0 0.0
  %1478 = vmatmul.mubr.f32.gmra.mxu0 %v1290
  %v1479 = vpop.f32.mrf.mxu0
  %v1480 = vadd.f32 0.0, %v1479
  %v1481 = vpop.f32.mrf.mxu0
  %v1482 = vadd.f32 0.0, %v1481
  %1483 = vdwg.mxu0
  %v1484 = vld [vmem:[%s2 + $0x16] sm:$0x1]
  %v1485 = vlaneseq
  %v1486 = vshrl.u32 %v1485, 7
  %v1487 = vsub.s32 0, %v1486
  %v1488 = vrot.slane %v1484, %v1487
  %v1489 = vadd.f32 %v1390, %v1488
  %v1490 = vadd.f32 %v1396, %v1488
  %v1491 = vadd.f32 %v1402, %v1488
  %v1492 = vadd.f32 %v1408, %v1488
  %v1493 = vadd.f32 %v1414, %v1488
  %v1494 = vadd.f32 %v1420, %v1488
  %v1495 = vadd.f32 %v1426, %v1488
  %v1496 = vadd.f32 %v1432, %v1488
  %v1497 = vadd.f32 %v1438, %v1488
  %v1498 = vadd.f32 %v1444, %v1488
  %v1499 = vadd.f32 %v1450, %v1488
  %v1500 = vadd.f32 %v1456, %v1488
  %v1501 = vadd.f32 %v1462, %v1488
  %v1502 = vadd.f32 %v1468, %v1488
  %v1503 = vadd.f32 %v1474, %v1488
  %v1504 = vadd.f32 %v1480, %v1488
  %v1505 = vld [vmem:[%s2 + $0x17] sm:$0x1]
  %v1506 = vlaneseq
  %v1507 = vshrl.u32 %v1506, 7
  %v1508 = vsub.s32 0, %v1507
  %v1509 = vrot.slane %v1505, %v1508
  %v1510 = vadd.f32 %v1392, %v1509
  %v1511 = vadd.f32 %v1398, %v1509
  %v1512 = vadd.f32 %v1404, %v1509
  %v1513 = vadd.f32 %v1410, %v1509
  %v1514 = vadd.f32 %v1416, %v1509
  %v1515 = vadd.f32 %v1422, %v1509
  %v1516 = vadd.f32 %v1428, %v1509
  %v1517 = vadd.f32 %v1434, %v1509
  %v1518 = vadd.f32 %v1440, %v1509
  %v1519 = vadd.f32 %v1446, %v1509
  %v1520 = vadd.f32 %v1452, %v1509
  %v1521 = vadd.f32 %v1458, %v1509
  %v1522 = vadd.f32 %v1464, %v1509
  %v1523 = vadd.f32 %v1470, %v1509
  %v1524 = vadd.f32 %v1476, %v1509
  %v1525 = vadd.f32 %v1482, %v1509
  %v1526 = vld [vmem:[%s3 + $0x100] sm:$0x1]
  %v1527 = vlaneseq
  %v1528 = vshrl.u32 %v1527, 7
  %v1529 = vsub.s32 0, %v1528
  %v1530 = vrot.slane %v1526, %v1529
  %v1531 = vmul.f32 %v73, %v1530
  %v1532 = vmul.f32 %v78, %v1530
  %v1533 = vmul.f32 %v83, %v1530
  %v1534 = vmul.f32 %v88, %v1530
  %v1535 = vmul.f32 %v93, %v1530
  %v1536 = vmul.f32 %v98, %v1530
  %v1537 = vmul.f32 %v103, %v1530
  %v1538 = vmul.f32 %v108, %v1530
  %v1539 = vmul.f32 %v113, %v1530
  %v1540 = vmul.f32 %v118, %v1530
  %v1541 = vmul.f32 %v123, %v1530
  %v1542 = vmul.f32 %v128, %v1530
  %v1543 = vmul.f32 %v133, %v1530
  %v1544 = vmul.f32 %v138, %v1530
  %v1545 = vmul.f32 %v143, %v1530
  %v1546 = vmul.f32 %v148, %v1530
  %v1547 = vld [vmem:[%s3 + $0x101] sm:$0x1]
  %v1548 = vlaneseq
  %v1549 = vshrl.u32 %v1548, 7
  %v1550 = vsub.s32 0, %v1549
  %v1551 = vrot.slane %v1547, %v1550
  %v1552 = vmul.f32 %v152, %v1551
  %v1553 = vmul.f32 %v156, %v1551
  %v1554 = vmul.f32 %v160, %v1551
  %v1555 = vmul.f32 %v164, %v1551
  %v1556 = vmul.f32 %v168, %v1551
  %v1557 = vmul.f32 %v172, %v1551
  %v1558 = vmul.f32 %v176, %v1551
  %v1559 = vmul.f32 %v180, %v1551
  %v1560 = vmul.f32 %v184, %v1551
  %v1561 = vmul.f32 %v188, %v1551
  %v1562 = vmul.f32 %v192, %v1551
  %v1563 = vmul.f32 %v196, %v1551
  %v1564 = vmul.f32 %v200, %v1551
  %v1565 = vmul.f32 %v204, %v1551
  %v1566 = vmul.f32 %v208, %v1551
  %v1567 = vmul.f32 %v212, %v1551
  %v1568 = vadd.f32 %v1531, %v1552
  %v1569 = vadd.f32 %v1532, %v1553
  %v1570 = vadd.f32 %v1533, %v1554
  %v1571 = vadd.f32 %v1534, %v1555
  %v1572 = vadd.f32 %v1535, %v1556
  %v1573 = vadd.f32 %v1536, %v1557
  %v1574 = vadd.f32 %v1537, %v1558
  %v1575 = vadd.f32 %v1538, %v1559
  %v1576 = vadd.f32 %v1539, %v1560
  %v1577 = vadd.f32 %v1540, %v1561
  %v1578 = vadd.f32 %v1541, %v1562
  %v1579 = vadd.f32 %v1542, %v1563
  %v1580 = vadd.f32 %v1543, %v1564
  %v1581 = vadd.f32 %v1544, %v1565
  %v1582 = vadd.f32 %v1545, %v1566
  %v1583 = vadd.f32 %v1546, %v1567
  %v1584 = vld [vmem:[%s3 + $0x102] sm:$0x1]
  %v1585 = vlaneseq
  %v1586 = vshrl.u32 %v1585, 7
  %v1587 = vsub.s32 0, %v1586
  %v1588 = vrot.slane %v1584, %v1587
  %v1589 = vadd.f32 %v1568, %v1588
  %v1590 = vadd.f32 %v1569, %v1588
  %v1591 = vadd.f32 %v1570, %v1588
  %v1592 = vadd.f32 %v1571, %v1588
  %v1593 = vadd.f32 %v1572, %v1588
  %v1594 = vadd.f32 %v1573, %v1588
  %v1595 = vadd.f32 %v1574, %v1588
  %v1596 = vadd.f32 %v1575, %v1588
  %v1597 = vadd.f32 %v1576, %v1588
  %v1598 = vadd.f32 %v1577, %v1588
  %v1599 = vadd.f32 %v1578, %v1588
  %v1600 = vadd.f32 %v1579, %v1588
  %v1601 = vadd.f32 %v1580, %v1588
  %v1602 = vadd.f32 %v1581, %v1588
  %v1603 = vadd.f32 %v1582, %v1588
  %v1604 = vadd.f32 %v1583, %v1588
  %v1605 = vlaneseq
  %v1606 = vshrl.u32 %v1605, 7
  %v1607 = vadd.s32 %v1606, 8
  %v1608 = vadd.s32 %v1606, 16
  %v1609 = vadd.s32 %v1606, 24
  %v1610 = vadd.s32 %v1606, 32
  %v1611 = vadd.s32 %v1606, 40
  %v1612 = vadd.s32 %v1606, 48
  %v1613 = vadd.s32 %v1606, 56
  %v1614 = vadd.s32 %v1606, 64
  %v1615 = vadd.s32 %v1606, 72
  %v1616 = vadd.s32 %v1606, 80
  %v1617 = vadd.s32 %v1606, 88
  %v1618 = vadd.s32 %v1606, 96
  %v1619 = vadd.s32 %v1606, 104
  %v1620 = vadd.s32 %v1606, 112
  %v1621 = vadd.s32 %v1606, 120
  %vm1622 = vcmask 261120
  %v1624 = vsel %vm1622, %v1589, 0
  %v1627 = vsel %vm1622, %v1590, 0
  %v1630 = vsel %vm1622, %v1591, 0
  %v1633 = vsel %vm1622, %v1592, 0
  %v1636 = vsel %vm1622, %v1593, 0
  %v1639 = vsel %vm1622, %v1594, 0
  %v1642 = vsel %vm1622, %v1595, 0
  %v1645 = vsel %vm1622, %v1596, 0
  %v1648 = vsel %vm1622, %v1597, 0
  %v1651 = vsel %vm1622, %v1598, 0
  %v1654 = vsel %vm1622, %v1599, 0
  %v1657 = vsel %vm1622, %v1600, 0
  %v1660 = vsel %vm1622, %v1601, 0
  %v1663 = vsel %vm1622, %v1602, 0
  %v1666 = vsel %vm1622, %v1603, 0
  %v1669 = vsel %vm1622, %v1604, 0
  %1671 = vmatprep.subr.mxu0 0.0
  %1672 = vmatpush1.msra.mxu0 0.0
  %1673 = vmatprep.subr.mxu0 0.0
  %1674 = vmatpush1.msra.mxu0 0.0
  %1675 = vmatprep.subr.mxu0 0.0
  %1676 = vmatpush1.msra.mxu0 0.0
  %1677 = vmatprep.subr.mxu0 0.0
  %1678 = vmatpush1.msra.mxu0 0.0
  %1679 = vmatprep.subr.mxu0 0.0
  %1680 = vmatpush1.msra.mxu0 0.0
  %1681 = vmatprep.subr.mxu0 0.0
  %1682 = vmatpush1.msra.mxu0 0.0
  %1683 = vmatprep.subr.mxu0 0.0
  %1684 = vmatpush1.msra.mxu0 0.0
  %1685 = vmatprep.subr.mxu0 0.0
  %1686 = vmatpush1.msra.mxu0 0.0
  %1687 = vmatprep.subr.mxu0 0.0
  %1688 = vmatpush1.msra.mxu0 0.0
  %1689 = vmatprep.subr.mxu0 0.0
  %1690 = vmatpush1.msra.mxu0 0.0
  %1691 = vmatprep.subr.mxu0 0.0
  %1692 = vmatpush1.msra.mxu0 0.0
  %1693 = vmatprep.subr.mxu0 0.0
  %1694 = vmatpush1.msra.mxu0 0.0
  %1695 = vmatprep.subr.mxu0 0.0
  %1696 = vmatpush1.msra.mxu0 %v53
  %1697 = vmatprep.subr.mxu0 0.0
  %1698 = vmatpush1.msra.mxu0 %v52
  %1699 = vmatprep.subr.mxu0 0.0
  %1700 = vmatpush1.msra.mxu0 %v51
  %1701 = vmatprep.subr.mxu0 0.0
  %1702 = vmatpush1.msra.mxu0 %v50
  %1703 = vmatprep.subr.mxu0 0.0
  %1704 = vmatpush2.msra.mxu0 0.0
  %1705 = vmatprep.subr.mxu0 0.0
  %1706 = vmatpush2.msra.mxu0 0.0
  %1707 = vmatprep.subr.mxu0 0.0
  %1708 = vmatpush2.msra.mxu0 0.0
  %1709 = vmatprep.subr.mxu0 0.0
  %1710 = vmatpush2.msra.mxu0 0.0
  %1711 = vmatprep.subr.mxu0 0.0
  %1712 = vmatpush2.msra.mxu0 0.0
  %1713 = vmatprep.subr.mxu0 0.0
  %1714 = vmatpush2.msra.mxu0 0.0
  %1715 = vmatprep.subr.mxu0 0.0
  %1716 = vmatpush2.msra.mxu0 0.0
  %1717 = vmatprep.subr.mxu0 0.0
  %1718 = vmatpush2.msra.mxu0 0.0
  %1719 = vmatprep.subr.mxu0 0.0
  %1720 = vmatpush2.msra.mxu0 0.0
  %1721 = vmatprep.subr.mxu0 0.0
  %1722 = vmatpush2.msra.mxu0 0.0
  %1723 = vmatprep.subr.mxu0 0.0
  %1724 = vmatpush2.msra.mxu0 0.0
  %1725 = vmatprep.subr.mxu0 0.0
  %1726 = vmatpush2.msra.mxu0 0.0
  %1727 = vmatprep.subr.mxu0 0.0
  %1728 = vmatpush2.msra.mxu0 0.0
  %1729 = vmatprep.subr.mxu0 0.0
  %1730 = vmatpush2.msra.mxu0 0.0
  %1731 = vmatprep.subr.mxu0 0.0
  %1732 = vmatpush2.msra.mxu0 0.0
  %1733 = vmatprep.subr.mxu0 0.0
  %1734 = vmatpush2.msra.mxu0 0.0
  %1735 = vmatprep.mubr.f32.mxu0 0.0
  %1736 = vmatmul.mubr.f32.gmra.mxu0 %v1624
  %v1737 = vpop.f32.mrf.mxu0
  %v1738 = vadd.f32 0.0, %v1737
  %v1739 = vpop.f32.mrf.mxu0
  %1740 = vmatprep.mubr.f32.mxu0 0.0
  %1741 = vmatmul.mubr.f32.gmra.mxu0 %v1627
  %v1742 = vpop.f32.mrf.mxu0
  %v1743 = vadd.f32 0.0, %v1742
  %v1744 = vpop.f32.mrf.mxu0
  %1745 = vmatprep.mubr.f32.mxu0 0.0
  %1746 = vmatmul.mubr.f32.gmra.mxu0 %v1630
  %v1747 = vpop.f32.mrf.mxu0
  %v1748 = vadd.f32 0.0, %v1747
  %v1749 = vpop.f32.mrf.mxu0
  %1750 = vmatprep.mubr.f32.mxu0 0.0
  %1751 = vmatmul.mubr.f32.gmra.mxu0 %v1633
  %v1752 = vpop.f32.mrf.mxu0
  %v1753 = vadd.f32 0.0, %v1752
  %v1754 = vpop.f32.mrf.mxu0
  %1755 = vmatprep.mubr.f32.mxu0 0.0
  %1756 = vmatmul.mubr.f32.gmra.mxu0 %v1636
  %v1757 = vpop.f32.mrf.mxu0
  %v1758 = vadd.f32 0.0, %v1757
  %v1759 = vpop.f32.mrf.mxu0
  %1760 = vmatprep.mubr.f32.mxu0 0.0
  %1761 = vmatmul.mubr.f32.gmra.mxu0 %v1639
  %v1762 = vpop.f32.mrf.mxu0
  %v1763 = vadd.f32 0.0, %v1762
  %v1764 = vpop.f32.mrf.mxu0
  %1765 = vmatprep.mubr.f32.mxu0 0.0
  %1766 = vmatmul.mubr.f32.gmra.mxu0 %v1642
  %v1767 = vpop.f32.mrf.mxu0
  %v1768 = vadd.f32 0.0, %v1767
  %v1769 = vpop.f32.mrf.mxu0
  %1770 = vmatprep.mubr.f32.mxu0 0.0
  %1771 = vmatmul.mubr.f32.gmra.mxu0 %v1645
  %v1772 = vpop.f32.mrf.mxu0
  %v1773 = vadd.f32 0.0, %v1772
  %v1774 = vpop.f32.mrf.mxu0
  %1775 = vmatprep.mubr.f32.mxu0 0.0
  %1776 = vmatmul.mubr.f32.gmra.mxu0 %v1648
  %v1777 = vpop.f32.mrf.mxu0
  %v1778 = vadd.f32 0.0, %v1777
  %v1779 = vpop.f32.mrf.mxu0
  %1780 = vmatprep.mubr.f32.mxu0 0.0
  %1781 = vmatmul.mubr.f32.gmra.mxu0 %v1651
  %v1782 = vpop.f32.mrf.mxu0
  %v1783 = vadd.f32 0.0, %v1782
  %v1784 = vpop.f32.mrf.mxu0
  %1785 = vmatprep.mubr.f32.mxu0 0.0
  %1786 = vmatmul.mubr.f32.gmra.mxu0 %v1654
  %v1787 = vpop.f32.mrf.mxu0
  %v1788 = vadd.f32 0.0, %v1787
  %v1789 = vpop.f32.mrf.mxu0
  %1790 = vmatprep.mubr.f32.mxu0 0.0
  %1791 = vmatmul.mubr.f32.gmra.mxu0 %v1657
  %v1792 = vpop.f32.mrf.mxu0
  %v1793 = vadd.f32 0.0, %v1792
  %v1794 = vpop.f32.mrf.mxu0
  %1795 = vmatprep.mubr.f32.mxu0 0.0
  %1796 = vmatmul.mubr.f32.gmra.mxu0 %v1660
  %v1797 = vpop.f32.mrf.mxu0
  %v1798 = vadd.f32 0.0, %v1797
  %v1799 = vpop.f32.mrf.mxu0
  %1800 = vmatprep.mubr.f32.mxu0 0.0
  %1801 = vmatmul.mubr.f32.gmra.mxu0 %v1663
  %v1802 = vpop.f32.mrf.mxu0
  %v1803 = vadd.f32 0.0, %v1802
  %v1804 = vpop.f32.mrf.mxu0
  %1805 = vmatprep.mubr.f32.mxu0 0.0
  %1806 = vmatmul.mubr.f32.gmra.mxu0 %v1666
  %v1807 = vpop.f32.mrf.mxu0
  %v1808 = vadd.f32 0.0, %v1807
  %v1809 = vpop.f32.mrf.mxu0
  %1810 = vmatprep.mubr.f32.mxu0 0.0
  %1811 = vmatmul.mubr.f32.gmra.mxu0 %v1669
  %v1812 = vpop.f32.mrf.mxu0
  %v1813 = vadd.f32 0.0, %v1812
  %v1814 = vpop.f32.mrf.mxu0
  %1815 = vdwg.mxu0
  %v1816 = vmul.f32 %v526, %v1738
  %v1817 = vmul.f32 %v527, %v1743
  %v1818 = vmul.f32 %v528, %v1748
  %v1819 = vmul.f32 %v529, %v1753
  %v1820 = vmul.f32 %v530, %v1758
  %v1821 = vmul.f32 %v531, %v1763
  %v1822 = vmul.f32 %v532, %v1768
  %v1823 = vmul.f32 %v533, %v1773
  %v1824 = vmul.f32 %v534, %v1778
  %v1825 = vmul.f32 %v535, %v1783
  %v1826 = vmul.f32 %v536, %v1788
  %v1827 = vmul.f32 %v537, %v1793
  %v1828 = vmul.f32 %v538, %v1798
  %v1829 = vmul.f32 %v539, %v1803
  %v1830 = vmul.f32 %v540, %v1808
  %v1831 = vmul.f32 %v541, %v1813
  %1832 = vmatprep.subr.mxu0 0.0
  %1833 = vmatpush1.msra.mxu0 %v1831
  %1834 = vmatprep.subr.mxu0 0.0
  %1835 = vmatpush1.msra.mxu0 %v1830
  %1836 = vmatprep.subr.mxu0 0.0
  %1837 = vmatpush1.msra.mxu0 %v1829
  %1838 = vmatprep.subr.mxu0 0.0
  %1839 = vmatpush1.msra.mxu0 %v1828
  %1840 = vmatprep.subr.mxu0 0.0
  %1841 = vmatpush1.msra.mxu0 %v1827
  %1842 = vmatprep.subr.mxu0 0.0
  %1843 = vmatpush1.msra.mxu0 %v1826
  %1844 = vmatprep.subr.mxu0 0.0
  %1845 = vmatpush1.msra.mxu0 %v1825
  %1846 = vmatprep.subr.mxu0 0.0
  %1847 = vmatpush1.msra.mxu0 %v1824
  %1848 = vmatprep.subr.mxu0 0.0
  %1849 = vmatpush1.msra.mxu0 %v1823
  %1850 = vmatprep.subr.mxu0 0.0
  %1851 = vmatpush1.msra.mxu0 %v1822
  %1852 = vmatprep.subr.mxu0 0.0
  %1853 = vmatpush1.msra.mxu0 %v1821
  %1854 = vmatprep.subr.mxu0 0.0
  %1855 = vmatpush1.msra.mxu0 %v1820
  %1856 = vmatprep.subr.mxu0 0.0
  %1857 = vmatpush1.msra.mxu0 %v1819
  %1858 = vmatprep.subr.mxu0 0.0
  %1859 = vmatpush1.msra.mxu0 %v1818
  %1860 = vmatprep.subr.mxu0 0.0
  %1861 = vmatpush1.msra.mxu0 %v1817
  %1862 = vmatprep.subr.mxu0 0.0
  %1863 = vmatpush1.msra.mxu0 %v1816
  %1864 = vmatprep.subr.mxu0 0.0
  %1865 = vmatpush2.msra.mxu0 0.0
  %1866 = vmatprep.subr.mxu0 0.0
  %1867 = vmatpush2.msra.mxu0 0.0
  %1868 = vmatprep.subr.mxu0 0.0
  %1869 = vmatpush2.msra.mxu0 0.0
  %1870 = vmatprep.subr.mxu0 0.0
  %1871 = vmatpush2.msra.mxu0 0.0
  %1872 = vmatprep.subr.mxu0 0.0
  %1873 = vmatpush2.msra.mxu0 0.0
  %1874 = vmatprep.subr.mxu0 0.0
  %1875 = vmatpush2.msra.mxu0 0.0
  %1876 = vmatprep.subr.mxu0 0.0
  %1877 = vmatpush2.msra.mxu0 0.0
  %1878 = vmatprep.subr.mxu0 0.0
  %1879 = vmatpush2.msra.mxu0 0.0
  %1880 = vmatprep.subr.mxu0 0.0
  %1881 = vmatpush2.msra.mxu0 0.0
  %1882 = vmatprep.subr.mxu0 0.0
  %1883 = vmatpush2.msra.mxu0 0.0
  %1884 = vmatprep.subr.mxu0 0.0
  %1885 = vmatpush2.msra.mxu0 0.0
  %1886 = vmatprep.subr.mxu0 0.0
  %1887 = vmatpush2.msra.mxu0 0.0
  %1888 = vmatprep.subr.mxu0 0.0
  %1889 = vmatpush2.msra.mxu0 0.0
  %1890 = vmatprep.subr.mxu0 0.0
  %1891 = vmatpush2.msra.mxu0 0.0
  %1892 = vmatprep.subr.mxu0 0.0
  %1893 = vmatpush2.msra.mxu0 0.0
  %1894 = vmatprep.subr.mxu0 0.0
  %1895 = vmatpush2.msra.mxu0 0.0
  %1896 = vmatprep.mubr.f32.mxu0 0.0
  %1897 = vmatmul.mubr.f32.gmra.mxu0 %v33
  %v1898 = vpop.f32.mrf.mxu0
  %v1899 = vadd.f32 0.0, %v1898
  %v1900 = vpop.f32.mrf.mxu0
  %1901 = vdwg.mxu0
  %1902 = vmatprep.subr.mxu0 0.0
  %1903 = vmatpush1.msra.mxu0 %v49
  %1904 = vmatprep.subr.mxu0 0.0
  %1905 = vmatpush1.msra.mxu0 %v48
  %1906 = vmatprep.subr.mxu0 0.0
  %1907 = vmatpush1.msra.mxu0 %v47
  %1908 = vmatprep.subr.mxu0 0.0
  %1909 = vmatpush1.msra.mxu0 %v46
  %1910 = vmatprep.subr.mxu0 0.0
  %1911 = vmatpush1.msra.mxu0 %v45
  %1912 = vmatprep.subr.mxu0 0.0
  %1913 = vmatpush1.msra.mxu0 %v44
  %1914 = vmatprep.subr.mxu0 0.0
  %1915 = vmatpush1.msra.mxu0 %v43
  %1916 = vmatprep.subr.mxu0 0.0
  %1917 = vmatpush1.msra.mxu0 %v42
  %1918 = vmatprep.subr.mxu0 0.0
  %1919 = vmatpush1.msra.mxu0 %v41
  %1920 = vmatprep.subr.mxu0 0.0
  %1921 = vmatpush1.msra.mxu0 %v40
  %1922 = vmatprep.subr.mxu0 0.0
  %1923 = vmatpush1.msra.mxu0 %v39
  %1924 = vmatprep.subr.mxu0 0.0
  %1925 = vmatpush1.msra.mxu0 %v38
  %1926 = vmatprep.subr.mxu0 0.0
  %1927 = vmatpush1.msra.mxu0 %v37
  %1928 = vmatprep.subr.mxu0 0.0
  %1929 = vmatpush1.msra.mxu0 %v36
  %1930 = vmatprep.subr.mxu0 0.0
  %1931 = vmatpush1.msra.mxu0 %v35
  %1932 = vmatprep.subr.mxu0 0.0
  %1933 = vmatpush1.msra.mxu0 %v34
  %1934 = vmatprep.subr.mxu0 0.0
  %1935 = vmatpush2.msra.mxu0 0.0
  %1936 = vmatprep.subr.mxu0 0.0
  %1937 = vmatpush2.msra.mxu0 0.0
  %1938 = vmatprep.subr.mxu0 0.0
  %1939 = vmatpush2.msra.mxu0 0.0
  %1940 = vmatprep.subr.mxu0 0.0
  %1941 = vmatpush2.msra.mxu0 0.0
  %1942 = vmatprep.subr.mxu0 0.0
  %1943 = vmatpush2.msra.mxu0 0.0
  %1944 = vmatprep.subr.mxu0 0.0
  %1945 = vmatpush2.msra.mxu0 0.0
  %1946 = vmatprep.subr.mxu0 0.0
  %1947 = vmatpush2.msra.mxu0 0.0
  %1948 = vmatprep.subr.mxu0 0.0
  %1949 = vmatpush2.msra.mxu0 0.0
  %1950 = vmatprep.subr.mxu0 0.0
  %1951 = vmatpush2.msra.mxu0 0.0
  %1952 = vmatprep.subr.mxu0 0.0
  %1953 = vmatpush2.msra.mxu0 0.0
  %1954 = vmatprep.subr.mxu0 0.0
  %1955 = vmatpush2.msra.mxu0 0.0
  %1956 = vmatprep.subr.mxu0 0.0
  %1957 = vmatpush2.msra.mxu0 0.0
  %1958 = vmatprep.subr.mxu0 0.0
  %1959 = vmatpush2.msra.mxu0 0.0
  %1960 = vmatprep.subr.mxu0 0.0
  %1961 = vmatpush2.msra.mxu0 0.0
  %1962 = vmatprep.subr.mxu0 0.0
  %1963 = vmatpush2.msra.mxu0 0.0
  %1964 = vmatprep.subr.mxu0 0.0
  %1965 = vmatpush2.msra.mxu0 0.0
  %1966 = vmatprep.mubr.f32.mxu0 0.0
  %1967 = vmatmul.mubr.f32.gmra.mxu0 %v1899
  %v1968 = vpop.f32.mrf.mxu0
  %v1969 = vadd.f32 0.0, %v1968
  %v1970 = vpop.f32.mrf.mxu0
  %1971 = vdwg.mxu0
  %v1972 = vlaneseq
  %v1973 = vshrl.u32 %v1972, 7
  %v1974 = vsub.s32 0, %v1973
  %v1975 = vrot.slane %v1969, %v1974
  %vm1976 = vcmp.ge.s32.totalorder %v1606, 64
  %vm1977 = vcmp.ge.s32.totalorder %v1607, 64
  %vm1978 = vcmp.ge.s32.totalorder %v1608, 64
  %vm1979 = vcmp.ge.s32.totalorder %v1609, 64
  %vm1980 = vcmp.ge.s32.totalorder %v1610, 64
  %vm1981 = vcmp.ge.s32.totalorder %v1611, 64
  %vm1982 = vcmp.ge.s32.totalorder %v1612, 64
  %vm1983 = vcmp.ge.s32.totalorder %v1613, 64
  %vm1984 = vcmp.ge.s32.totalorder %v1614, 64
  %vm1985 = vcmp.ge.s32.totalorder %v1615, 64
  %vm1986 = vcmp.ge.s32.totalorder %v1616, 64
  %vm1987 = vcmp.ge.s32.totalorder %v1617, 64
  %vm1988 = vcmp.ge.s32.totalorder %v1618, 64
  %vm1989 = vcmp.ge.s32.totalorder %v1619, 64
  %vm1990 = vcmp.ge.s32.totalorder %v1620, 64
  %vm1991 = vcmp.ge.s32.totalorder %v1621, 64
  %v1992 = vlaneseq
  %v1993 = vshrl.u32 %v1992, 7
  %v1994 = vsub.s32 1, %v1993
  %v1995 = vrot.slane %v1969, %v1994
  %v1996 = vsel %vm1976, %v1995, %v1975
  %v1997 = vsel %vm1977, %v1995, %v1975
  %v1998 = vsel %vm1978, %v1995, %v1975
  %v1999 = vsel %vm1979, %v1995, %v1975
  %v2000 = vsel %vm1980, %v1995, %v1975
  %v2001 = vsel %vm1981, %v1995, %v1975
  %v2002 = vsel %vm1982, %v1995, %v1975
  %v2003 = vsel %vm1983, %v1995, %v1975
  %v2004 = vsel %vm1984, %v1995, %v1975
  %v2005 = vsel %vm1985, %v1995, %v1975
  %v2006 = vsel %vm1986, %v1995, %v1975
  %v2007 = vsel %vm1987, %v1995, %v1975
  %v2008 = vsel %vm1988, %v1995, %v1975
  %v2009 = vsel %vm1989, %v1995, %v1975
  %v2010 = vsel %vm1990, %v1995, %v1975
  %v2011 = vsel %vm1991, %v1995, %v1975
  %v2012 = vmul.f32 %v505, %v1996
  %v2013 = vmul.f32 %v506, %v1997
  %v2014 = vmul.f32 %v507, %v1998
  %v2015 = vmul.f32 %v508, %v1999
  %v2016 = vmul.f32 %v509, %v2000
  %v2017 = vmul.f32 %v510, %v2001
  %v2018 = vmul.f32 %v511, %v2002
  %v2019 = vmul.f32 %v512, %v2003
  %v2020 = vmul.f32 %v513, %v2004
  %v2021 = vmul.f32 %v514, %v2005
  %v2022 = vmul.f32 %v515, %v2006
  %v2023 = vmul.f32 %v516, %v2007
  %v2024 = vmul.f32 %v517, %v2008
  %v2025 = vmul.f32 %v518, %v2009
  %v2026 = vmul.f32 %v519, %v2010
  %v2027 = vmul.f32 %v520, %v2011
  %v2028 = vld [vmem:[%s3 + $0x80] sm:$0xff]
  %v2029 = vld [vmem:[%s3 + $0x88] sm:$0xff]
  %v2030 = vld [vmem:[%s3 + $0x90] sm:$0xff]
  %v2031 = vld [vmem:[%s3 + $0x98] sm:$0xff]
  %v2032 = vld [vmem:[%s3 + $0x103] sm:$0x1]
  %v2033 = vlaneseq
  %v2034 = vshrl.u32 %v2033, 7
  %v2035 = vsub.s32 0, %v2034
  %v2036 = vrot.slane %v2032, %v2035
  %2037 = vmatprep.subr.mxu0 0.0
  %2038 = vmatpush1.msra.mxu0 0.0
  %2039 = vmatprep.subr.mxu0 0.0
  %2040 = vmatpush1.msra.mxu0 0.0
  %2041 = vmatprep.subr.mxu0 0.0
  %2042 = vmatpush1.msra.mxu0 0.0
  %2043 = vmatprep.subr.mxu0 0.0
  %2044 = vmatpush1.msra.mxu0 0.0
  %2045 = vmatprep.subr.mxu0 0.0
  %2046 = vmatpush1.msra.mxu0 0.0
  %2047 = vmatprep.subr.mxu0 0.0
  %2048 = vmatpush1.msra.mxu0 0.0
  %2049 = vmatprep.subr.mxu0 0.0
  %2050 = vmatpush1.msra.mxu0 0.0
  %2051 = vmatprep.subr.mxu0 0.0
  %2052 = vmatpush1.msra.mxu0 0.0
  %2053 = vmatprep.subr.mxu0 0.0
  %2054 = vmatpush1.msra.mxu0 0.0
  %2055 = vmatprep.subr.mxu0 0.0
  %2056 = vmatpush1.msra.mxu0 0.0
  %2057 = vmatprep.subr.mxu0 0.0
  %2058 = vmatpush1.msra.mxu0 0.0
  %2059 = vmatprep.subr.mxu0 0.0
  %2060 = vmatpush1.msra.mxu0 0.0
  %2061 = vmatprep.subr.mxu0 0.0
  %2062 = vmatpush1.msra.mxu0 %v2031
  %2063 = vmatprep.subr.mxu0 0.0
  %2064 = vmatpush1.msra.mxu0 %v2030
  %2065 = vmatprep.subr.mxu0 0.0
  %2066 = vmatpush1.msra.mxu0 %v2029
  %2067 = vmatprep.subr.mxu0 0.0
  %2068 = vmatpush1.msra.mxu0 %v2028
  %2069 = vmatprep.subr.mxu0 0.0
  %2070 = vmatpush2.msra.mxu0 0.0
  %2071 = vmatprep.subr.mxu0 0.0
  %2072 = vmatpush2.msra.mxu0 0.0
  %2073 = vmatprep.subr.mxu0 0.0
  %2074 = vmatpush2.msra.mxu0 0.0
  %2075 = vmatprep.subr.mxu0 0.0
  %2076 = vmatpush2.msra.mxu0 0.0
  %2077 = vmatprep.subr.mxu0 0.0
  %2078 = vmatpush2.msra.mxu0 0.0
  %2079 = vmatprep.subr.mxu0 0.0
  %2080 = vmatpush2.msra.mxu0 0.0
  %2081 = vmatprep.subr.mxu0 0.0
  %2082 = vmatpush2.msra.mxu0 0.0
  %2083 = vmatprep.subr.mxu0 0.0
  %2084 = vmatpush2.msra.mxu0 0.0
  %2085 = vmatprep.subr.mxu0 0.0
  %2086 = vmatpush2.msra.mxu0 0.0
  %2087 = vmatprep.subr.mxu0 0.0
  %2088 = vmatpush2.msra.mxu0 0.0
  %2089 = vmatprep.subr.mxu0 0.0
  %2090 = vmatpush2.msra.mxu0 0.0
  %2091 = vmatprep.subr.mxu0 0.0
  %2092 = vmatpush2.msra.mxu0 0.0
  %2093 = vmatprep.subr.mxu0 0.0
  %2094 = vmatpush2.msra.mxu0 0.0
  %2095 = vmatprep.subr.mxu0 0.0
  %2096 = vmatpush2.msra.mxu0 0.0
  %2097 = vmatprep.subr.mxu0 0.0
  %2098 = vmatpush2.msra.mxu0 0.0
  %2099 = vmatprep.subr.mxu0 0.0
  %2100 = vmatpush2.msra.mxu0 0.0
  %2101 = vmatprep.mubr.f32.mxu0 0.0
  %2102 = vmatmul.mubr.f32.gmra.mxu0 %v1624
  %v2103 = vpop.f32.mrf.mxu0
  %v2104 = vadd.f32 %v2036, %v2103
  %v2105 = vpop.f32.mrf.mxu0
  %2106 = vmatprep.mubr.f32.mxu0 0.0
  %2107 = vmatmul.mubr.f32.gmra.mxu0 %v1627
  %v2108 = vpop.f32.mrf.mxu0
  %v2109 = vadd.f32 %v2036, %v2108
  %v2110 = vpop.f32.mrf.mxu0
  %2111 = vmatprep.mubr.f32.mxu0 0.0
  %2112 = vmatmul.mubr.f32.gmra.mxu0 %v1630
  %v2113 = vpop.f32.mrf.mxu0
  %v2114 = vadd.f32 %v2036, %v2113
  %v2115 = vpop.f32.mrf.mxu0
  %2116 = vmatprep.mubr.f32.mxu0 0.0
  %2117 = vmatmul.mubr.f32.gmra.mxu0 %v1633
  %v2118 = vpop.f32.mrf.mxu0
  %v2119 = vadd.f32 %v2036, %v2118
  %v2120 = vpop.f32.mrf.mxu0
  %2121 = vmatprep.mubr.f32.mxu0 0.0
  %2122 = vmatmul.mubr.f32.gmra.mxu0 %v1636
  %v2123 = vpop.f32.mrf.mxu0
  %v2124 = vadd.f32 %v2036, %v2123
  %v2125 = vpop.f32.mrf.mxu0
  %2126 = vmatprep.mubr.f32.mxu0 0.0
  %2127 = vmatmul.mubr.f32.gmra.mxu0 %v1639
  %v2128 = vpop.f32.mrf.mxu0
  %v2129 = vadd.f32 %v2036, %v2128
  %v2130 = vpop.f32.mrf.mxu0
  %2131 = vmatprep.mubr.f32.mxu0 0.0
  %2132 = vmatmul.mubr.f32.gmra.mxu0 %v1642
  %v2133 = vpop.f32.mrf.mxu0
  %v2134 = vadd.f32 %v2036, %v2133
  %v2135 = vpop.f32.mrf.mxu0
  %2136 = vmatprep.mubr.f32.mxu0 0.0
  %2137 = vmatmul.mubr.f32.gmra.mxu0 %v1645
  %v2138 = vpop.f32.mrf.mxu0
  %v2139 = vadd.f32 %v2036, %v2138
  %v2140 = vpop.f32.mrf.mxu0
  %2141 = vmatprep.mubr.f32.mxu0 0.0
  %2142 = vmatmul.mubr.f32.gmra.mxu0 %v1648
  %v2143 = vpop.f32.mrf.mxu0
  %v2144 = vadd.f32 %v2036, %v2143
  %v2145 = vpop.f32.mrf.mxu0
  %2146 = vmatprep.mubr.f32.mxu0 0.0
  %2147 = vmatmul.mubr.f32.gmra.mxu0 %v1651
  %v2148 = vpop.f32.mrf.mxu0
  %v2149 = vadd.f32 %v2036, %v2148
  %v2150 = vpop.f32.mrf.mxu0
  %2151 = vmatprep.mubr.f32.mxu0 0.0
  %2152 = vmatmul.mubr.f32.gmra.mxu0 %v1654
  %v2153 = vpop.f32.mrf.mxu0
  %v2154 = vadd.f32 %v2036, %v2153
  %v2155 = vpop.f32.mrf.mxu0
  %2156 = vmatprep.mubr.f32.mxu0 0.0
  %2157 = vmatmul.mubr.f32.gmra.mxu0 %v1657
  %v2158 = vpop.f32.mrf.mxu0
  %v2159 = vadd.f32 %v2036, %v2158
  %v2160 = vpop.f32.mrf.mxu0
  %2161 = vmatprep.mubr.f32.mxu0 0.0
  %2162 = vmatmul.mubr.f32.gmra.mxu0 %v1660
  %v2163 = vpop.f32.mrf.mxu0
  %v2164 = vadd.f32 %v2036, %v2163
  %v2165 = vpop.f32.mrf.mxu0
  %2166 = vmatprep.mubr.f32.mxu0 0.0
  %2167 = vmatmul.mubr.f32.gmra.mxu0 %v1663
  %v2168 = vpop.f32.mrf.mxu0
  %v2169 = vadd.f32 %v2036, %v2168
  %v2170 = vpop.f32.mrf.mxu0
  %2171 = vmatprep.mubr.f32.mxu0 0.0
  %2172 = vmatmul.mubr.f32.gmra.mxu0 %v1666
  %v2173 = vpop.f32.mrf.mxu0
  %v2174 = vadd.f32 %v2036, %v2173
  %v2175 = vpop.f32.mrf.mxu0
  %2176 = vmatprep.mubr.f32.mxu0 0.0
  %2177 = vmatmul.mubr.f32.gmra.mxu0 %v1669
  %v2178 = vpop.f32.mrf.mxu0
  %v2179 = vadd.f32 %v2036, %v2178
  %v2180 = vpop.f32.mrf.mxu0
  %2181 = vdwg.mxu0
  %2182 = vmatprep.subr.mxu0 0.0
  %2183 = vmatpush1.msra.mxu0 %v69
  %2184 = vmatprep.subr.mxu0 0.0
  %2185 = vmatpush1.msra.mxu0 %v68
  %2186 = vmatprep.subr.mxu0 0.0
  %2187 = vmatpush1.msra.mxu0 %v67
  %2188 = vmatprep.subr.mxu0 0.0
  %2189 = vmatpush1.msra.mxu0 %v66
  %2190 = vmatprep.subr.mxu0 0.0
  %2191 = vmatpush1.msra.mxu0 %v65
  %2192 = vmatprep.subr.mxu0 0.0
  %2193 = vmatpush1.msra.mxu0 %v64
  %2194 = vmatprep.subr.mxu0 0.0
  %2195 = vmatpush1.msra.mxu0 %v63
  %2196 = vmatprep.subr.mxu0 0.0
  %2197 = vmatpush1.msra.mxu0 %v62
  %2198 = vmatprep.subr.mxu0 0.0
  %2199 = vmatpush1.msra.mxu0 %v61
  %2200 = vmatprep.subr.mxu0 0.0
  %2201 = vmatpush1.msra.mxu0 %v60
  %2202 = vmatprep.subr.mxu0 0.0
  %2203 = vmatpush1.msra.mxu0 %v59
  %2204 = vmatprep.subr.mxu0 0.0
  %2205 = vmatpush1.msra.mxu0 %v58
  %2206 = vmatprep.subr.mxu0 0.0
  %2207 = vmatpush1.msra.mxu0 %v57
  %2208 = vmatprep.subr.mxu0 0.0
  %2209 = vmatpush1.msra.mxu0 %v56
  %2210 = vmatprep.subr.mxu0 0.0
  %2211 = vmatpush1.msra.mxu0 %v55
  %2212 = vmatprep.subr.mxu0 0.0
  %2213 = vmatpush1.msra.mxu0 %v54
  %2214 = vmatprep.subr.mxu0 0.0
  %2215 = vmatpush2.msra.mxu0 0.0
  %2216 = vmatprep.subr.mxu0 0.0
  %2217 = vmatpush2.msra.mxu0 0.0
  %2218 = vmatprep.subr.mxu0 0.0
  %2219 = vmatpush2.msra.mxu0 0.0
  %2220 = vmatprep.subr.mxu0 0.0
  %2221 = vmatpush2.msra.mxu0 0.0
  %2222 = vmatprep.subr.mxu0 0.0
  %2223 = vmatpush2.msra.mxu0 0.0
  %2224 = vmatprep.subr.mxu0 0.0
  %2225 = vmatpush2.msra.mxu0 0.0
  %2226 = vmatprep.subr.mxu0 0.0
  %2227 = vmatpush2.msra.mxu0 0.0
  %2228 = vmatprep.subr.mxu0 0.0
  %2229 = vmatpush2.msra.mxu0 0.0
  %2230 = vmatprep.subr.mxu0 0.0
  %2231 = vmatpush2.msra.mxu0 0.0
  %2232 = vmatprep.subr.mxu0 0.0
  %2233 = vmatpush2.msra.mxu0 0.0
  %2234 = vmatprep.subr.mxu0 0.0
  %2235 = vmatpush2.msra.mxu0 0.0
  %2236 = vmatprep.subr.mxu0 0.0
  %2237 = vmatpush2.msra.mxu0 0.0
  %2238 = vmatprep.subr.mxu0 0.0
  %2239 = vmatpush2.msra.mxu0 0.0
  %2240 = vmatprep.subr.mxu0 0.0
  %2241 = vmatpush2.msra.mxu0 0.0
  %2242 = vmatprep.subr.mxu0 0.0
  %2243 = vmatpush2.msra.mxu0 0.0
  %2244 = vmatprep.subr.mxu0 0.0
  %2245 = vmatpush2.msra.mxu0 0.0
  %2246 = vmatprep.mubr.f32.mxu0 0.0
  %2247 = vmatmul.mubr.f32.gmra.mxu0 %v2012
  %v2248 = vpop.f32.mrf.mxu0
  %v2249 = vadd.f32 %v2104, %v2248
  %v2250 = vpop.f32.mrf.mxu0
  %2251 = vmatprep.mubr.f32.mxu0 0.0
  %2252 = vmatmul.mubr.f32.gmra.mxu0 %v2013
  %v2253 = vpop.f32.mrf.mxu0
  %v2254 = vadd.f32 %v2109, %v2253
  %v2255 = vpop.f32.mrf.mxu0
  %2256 = vmatprep.mubr.f32.mxu0 0.0
  %2257 = vmatmul.mubr.f32.gmra.mxu0 %v2014
  %v2258 = vpop.f32.mrf.mxu0
  %v2259 = vadd.f32 %v2114, %v2258
  %v2260 = vpop.f32.mrf.mxu0
  %2261 = vmatprep.mubr.f32.mxu0 0.0
  %2262 = vmatmul.mubr.f32.gmra.mxu0 %v2015
  %v2263 = vpop.f32.mrf.mxu0
  %v2264 = vadd.f32 %v2119, %v2263
  %v2265 = vpop.f32.mrf.mxu0
  %2266 = vmatprep.mubr.f32.mxu0 0.0
  %2267 = vmatmul.mubr.f32.gmra.mxu0 %v2016
  %v2268 = vpop.f32.mrf.mxu0
  %v2269 = vadd.f32 %v2124, %v2268
  %v2270 = vpop.f32.mrf.mxu0
  %2271 = vmatprep.mubr.f32.mxu0 0.0
  %2272 = vmatmul.mubr.f32.gmra.mxu0 %v2017
  %v2273 = vpop.f32.mrf.mxu0
  %v2274 = vadd.f32 %v2129, %v2273
  %v2275 = vpop.f32.mrf.mxu0
  %2276 = vmatprep.mubr.f32.mxu0 0.0
  %2277 = vmatmul.mubr.f32.gmra.mxu0 %v2018
  %v2278 = vpop.f32.mrf.mxu0
  %v2279 = vadd.f32 %v2134, %v2278
  %v2280 = vpop.f32.mrf.mxu0
  %2281 = vmatprep.mubr.f32.mxu0 0.0
  %2282 = vmatmul.mubr.f32.gmra.mxu0 %v2019
  %v2283 = vpop.f32.mrf.mxu0
  %v2284 = vadd.f32 %v2139, %v2283
  %v2285 = vpop.f32.mrf.mxu0
  %2286 = vmatprep.mubr.f32.mxu0 0.0
  %2287 = vmatmul.mubr.f32.gmra.mxu0 %v2020
  %v2288 = vpop.f32.mrf.mxu0
  %v2289 = vadd.f32 %v2144, %v2288
  %v2290 = vpop.f32.mrf.mxu0
  %2291 = vmatprep.mubr.f32.mxu0 0.0
  %2292 = vmatmul.mubr.f32.gmra.mxu0 %v2021
  %v2293 = vpop.f32.mrf.mxu0
  %v2294 = vadd.f32 %v2149, %v2293
  %v2295 = vpop.f32.mrf.mxu0
  %2296 = vmatprep.mubr.f32.mxu0 0.0
  %2297 = vmatmul.mubr.f32.gmra.mxu0 %v2022
  %v2298 = vpop.f32.mrf.mxu0
  %v2299 = vadd.f32 %v2154, %v2298
  %v2300 = vpop.f32.mrf.mxu0
  %2301 = vmatprep.mubr.f32.mxu0 0.0
  %2302 = vmatmul.mubr.f32.gmra.mxu0 %v2023
  %v2303 = vpop.f32.mrf.mxu0
  %v2304 = vadd.f32 %v2159, %v2303
  %v2305 = vpop.f32.mrf.mxu0
  %2306 = vmatprep.mubr.f32.mxu0 0.0
  %2307 = vmatmul.mubr.f32.gmra.mxu0 %v2024
  %v2308 = vpop.f32.mrf.mxu0
  %v2309 = vadd.f32 %v2164, %v2308
  %v2310 = vpop.f32.mrf.mxu0
  %2311 = vmatprep.mubr.f32.mxu0 0.0
  %2312 = vmatmul.mubr.f32.gmra.mxu0 %v2025
  %v2313 = vpop.f32.mrf.mxu0
  %v2314 = vadd.f32 %v2169, %v2313
  %v2315 = vpop.f32.mrf.mxu0
  %2316 = vmatprep.mubr.f32.mxu0 0.0
  %2317 = vmatmul.mubr.f32.gmra.mxu0 %v2026
  %v2318 = vpop.f32.mrf.mxu0
  %v2319 = vadd.f32 %v2174, %v2318
  %v2320 = vpop.f32.mrf.mxu0
  %2321 = vmatprep.mubr.f32.mxu0 0.0
  %2322 = vmatmul.mubr.f32.gmra.mxu0 %v2027
  %v2323 = vpop.f32.mrf.mxu0
  %v2324 = vadd.f32 %v2179, %v2323
  %v2325 = vpop.f32.mrf.mxu0
  %2326 = vdwg.mxu0
  %v2327 = vld [vmem:[%s3 + $0x107] sm:$0x1]
  %v2328 = vlaneseq
  %v2329 = vshrl.u32 %v2328, 7
  %v2330 = vsub.s32 0, %v2329
  %v2331 = vrot.slane %v2327, %v2330
  %v2332 = vmul.f32 %v2249, %v2331
  %v2333 = vmul.f32 %v2254, %v2331
  %v2334 = vmul.f32 %v2259, %v2331
  %v2335 = vmul.f32 %v2264, %v2331
  %v2336 = vmul.f32 %v2269, %v2331
  %v2337 = vmul.f32 %v2274, %v2331
  %v2338 = vmul.f32 %v2279, %v2331
  %v2339 = vmul.f32 %v2284, %v2331
  %v2340 = vmul.f32 %v2289, %v2331
  %v2341 = vmul.f32 %v2294, %v2331
  %v2342 = vmul.f32 %v2299, %v2331
  %v2343 = vmul.f32 %v2304, %v2331
  %v2344 = vmul.f32 %v2309, %v2331
  %v2345 = vmul.f32 %v2314, %v2331
  %v2346 = vmul.f32 %v2319, %v2331
  %v2347 = vmul.f32 %v2324, %v2331
  %v2348 = vld [vmem:[%s3 + $0x10a] sm:$0x1]
  %v2349 = vlaneseq
  %v2350 = vshrl.u32 %v2349, 7
  %v2351 = vsub.s32 0, %v2350
  %v2352 = vrot.slane %v2348, %v2351
  %v2353 = vadd.f32 %v2332, %v2352
  %v2354 = vadd.f32 %v2333, %v2352
  %v2355 = vadd.f32 %v2334, %v2352
  %v2356 = vadd.f32 %v2335, %v2352
  %v2357 = vadd.f32 %v2336, %v2352
  %v2358 = vadd.f32 %v2337, %v2352
  %v2359 = vadd.f32 %v2338, %v2352
  %v2360 = vadd.f32 %v2339, %v2352
  %v2361 = vadd.f32 %v2340, %v2352
  %v2362 = vadd.f32 %v2341, %v2352
  %v2363 = vadd.f32 %v2342, %v2352
  %v2364 = vadd.f32 %v2343, %v2352
  %v2365 = vadd.f32 %v2344, %v2352
  %v2366 = vadd.f32 %v2345, %v2352
  %v2367 = vadd.f32 %v2346, %v2352
  %v2368 = vadd.f32 %v2347, %v2352
  %v2369 = vmul.f32 %v2353, 0.5
  %v2370 = vmul.f32 %v2354, 0.5
  %v2371 = vmul.f32 %v2355, 0.5
  %v2372 = vmul.f32 %v2356, 0.5
  %v2373 = vmul.f32 %v2357, 0.5
  %v2374 = vmul.f32 %v2358, 0.5
  %v2375 = vmul.f32 %v2359, 0.5
  %v2376 = vmul.f32 %v2360, 0.5
  %v2377 = vmul.f32 %v2361, 0.5
  %v2378 = vmul.f32 %v2362, 0.5
  %v2379 = vmul.f32 %v2363, 0.5
  %v2380 = vmul.f32 %v2364, 0.5
  %v2381 = vmul.f32 %v2365, 0.5
  %v2382 = vmul.f32 %v2366, 0.5
  %v2383 = vmul.f32 %v2367, 0.5
  %v2384 = vmul.f32 %v2368, 0.5
  %v2385 = vmul.f32 %v2353, 0.044715
  %v2386 = vmul.f32 %v2354, 0.044715
  %v2387 = vmul.f32 %v2355, 0.044715
  %v2388 = vmul.f32 %v2356, 0.044715
  %v2389 = vmul.f32 %v2357, 0.044715
  %v2390 = vmul.f32 %v2358, 0.044715
  %v2391 = vmul.f32 %v2359, 0.044715
  %v2392 = vmul.f32 %v2360, 0.044715
  %v2393 = vmul.f32 %v2361, 0.044715
  %v2394 = vmul.f32 %v2362, 0.044715
  %v2395 = vmul.f32 %v2363, 0.044715
  %v2396 = vmul.f32 %v2364, 0.044715
  %v2397 = vmul.f32 %v2365, 0.044715
  %v2398 = vmul.f32 %v2366, 0.044715
  %v2399 = vmul.f32 %v2367, 0.044715
  %v2400 = vmul.f32 %v2368, 0.044715
  %v2401 = vmul.f32 %v2385, %v2353
  %v2402 = vmul.f32 %v2386, %v2354
  %v2403 = vmul.f32 %v2387, %v2355
  %v2404 = vmul.f32 %v2388, %v2356
  %v2405 = vmul.f32 %v2389, %v2357
  %v2406 = vmul.f32 %v2390, %v2358
  %v2407 = vmul.f32 %v2391, %v2359
  %v2408 = vmul.f32 %v2392, %v2360
  %v2409 = vmul.f32 %v2393, %v2361
  %v2410 = vmul.f32 %v2394, %v2362
  %v2411 = vmul.f32 %v2395, %v2363
  %v2412 = vmul.f32 %v2396, %v2364
  %v2413 = vmul.f32 %v2397, %v2365
  %v2414 = vmul.f32 %v2398, %v2366
  %v2415 = vmul.f32 %v2399, %v2367
  %v2416 = vmul.f32 %v2400, %v2368
  %v2417 = vmul.f32 %v2401, %v2353
  %v2418 = vmul.f32 %v2402, %v2354
  %v2419 = vmul.f32 %v2403, %v2355
  %v2420 = vmul.f32 %v2404, %v2356
  %v2421 = vmul.f32 %v2405, %v2357
  %v2422 = vmul.f32 %v2406, %v2358
  %v2423 = vmul.f32 %v2407, %v2359
  %v2424 = vmul.f32 %v2408, %v2360
  %v2425 = vmul.f32 %v2409, %v2361
  %v2426 = vmul.f32 %v2410, %v2362
  %v2427 = vmul.f32 %v2411, %v2363
  %v2428 = vmul.f32 %v2412, %v2364
  %v2429 = vmul.f32 %v2413, %v2365
  %v2430 = vmul.f32 %v2414, %v2366
  %v2431 = vmul.f32 %v2415, %v2367
  %v2432 = vmul.f32 %v2416, %v2368
  %v2433 = vadd.f32 %v2353, %v2417
  %v2434 = vadd.f32 %v2354, %v2418
  %v2435 = vadd.f32 %v2355, %v2419
  %v2436 = vadd.f32 %v2356, %v2420
  %v2437 = vadd.f32 %v2357, %v2421
  %v2438 = vadd.f32 %v2358, %v2422
  %v2439 = vadd.f32 %v2359, %v2423
  %v2440 = vadd.f32 %v2360, %v2424
  %v2441 = vadd.f32 %v2361, %v2425
  %v2442 = vadd.f32 %v2362, %v2426
  %v2443 = vadd.f32 %v2363, %v2427
  %v2444 = vadd.f32 %v2364, %v2428
  %v2445 = vadd.f32 %v2365, %v2429
  %v2446 = vadd.f32 %v2366, %v2430
  %v2447 = vadd.f32 %v2367, %v2431
  %v2448 = vadd.f32 %v2368, %v2432
  %v2449 = vmul.f32 %v2433, 0.7978846
  %v2450 = vmul.f32 %v2434, 0.7978846
  %v2451 = vmul.f32 %v2435, 0.7978846
  %v2452 = vmul.f32 %v2436, 0.7978846
  %v2453 = vmul.f32 %v2437, 0.7978846
  %v2454 = vmul.f32 %v2438, 0.7978846
  %v2455 = vmul.f32 %v2439, 0.7978846
  %v2456 = vmul.f32 %v2440, 0.7978846
  %v2457 = vmul.f32 %v2441, 0.7978846
  %v2458 = vmul.f32 %v2442, 0.7978846
  %v2459 = vmul.f32 %v2443, 0.7978846
  %v2460 = vmul.f32 %v2444, 0.7978846
  %v2461 = vmul.f32 %v2445, 0.7978846
  %v2462 = vmul.f32 %v2446, 0.7978846
  %v2463 = vmul.f32 %v2447, 0.7978846
  %v2464 = vmul.f32 %v2448, 0.7978846
  %v2465 = vtanh.pop %v2449
  %v2466 = vtanh.pop %v2450
  %v2467 = vtanh.pop %v2451
  %v2468 = vtanh.pop %v2452
  %v2469 = vtanh.pop %v2453
  %v2470 = vtanh.pop %v2454
  %v2471 = vtanh.pop %v2455
  %v2472 = vtanh.pop %v2456
  %v2473 = vtanh.pop %v2457
  %v2474 = vtanh.pop %v2458
  %v2475 = vtanh.pop %v2459
  %v2476 = vtanh.pop %v2460
  %v2477 = vtanh.pop %v2461
  %v2478 = vtanh.pop %v2462
  %v2479 = vtanh.pop %v2463
  %v2480 = vtanh.pop %v2464
  %v2481 = vadd.f32 %v2465, 1.0
  %v2482 = vadd.f32 %v2466, 1.0
  %v2483 = vadd.f32 %v2467, 1.0
  %v2484 = vadd.f32 %v2468, 1.0
  %v2485 = vadd.f32 %v2469, 1.0
  %v2486 = vadd.f32 %v2470, 1.0
  %v2487 = vadd.f32 %v2471, 1.0
  %v2488 = vadd.f32 %v2472, 1.0
  %v2489 = vadd.f32 %v2473, 1.0
  %v2490 = vadd.f32 %v2474, 1.0
  %v2491 = vadd.f32 %v2475, 1.0
  %v2492 = vadd.f32 %v2476, 1.0
  %v2493 = vadd.f32 %v2477, 1.0
  %v2494 = vadd.f32 %v2478, 1.0
  %v2495 = vadd.f32 %v2479, 1.0
  %v2496 = vadd.f32 %v2480, 1.0
  %v2497 = vmul.f32 %v2369, %v2481
  %v2498 = vmul.f32 %v2370, %v2482
  %v2499 = vmul.f32 %v2371, %v2483
  %v2500 = vmul.f32 %v2372, %v2484
  %v2501 = vmul.f32 %v2373, %v2485
  %v2502 = vmul.f32 %v2374, %v2486
  %v2503 = vmul.f32 %v2375, %v2487
  %v2504 = vmul.f32 %v2376, %v2488
  %v2505 = vmul.f32 %v2377, %v2489
  %v2506 = vmul.f32 %v2378, %v2490
  %v2507 = vmul.f32 %v2379, %v2491
  %v2508 = vmul.f32 %v2380, %v2492
  %v2509 = vmul.f32 %v2381, %v2493
  %v2510 = vmul.f32 %v2382, %v2494
  %v2511 = vmul.f32 %v2383, %v2495
  %v2512 = vmul.f32 %v2384, %v2496
  %v2514 = vsel %vm1622, %v2497, 0
  %v2517 = vsel %vm1622, %v2498, 0
  %v2520 = vsel %vm1622, %v2499, 0
  %v2523 = vsel %vm1622, %v2500, 0
  %v2526 = vsel %vm1622, %v2501, 0
  %v2529 = vsel %vm1622, %v2502, 0
  %v2532 = vsel %vm1622, %v2503, 0
  %v2535 = vsel %vm1622, %v2504, 0
  %v2538 = vsel %vm1622, %v2505, 0
  %v2541 = vsel %vm1622, %v2506, 0
  %v2544 = vsel %vm1622, %v2507, 0
  %v2547 = vsel %vm1622, %v2508, 0
  %v2550 = vsel %vm1622, %v2509, 0
  %v2553 = vsel %vm1622, %v2510, 0
  %v2556 = vsel %vm1622, %v2511, 0
  %v2559 = vsel %vm1622, %v2512, 0
  %2561 = vmatprep.subr.mxu0 0.0
  %2562 = vmatpush1.msra.mxu0 0.0
  %2563 = vmatprep.subr.mxu0 0.0
  %2564 = vmatpush1.msra.mxu0 0.0
  %2565 = vmatprep.subr.mxu0 0.0
  %2566 = vmatpush1.msra.mxu0 0.0
  %2567 = vmatprep.subr.mxu0 0.0
  %2568 = vmatpush1.msra.mxu0 0.0
  %2569 = vmatprep.subr.mxu0 0.0
  %2570 = vmatpush1.msra.mxu0 0.0
  %2571 = vmatprep.subr.mxu0 0.0
  %2572 = vmatpush1.msra.mxu0 0.0
  %2573 = vmatprep.subr.mxu0 0.0
  %2574 = vmatpush1.msra.mxu0 0.0
  %2575 = vmatprep.subr.mxu0 0.0
  %2576 = vmatpush1.msra.mxu0 0.0
  %2577 = vmatprep.subr.mxu0 0.0
  %2578 = vmatpush1.msra.mxu0 0.0
  %2579 = vmatprep.subr.mxu0 0.0
  %2580 = vmatpush1.msra.mxu0 0.0
  %2581 = vmatprep.subr.mxu0 0.0
  %2582 = vmatpush1.msra.mxu0 0.0
  %2583 = vmatprep.subr.mxu0 0.0
  %2584 = vmatpush1.msra.mxu0 0.0
  %2585 = vmatprep.subr.mxu0 0.0
  %2586 = vmatpush1.msra.mxu0 %v53
  %2587 = vmatprep.subr.mxu0 0.0
  %2588 = vmatpush1.msra.mxu0 %v52
  %2589 = vmatprep.subr.mxu0 0.0
  %2590 = vmatpush1.msra.mxu0 %v51
  %2591 = vmatprep.subr.mxu0 0.0
  %2592 = vmatpush1.msra.mxu0 %v50
  %2593 = vmatprep.subr.mxu0 0.0
  %2594 = vmatpush2.msra.mxu0 0.0
  %2595 = vmatprep.subr.mxu0 0.0
  %2596 = vmatpush2.msra.mxu0 0.0
  %2597 = vmatprep.subr.mxu0 0.0
  %2598 = vmatpush2.msra.mxu0 0.0
  %2599 = vmatprep.subr.mxu0 0.0
  %2600 = vmatpush2.msra.mxu0 0.0
  %2601 = vmatprep.subr.mxu0 0.0
  %2602 = vmatpush2.msra.mxu0 0.0
  %2603 = vmatprep.subr.mxu0 0.0
  %2604 = vmatpush2.msra.mxu0 0.0
  %2605 = vmatprep.subr.mxu0 0.0
  %2606 = vmatpush2.msra.mxu0 0.0
  %2607 = vmatprep.subr.mxu0 0.0
  %2608 = vmatpush2.msra.mxu0 0.0
  %2609 = vmatprep.subr.mxu0 0.0
  %2610 = vmatpush2.msra.mxu0 0.0
  %2611 = vmatprep.subr.mxu0 0.0
  %2612 = vmatpush2.msra.mxu0 0.0
  %2613 = vmatprep.subr.mxu0 0.0
  %2614 = vmatpush2.msra.mxu0 0.0
  %2615 = vmatprep.subr.mxu0 0.0
  %2616 = vmatpush2.msra.mxu0 0.0
  %2617 = vmatprep.subr.mxu0 0.0
  %2618 = vmatpush2.msra.mxu0 0.0
  %2619 = vmatprep.subr.mxu0 0.0
  %2620 = vmatpush2.msra.mxu0 0.0
  %2621 = vmatprep.subr.mxu0 0.0
  %2622 = vmatpush2.msra.mxu0 0.0
  %2623 = vmatprep.subr.mxu0 0.0
  %2624 = vmatpush2.msra.mxu0 0.0
  %2625 = vmatprep.mubr.f32.mxu0 0.0
  %2626 = vmatmul.mubr.f32.gmra.mxu0 %v2514
  %v2627 = vpop.f32.mrf.mxu0
  %v2628 = vadd.f32 0.0, %v2627
  %v2629 = vpop.f32.mrf.mxu0
  %2630 = vmatprep.mubr.f32.mxu0 0.0
  %2631 = vmatmul.mubr.f32.gmra.mxu0 %v2517
  %v2632 = vpop.f32.mrf.mxu0
  %v2633 = vadd.f32 0.0, %v2632
  %v2634 = vpop.f32.mrf.mxu0
  %2635 = vmatprep.mubr.f32.mxu0 0.0
  %2636 = vmatmul.mubr.f32.gmra.mxu0 %v2520
  %v2637 = vpop.f32.mrf.mxu0
  %v2638 = vadd.f32 0.0, %v2637
  %v2639 = vpop.f32.mrf.mxu0
  %2640 = vmatprep.mubr.f32.mxu0 0.0
  %2641 = vmatmul.mubr.f32.gmra.mxu0 %v2523
  %v2642 = vpop.f32.mrf.mxu0
  %v2643 = vadd.f32 0.0, %v2642
  %v2644 = vpop.f32.mrf.mxu0
  %2645 = vmatprep.mubr.f32.mxu0 0.0
  %2646 = vmatmul.mubr.f32.gmra.mxu0 %v2526
  %v2647 = vpop.f32.mrf.mxu0
  %v2648 = vadd.f32 0.0, %v2647
  %v2649 = vpop.f32.mrf.mxu0
  %2650 = vmatprep.mubr.f32.mxu0 0.0
  %2651 = vmatmul.mubr.f32.gmra.mxu0 %v2529
  %v2652 = vpop.f32.mrf.mxu0
  %v2653 = vadd.f32 0.0, %v2652
  %v2654 = vpop.f32.mrf.mxu0
  %2655 = vmatprep.mubr.f32.mxu0 0.0
  %2656 = vmatmul.mubr.f32.gmra.mxu0 %v2532
  %v2657 = vpop.f32.mrf.mxu0
  %v2658 = vadd.f32 0.0, %v2657
  %v2659 = vpop.f32.mrf.mxu0
  %2660 = vmatprep.mubr.f32.mxu0 0.0
  %2661 = vmatmul.mubr.f32.gmra.mxu0 %v2535
  %v2662 = vpop.f32.mrf.mxu0
  %v2663 = vadd.f32 0.0, %v2662
  %v2664 = vpop.f32.mrf.mxu0
  %2665 = vmatprep.mubr.f32.mxu0 0.0
  %2666 = vmatmul.mubr.f32.gmra.mxu0 %v2538
  %v2667 = vpop.f32.mrf.mxu0
  %v2668 = vadd.f32 0.0, %v2667
  %v2669 = vpop.f32.mrf.mxu0
  %2670 = vmatprep.mubr.f32.mxu0 0.0
  %2671 = vmatmul.mubr.f32.gmra.mxu0 %v2541
  %v2672 = vpop.f32.mrf.mxu0
  %v2673 = vadd.f32 0.0, %v2672
  %v2674 = vpop.f32.mrf.mxu0
  %2675 = vmatprep.mubr.f32.mxu0 0.0
  %2676 = vmatmul.mubr.f32.gmra.mxu0 %v2544
  %v2677 = vpop.f32.mrf.mxu0
  %v2678 = vadd.f32 0.0, %v2677
  %v2679 = vpop.f32.mrf.mxu0
  %2680 = vmatprep.mubr.f32.mxu0 0.0
  %2681 = vmatmul.mubr.f32.gmra.mxu0 %v2547
  %v2682 = vpop.f32.mrf.mxu0
  %v2683 = vadd.f32 0.0, %v2682
  %v2684 = vpop.f32.mrf.mxu0
  %2685 = vmatprep.mubr.f32.mxu0 0.0
  %2686 = vmatmul.mubr.f32.gmra.mxu0 %v2550
  %v2687 = vpop.f32.mrf.mxu0
  %v2688 = vadd.f32 0.0, %v2687
  %v2689 = vpop.f32.mrf.mxu0
  %2690 = vmatprep.mubr.f32.mxu0 0.0
  %2691 = vmatmul.mubr.f32.gmra.mxu0 %v2553
  %v2692 = vpop.f32.mrf.mxu0
  %v2693 = vadd.f32 0.0, %v2692
  %v2694 = vpop.f32.mrf.mxu0
  %2695 = vmatprep.mubr.f32.mxu0 0.0
  %2696 = vmatmul.mubr.f32.gmra.mxu0 %v2556
  %v2697 = vpop.f32.mrf.mxu0
  %v2698 = vadd.f32 0.0, %v2697
  %v2699 = vpop.f32.mrf.mxu0
  %2700 = vmatprep.mubr.f32.mxu0 0.0
  %2701 = vmatmul.mubr.f32.gmra.mxu0 %v2559
  %v2702 = vpop.f32.mrf.mxu0
  %v2703 = vadd.f32 0.0, %v2702
  %v2704 = vpop.f32.mrf.mxu0
  %2705 = vdwg.mxu0
  %v2706 = vmul.f32 %v854, %v2628
  %v2707 = vmul.f32 %v855, %v2633
  %v2708 = vmul.f32 %v856, %v2638
  %v2709 = vmul.f32 %v857, %v2643
  %v2710 = vmul.f32 %v858, %v2648
  %v2711 = vmul.f32 %v859, %v2653
  %v2712 = vmul.f32 %v860, %v2658
  %v2713 = vmul.f32 %v861, %v2663
  %v2714 = vmul.f32 %v862, %v2668
  %v2715 = vmul.f32 %v863, %v2673
  %v2716 = vmul.f32 %v864, %v2678
  %v2717 = vmul.f32 %v865, %v2683
  %v2718 = vmul.f32 %v866, %v2688
  %v2719 = vmul.f32 %v867, %v2693
  %v2720 = vmul.f32 %v868, %v2698
  %v2721 = vmul.f32 %v869, %v2703
  %2722 = vmatprep.subr.mxu0 0.0
  %2723 = vmatpush1.msra.mxu0 %v2721
  %2724 = vmatprep.subr.mxu0 0.0
  %2725 = vmatpush1.msra.mxu0 %v2720
  %2726 = vmatprep.subr.mxu0 0.0
  %2727 = vmatpush1.msra.mxu0 %v2719
  %2728 = vmatprep.subr.mxu0 0.0
  %2729 = vmatpush1.msra.mxu0 %v2718
  %2730 = vmatprep.subr.mxu0 0.0
  %2731 = vmatpush1.msra.mxu0 %v2717
  %2732 = vmatprep.subr.mxu0 0.0
  %2733 = vmatpush1.msra.mxu0 %v2716
  %2734 = vmatprep.subr.mxu0 0.0
  %2735 = vmatpush1.msra.mxu0 %v2715
  %2736 = vmatprep.subr.mxu0 0.0
  %2737 = vmatpush1.msra.mxu0 %v2714
  %2738 = vmatprep.subr.mxu0 0.0
  %2739 = vmatpush1.msra.mxu0 %v2713
  %2740 = vmatprep.subr.mxu0 0.0
  %2741 = vmatpush1.msra.mxu0 %v2712
  %2742 = vmatprep.subr.mxu0 0.0
  %2743 = vmatpush1.msra.mxu0 %v2711
  %2744 = vmatprep.subr.mxu0 0.0
  %2745 = vmatpush1.msra.mxu0 %v2710
  %2746 = vmatprep.subr.mxu0 0.0
  %2747 = vmatpush1.msra.mxu0 %v2709
  %2748 = vmatprep.subr.mxu0 0.0
  %2749 = vmatpush1.msra.mxu0 %v2708
  %2750 = vmatprep.subr.mxu0 0.0
  %2751 = vmatpush1.msra.mxu0 %v2707
  %2752 = vmatprep.subr.mxu0 0.0
  %2753 = vmatpush1.msra.mxu0 %v2706
  %2754 = vmatprep.subr.mxu0 0.0
  %2755 = vmatpush2.msra.mxu0 0.0
  %2756 = vmatprep.subr.mxu0 0.0
  %2757 = vmatpush2.msra.mxu0 0.0
  %2758 = vmatprep.subr.mxu0 0.0
  %2759 = vmatpush2.msra.mxu0 0.0
  %2760 = vmatprep.subr.mxu0 0.0
  %2761 = vmatpush2.msra.mxu0 0.0
  %2762 = vmatprep.subr.mxu0 0.0
  %2763 = vmatpush2.msra.mxu0 0.0
  %2764 = vmatprep.subr.mxu0 0.0
  %2765 = vmatpush2.msra.mxu0 0.0
  %2766 = vmatprep.subr.mxu0 0.0
  %2767 = vmatpush2.msra.mxu0 0.0
  %2768 = vmatprep.subr.mxu0 0.0
  %2769 = vmatpush2.msra.mxu0 0.0
  %2770 = vmatprep.subr.mxu0 0.0
  %2771 = vmatpush2.msra.mxu0 0.0
  %2772 = vmatprep.subr.mxu0 0.0
  %2773 = vmatpush2.msra.mxu0 0.0
  %2774 = vmatprep.subr.mxu0 0.0
  %2775 = vmatpush2.msra.mxu0 0.0
  %2776 = vmatprep.subr.mxu0 0.0
  %2777 = vmatpush2.msra.mxu0 0.0
  %2778 = vmatprep.subr.mxu0 0.0
  %2779 = vmatpush2.msra.mxu0 0.0
  %2780 = vmatprep.subr.mxu0 0.0
  %2781 = vmatpush2.msra.mxu0 0.0
  %2782 = vmatprep.subr.mxu0 0.0
  %2783 = vmatpush2.msra.mxu0 0.0
  %2784 = vmatprep.subr.mxu0 0.0
  %2785 = vmatpush2.msra.mxu0 0.0
  %2786 = vmatprep.mubr.f32.mxu0 0.0
  %2787 = vmatmul.mubr.f32.gmra.mxu0 %v33
  %v2788 = vpop.f32.mrf.mxu0
  %v2789 = vadd.f32 0.0, %v2788
  %v2790 = vpop.f32.mrf.mxu0
  %2791 = vdwg.mxu0
  %2792 = vmatprep.subr.mxu0 0.0
  %2793 = vmatpush1.msra.mxu0 %v49
  %2794 = vmatprep.subr.mxu0 0.0
  %2795 = vmatpush1.msra.mxu0 %v48
  %2796 = vmatprep.subr.mxu0 0.0
  %2797 = vmatpush1.msra.mxu0 %v47
  %2798 = vmatprep.subr.mxu0 0.0
  %2799 = vmatpush1.msra.mxu0 %v46
  %2800 = vmatprep.subr.mxu0 0.0
  %2801 = vmatpush1.msra.mxu0 %v45
  %2802 = vmatprep.subr.mxu0 0.0
  %2803 = vmatpush1.msra.mxu0 %v44
  %2804 = vmatprep.subr.mxu0 0.0
  %2805 = vmatpush1.msra.mxu0 %v43
  %2806 = vmatprep.subr.mxu0 0.0
  %2807 = vmatpush1.msra.mxu0 %v42
  %2808 = vmatprep.subr.mxu0 0.0
  %2809 = vmatpush1.msra.mxu0 %v41
  %2810 = vmatprep.subr.mxu0 0.0
  %2811 = vmatpush1.msra.mxu0 %v40
  %2812 = vmatprep.subr.mxu0 0.0
  %2813 = vmatpush1.msra.mxu0 %v39
  %2814 = vmatprep.subr.mxu0 0.0
  %2815 = vmatpush1.msra.mxu0 %v38
  %2816 = vmatprep.subr.mxu0 0.0
  %2817 = vmatpush1.msra.mxu0 %v37
  %2818 = vmatprep.subr.mxu0 0.0
  %2819 = vmatpush1.msra.mxu0 %v36
  %2820 = vmatprep.subr.mxu0 0.0
  %2821 = vmatpush1.msra.mxu0 %v35
  %2822 = vmatprep.subr.mxu0 0.0
  %2823 = vmatpush1.msra.mxu0 %v34
  %2824 = vmatprep.subr.mxu0 0.0
  %2825 = vmatpush2.msra.mxu0 0.0
  %2826 = vmatprep.subr.mxu0 0.0
  %2827 = vmatpush2.msra.mxu0 0.0
  %2828 = vmatprep.subr.mxu0 0.0
  %2829 = vmatpush2.msra.mxu0 0.0
  %2830 = vmatprep.subr.mxu0 0.0
  %2831 = vmatpush2.msra.mxu0 0.0
  %2832 = vmatprep.subr.mxu0 0.0
  %2833 = vmatpush2.msra.mxu0 0.0
  %2834 = vmatprep.subr.mxu0 0.0
  %2835 = vmatpush2.msra.mxu0 0.0
  %2836 = vmatprep.subr.mxu0 0.0
  %2837 = vmatpush2.msra.mxu0 0.0
  %2838 = vmatprep.subr.mxu0 0.0
  %2839 = vmatpush2.msra.mxu0 0.0
  %2840 = vmatprep.subr.mxu0 0.0
  %2841 = vmatpush2.msra.mxu0 0.0
  %2842 = vmatprep.subr.mxu0 0.0
  %2843 = vmatpush2.msra.mxu0 0.0
  %2844 = vmatprep.subr.mxu0 0.0
  %2845 = vmatpush2.msra.mxu0 0.0
  %2846 = vmatprep.subr.mxu0 0.0
  %2847 = vmatpush2.msra.mxu0 0.0
  %2848 = vmatprep.subr.mxu0 0.0
  %2849 = vmatpush2.msra.mxu0 0.0
  %2850 = vmatprep.subr.mxu0 0.0
  %2851 = vmatpush2.msra.mxu0 0.0
  %2852 = vmatprep.subr.mxu0 0.0
  %2853 = vmatpush2.msra.mxu0 0.0
  %2854 = vmatprep.subr.mxu0 0.0
  %2855 = vmatpush2.msra.mxu0 0.0
  %2856 = vmatprep.mubr.f32.mxu0 0.0
  %2857 = vmatmul.mubr.f32.gmra.mxu0 %v2789
  %v2858 = vpop.f32.mrf.mxu0
  %v2859 = vadd.f32 0.0, %v2858
  %v2860 = vpop.f32.mrf.mxu0
  %2861 = vdwg.mxu0
  %v2862 = vlaneseq
  %v2863 = vshrl.u32 %v2862, 7
  %v2864 = vsub.s32 0, %v2863
  %v2865 = vrot.slane %v2859, %v2864
  %v2866 = vlaneseq
  %v2867 = vshrl.u32 %v2866, 7
  %v2868 = vsub.s32 1, %v2867
  %v2869 = vrot.slane %v2859, %v2868
  %v2870 = vsel %vm1976, %v2869, %v2865
  %v2871 = vsel %vm1977, %v2869, %v2865
  %v2872 = vsel %vm1978, %v2869, %v2865
  %v2873 = vsel %vm1979, %v2869, %v2865
  %v2874 = vsel %vm1980, %v2869, %v2865
  %v2875 = vsel %vm1981, %v2869, %v2865
  %v2876 = vsel %vm1982, %v2869, %v2865
  %v2877 = vsel %vm1983, %v2869, %v2865
  %v2878 = vsel %vm1984, %v2869, %v2865
  %v2879 = vsel %vm1985, %v2869, %v2865
  %v2880 = vsel %vm1986, %v2869, %v2865
  %v2881 = vsel %vm1987, %v2869, %v2865
  %v2882 = vsel %vm1988, %v2869, %v2865
  %v2883 = vsel %vm1989, %v2869, %v2865
  %v2884 = vsel %vm1990, %v2869, %v2865
  %v2885 = vsel %vm1991, %v2869, %v2865
  %v2886 = vmul.f32 %v833, %v2870
  %v2887 = vmul.f32 %v834, %v2871
  %v2888 = vmul.f32 %v835, %v2872
  %v2889 = vmul.f32 %v836, %v2873
  %v2890 = vmul.f32 %v837, %v2874
  %v2891 = vmul.f32 %v838, %v2875
  %v2892 = vmul.f32 %v839, %v2876
  %v2893 = vmul.f32 %v840, %v2877
  %v2894 = vmul.f32 %v841, %v2878
  %v2895 = vmul.f32 %v842, %v2879
  %v2896 = vmul.f32 %v843, %v2880
  %v2897 = vmul.f32 %v844, %v2881
  %v2898 = vmul.f32 %v845, %v2882
  %v2899 = vmul.f32 %v846, %v2883
  %v2900 = vmul.f32 %v847, %v2884
  %v2901 = vmul.f32 %v848, %v2885
  %v2902 = vld [vmem:[%s3 + $0xa0] sm:$0xff]
  %v2903 = vld [vmem:[%s3 + $0xa8] sm:$0xff]
  %v2904 = vld [vmem:[%s3 + $0xb0] sm:$0xff]
  %v2905 = vld [vmem:[%s3 + $0xb8] sm:$0xff]
  %v2906 = vld [vmem:[%s3 + $0x104] sm:$0x1]
  %v2907 = vlaneseq
  %v2908 = vshrl.u32 %v2907, 7
  %v2909 = vsub.s32 0, %v2908
  %v2910 = vrot.slane %v2906, %v2909
  %2911 = vmatprep.subr.mxu0 0.0
  %2912 = vmatpush1.msra.mxu0 0.0
  %2913 = vmatprep.subr.mxu0 0.0
  %2914 = vmatpush1.msra.mxu0 0.0
  %2915 = vmatprep.subr.mxu0 0.0
  %2916 = vmatpush1.msra.mxu0 0.0
  %2917 = vmatprep.subr.mxu0 0.0
  %2918 = vmatpush1.msra.mxu0 0.0
  %2919 = vmatprep.subr.mxu0 0.0
  %2920 = vmatpush1.msra.mxu0 0.0
  %2921 = vmatprep.subr.mxu0 0.0
  %2922 = vmatpush1.msra.mxu0 0.0
  %2923 = vmatprep.subr.mxu0 0.0
  %2924 = vmatpush1.msra.mxu0 0.0
  %2925 = vmatprep.subr.mxu0 0.0
  %2926 = vmatpush1.msra.mxu0 0.0
  %2927 = vmatprep.subr.mxu0 0.0
  %2928 = vmatpush1.msra.mxu0 0.0
  %2929 = vmatprep.subr.mxu0 0.0
  %2930 = vmatpush1.msra.mxu0 0.0
  %2931 = vmatprep.subr.mxu0 0.0
  %2932 = vmatpush1.msra.mxu0 0.0
  %2933 = vmatprep.subr.mxu0 0.0
  %2934 = vmatpush1.msra.mxu0 0.0
  %2935 = vmatprep.subr.mxu0 0.0
  %2936 = vmatpush1.msra.mxu0 %v2905
  %2937 = vmatprep.subr.mxu0 0.0
  %2938 = vmatpush1.msra.mxu0 %v2904
  %2939 = vmatprep.subr.mxu0 0.0
  %2940 = vmatpush1.msra.mxu0 %v2903
  %2941 = vmatprep.subr.mxu0 0.0
  %2942 = vmatpush1.msra.mxu0 %v2902
  %2943 = vmatprep.subr.mxu0 0.0
  %2944 = vmatpush2.msra.mxu0 0.0
  %2945 = vmatprep.subr.mxu0 0.0
  %2946 = vmatpush2.msra.mxu0 0.0
  %2947 = vmatprep.subr.mxu0 0.0
  %2948 = vmatpush2.msra.mxu0 0.0
  %2949 = vmatprep.subr.mxu0 0.0
  %2950 = vmatpush2.msra.mxu0 0.0
  %2951 = vmatprep.subr.mxu0 0.0
  %2952 = vmatpush2.msra.mxu0 0.0
  %2953 = vmatprep.subr.mxu0 0.0
  %2954 = vmatpush2.msra.mxu0 0.0
  %2955 = vmatprep.subr.mxu0 0.0
  %2956 = vmatpush2.msra.mxu0 0.0
  %2957 = vmatprep.subr.mxu0 0.0
  %2958 = vmatpush2.msra.mxu0 0.0
  %2959 = vmatprep.subr.mxu0 0.0
  %2960 = vmatpush2.msra.mxu0 0.0
  %2961 = vmatprep.subr.mxu0 0.0
  %2962 = vmatpush2.msra.mxu0 0.0
  %2963 = vmatprep.subr.mxu0 0.0
  %2964 = vmatpush2.msra.mxu0 0.0
  %2965 = vmatprep.subr.mxu0 0.0
  %2966 = vmatpush2.msra.mxu0 0.0
  %2967 = vmatprep.subr.mxu0 0.0
  %2968 = vmatpush2.msra.mxu0 0.0
  %2969 = vmatprep.subr.mxu0 0.0
  %2970 = vmatpush2.msra.mxu0 0.0
  %2971 = vmatprep.subr.mxu0 0.0
  %2972 = vmatpush2.msra.mxu0 0.0
  %2973 = vmatprep.subr.mxu0 0.0
  %2974 = vmatpush2.msra.mxu0 0.0
  %2975 = vmatprep.mubr.f32.mxu0 0.0
  %2976 = vmatmul.mubr.f32.gmra.mxu0 %v2514
  %v2977 = vpop.f32.mrf.mxu0
  %v2978 = vadd.f32 %v2910, %v2977
  %v2979 = vpop.f32.mrf.mxu0
  %2980 = vmatprep.mubr.f32.mxu0 0.0
  %2981 = vmatmul.mubr.f32.gmra.mxu0 %v2517
  %v2982 = vpop.f32.mrf.mxu0
  %v2983 = vadd.f32 %v2910, %v2982
  %v2984 = vpop.f32.mrf.mxu0
  %2985 = vmatprep.mubr.f32.mxu0 0.0
  %2986 = vmatmul.mubr.f32.gmra.mxu0 %v2520
  %v2987 = vpop.f32.mrf.mxu0
  %v2988 = vadd.f32 %v2910, %v2987
  %v2989 = vpop.f32.mrf.mxu0
  %2990 = vmatprep.mubr.f32.mxu0 0.0
  %2991 = vmatmul.mubr.f32.gmra.mxu0 %v2523
  %v2992 = vpop.f32.mrf.mxu0
  %v2993 = vadd.f32 %v2910, %v2992
  %v2994 = vpop.f32.mrf.mxu0
  %2995 = vmatprep.mubr.f32.mxu0 0.0
  %2996 = vmatmul.mubr.f32.gmra.mxu0 %v2526
  %v2997 = vpop.f32.mrf.mxu0
  %v2998 = vadd.f32 %v2910, %v2997
  %v2999 = vpop.f32.mrf.mxu0
  %3000 = vmatprep.mubr.f32.mxu0 0.0
  %3001 = vmatmul.mubr.f32.gmra.mxu0 %v2529
  %v3002 = vpop.f32.mrf.mxu0
  %v3003 = vadd.f32 %v2910, %v3002
  %v3004 = vpop.f32.mrf.mxu0
  %3005 = vmatprep.mubr.f32.mxu0 0.0
  %3006 = vmatmul.mubr.f32.gmra.mxu0 %v2532
  %v3007 = vpop.f32.mrf.mxu0
  %v3008 = vadd.f32 %v2910, %v3007
  %v3009 = vpop.f32.mrf.mxu0
  %3010 = vmatprep.mubr.f32.mxu0 0.0
  %3011 = vmatmul.mubr.f32.gmra.mxu0 %v2535
  %v3012 = vpop.f32.mrf.mxu0
  %v3013 = vadd.f32 %v2910, %v3012
  %v3014 = vpop.f32.mrf.mxu0
  %3015 = vmatprep.mubr.f32.mxu0 0.0
  %3016 = vmatmul.mubr.f32.gmra.mxu0 %v2538
  %v3017 = vpop.f32.mrf.mxu0
  %v3018 = vadd.f32 %v2910, %v3017
  %v3019 = vpop.f32.mrf.mxu0
  %3020 = vmatprep.mubr.f32.mxu0 0.0
  %3021 = vmatmul.mubr.f32.gmra.mxu0 %v2541
  %v3022 = vpop.f32.mrf.mxu0
  %v3023 = vadd.f32 %v2910, %v3022
  %v3024 = vpop.f32.mrf.mxu0
  %3025 = vmatprep.mubr.f32.mxu0 0.0
  %3026 = vmatmul.mubr.f32.gmra.mxu0 %v2544
  %v3027 = vpop.f32.mrf.mxu0
  %v3028 = vadd.f32 %v2910, %v3027
  %v3029 = vpop.f32.mrf.mxu0
  %3030 = vmatprep.mubr.f32.mxu0 0.0
  %3031 = vmatmul.mubr.f32.gmra.mxu0 %v2547
  %v3032 = vpop.f32.mrf.mxu0
  %v3033 = vadd.f32 %v2910, %v3032
  %v3034 = vpop.f32.mrf.mxu0
  %3035 = vmatprep.mubr.f32.mxu0 0.0
  %3036 = vmatmul.mubr.f32.gmra.mxu0 %v2550
  %v3037 = vpop.f32.mrf.mxu0
  %v3038 = vadd.f32 %v2910, %v3037
  %v3039 = vpop.f32.mrf.mxu0
  %3040 = vmatprep.mubr.f32.mxu0 0.0
  %3041 = vmatmul.mubr.f32.gmra.mxu0 %v2553
  %v3042 = vpop.f32.mrf.mxu0
  %v3043 = vadd.f32 %v2910, %v3042
  %v3044 = vpop.f32.mrf.mxu0
  %3045 = vmatprep.mubr.f32.mxu0 0.0
  %3046 = vmatmul.mubr.f32.gmra.mxu0 %v2556
  %v3047 = vpop.f32.mrf.mxu0
  %v3048 = vadd.f32 %v2910, %v3047
  %v3049 = vpop.f32.mrf.mxu0
  %3050 = vmatprep.mubr.f32.mxu0 0.0
  %3051 = vmatmul.mubr.f32.gmra.mxu0 %v2559
  %v3052 = vpop.f32.mrf.mxu0
  %v3053 = vadd.f32 %v2910, %v3052
  %v3054 = vpop.f32.mrf.mxu0
  %3055 = vdwg.mxu0
  %3056 = vmatprep.subr.mxu0 0.0
  %3057 = vmatpush1.msra.mxu0 %v69
  %3058 = vmatprep.subr.mxu0 0.0
  %3059 = vmatpush1.msra.mxu0 %v68
  %3060 = vmatprep.subr.mxu0 0.0
  %3061 = vmatpush1.msra.mxu0 %v67
  %3062 = vmatprep.subr.mxu0 0.0
  %3063 = vmatpush1.msra.mxu0 %v66
  %3064 = vmatprep.subr.mxu0 0.0
  %3065 = vmatpush1.msra.mxu0 %v65
  %3066 = vmatprep.subr.mxu0 0.0
  %3067 = vmatpush1.msra.mxu0 %v64
  %3068 = vmatprep.subr.mxu0 0.0
  %3069 = vmatpush1.msra.mxu0 %v63
  %3070 = vmatprep.subr.mxu0 0.0
  %3071 = vmatpush1.msra.mxu0 %v62
  %3072 = vmatprep.subr.mxu0 0.0
  %3073 = vmatpush1.msra.mxu0 %v61
  %3074 = vmatprep.subr.mxu0 0.0
  %3075 = vmatpush1.msra.mxu0 %v60
  %3076 = vmatprep.subr.mxu0 0.0
  %3077 = vmatpush1.msra.mxu0 %v59
  %3078 = vmatprep.subr.mxu0 0.0
  %3079 = vmatpush1.msra.mxu0 %v58
  %3080 = vmatprep.subr.mxu0 0.0
  %3081 = vmatpush1.msra.mxu0 %v57
  %3082 = vmatprep.subr.mxu0 0.0
  %3083 = vmatpush1.msra.mxu0 %v56
  %3084 = vmatprep.subr.mxu0 0.0
  %3085 = vmatpush1.msra.mxu0 %v55
  %3086 = vmatprep.subr.mxu0 0.0
  %3087 = vmatpush1.msra.mxu0 %v54
  %3088 = vmatprep.subr.mxu0 0.0
  %3089 = vmatpush2.msra.mxu0 0.0
  %3090 = vmatprep.subr.mxu0 0.0
  %3091 = vmatpush2.msra.mxu0 0.0
  %3092 = vmatprep.subr.mxu0 0.0
  %3093 = vmatpush2.msra.mxu0 0.0
  %3094 = vmatprep.subr.mxu0 0.0
  %3095 = vmatpush2.msra.mxu0 0.0
  %3096 = vmatprep.subr.mxu0 0.0
  %3097 = vmatpush2.msra.mxu0 0.0
  %3098 = vmatprep.subr.mxu0 0.0
  %3099 = vmatpush2.msra.mxu0 0.0
  %3100 = vmatprep.subr.mxu0 0.0
  %3101 = vmatpush2.msra.mxu0 0.0
  %3102 = vmatprep.subr.mxu0 0.0
  %3103 = vmatpush2.msra.mxu0 0.0
  %3104 = vmatprep.subr.mxu0 0.0
  %3105 = vmatpush2.msra.mxu0 0.0
  %3106 = vmatprep.subr.mxu0 0.0
  %3107 = vmatpush2.msra.mxu0 0.0
  %3108 = vmatprep.subr.mxu0 0.0
  %3109 = vmatpush2.msra.mxu0 0.0
  %3110 = vmatprep.subr.mxu0 0.0
  %3111 = vmatpush2.msra.mxu0 0.0
  %3112 = vmatprep.subr.mxu0 0.0
  %3113 = vmatpush2.msra.mxu0 0.0
  %3114 = vmatprep.subr.mxu0 0.0
  %3115 = vmatpush2.msra.mxu0 0.0
  %3116 = vmatprep.subr.mxu0 0.0
  %3117 = vmatpush2.msra.mxu0 0.0
  %3118 = vmatprep.subr.mxu0 0.0
  %3119 = vmatpush2.msra.mxu0 0.0
  %3120 = vmatprep.mubr.f32.mxu0 0.0
  %3121 = vmatmul.mubr.f32.gmra.mxu0 %v2886
  %v3122 = vpop.f32.mrf.mxu0
  %v3123 = vadd.f32 %v2978, %v3122
  %v3124 = vpop.f32.mrf.mxu0
  %3125 = vmatprep.mubr.f32.mxu0 0.0
  %3126 = vmatmul.mubr.f32.gmra.mxu0 %v2887
  %v3127 = vpop.f32.mrf.mxu0
  %v3128 = vadd.f32 %v2983, %v3127
  %v3129 = vpop.f32.mrf.mxu0
  %3130 = vmatprep.mubr.f32.mxu0 0.0
  %3131 = vmatmul.mubr.f32.gmra.mxu0 %v2888
  %v3132 = vpop.f32.mrf.mxu0
  %v3133 = vadd.f32 %v2988, %v3132
  %v3134 = vpop.f32.mrf.mxu0
  %3135 = vmatprep.mubr.f32.mxu0 0.0
  %3136 = vmatmul.mubr.f32.gmra.mxu0 %v2889
  %v3137 = vpop.f32.mrf.mxu0
  %v3138 = vadd.f32 %v2993, %v3137
  %v3139 = vpop.f32.mrf.mxu0
  %3140 = vmatprep.mubr.f32.mxu0 0.0
  %3141 = vmatmul.mubr.f32.gmra.mxu0 %v2890
  %v3142 = vpop.f32.mrf.mxu0
  %v3143 = vadd.f32 %v2998, %v3142
  %v3144 = vpop.f32.mrf.mxu0
  %3145 = vmatprep.mubr.f32.mxu0 0.0
  %3146 = vmatmul.mubr.f32.gmra.mxu0 %v2891
  %v3147 = vpop.f32.mrf.mxu0
  %v3148 = vadd.f32 %v3003, %v3147
  %v3149 = vpop.f32.mrf.mxu0
  %3150 = vmatprep.mubr.f32.mxu0 0.0
  %3151 = vmatmul.mubr.f32.gmra.mxu0 %v2892
  %v3152 = vpop.f32.mrf.mxu0
  %v3153 = vadd.f32 %v3008, %v3152
  %v3154 = vpop.f32.mrf.mxu0
  %3155 = vmatprep.mubr.f32.mxu0 0.0
  %3156 = vmatmul.mubr.f32.gmra.mxu0 %v2893
  %v3157 = vpop.f32.mrf.mxu0
  %v3158 = vadd.f32 %v3013, %v3157
  %v3159 = vpop.f32.mrf.mxu0
  %3160 = vmatprep.mubr.f32.mxu0 0.0
  %3161 = vmatmul.mubr.f32.gmra.mxu0 %v2894
  %v3162 = vpop.f32.mrf.mxu0
  %v3163 = vadd.f32 %v3018, %v3162
  %v3164 = vpop.f32.mrf.mxu0
  %3165 = vmatprep.mubr.f32.mxu0 0.0
  %3166 = vmatmul.mubr.f32.gmra.mxu0 %v2895
  %v3167 = vpop.f32.mrf.mxu0
  %v3168 = vadd.f32 %v3023, %v3167
  %v3169 = vpop.f32.mrf.mxu0
  %3170 = vmatprep.mubr.f32.mxu0 0.0
  %3171 = vmatmul.mubr.f32.gmra.mxu0 %v2896
  %v3172 = vpop.f32.mrf.mxu0
  %v3173 = vadd.f32 %v3028, %v3172
  %v3174 = vpop.f32.mrf.mxu0
  %3175 = vmatprep.mubr.f32.mxu0 0.0
  %3176 = vmatmul.mubr.f32.gmra.mxu0 %v2897
  %v3177 = vpop.f32.mrf.mxu0
  %v3178 = vadd.f32 %v3033, %v3177
  %v3179 = vpop.f32.mrf.mxu0
  %3180 = vmatprep.mubr.f32.mxu0 0.0
  %3181 = vmatmul.mubr.f32.gmra.mxu0 %v2898
  %v3182 = vpop.f32.mrf.mxu0
  %v3183 = vadd.f32 %v3038, %v3182
  %v3184 = vpop.f32.mrf.mxu0
  %3185 = vmatprep.mubr.f32.mxu0 0.0
  %3186 = vmatmul.mubr.f32.gmra.mxu0 %v2899
  %v3187 = vpop.f32.mrf.mxu0
  %v3188 = vadd.f32 %v3043, %v3187
  %v3189 = vpop.f32.mrf.mxu0
  %3190 = vmatprep.mubr.f32.mxu0 0.0
  %3191 = vmatmul.mubr.f32.gmra.mxu0 %v2900
  %v3192 = vpop.f32.mrf.mxu0
  %v3193 = vadd.f32 %v3048, %v3192
  %v3194 = vpop.f32.mrf.mxu0
  %3195 = vmatprep.mubr.f32.mxu0 0.0
  %3196 = vmatmul.mubr.f32.gmra.mxu0 %v2901
  %v3197 = vpop.f32.mrf.mxu0
  %v3198 = vadd.f32 %v3053, %v3197
  %v3199 = vpop.f32.mrf.mxu0
  %3200 = vdwg.mxu0
  %v3201 = vld [vmem:[%s3 + $0x108] sm:$0x1]
  %v3202 = vlaneseq
  %v3203 = vshrl.u32 %v3202, 7
  %v3204 = vsub.s32 0, %v3203
  %v3205 = vrot.slane %v3201, %v3204
  %v3206 = vmul.f32 %v3123, %v3205
  %v3207 = vmul.f32 %v3128, %v3205
  %v3208 = vmul.f32 %v3133, %v3205
  %v3209 = vmul.f32 %v3138, %v3205
  %v3210 = vmul.f32 %v3143, %v3205
  %v3211 = vmul.f32 %v3148, %v3205
  %v3212 = vmul.f32 %v3153, %v3205
  %v3213 = vmul.f32 %v3158, %v3205
  %v3214 = vmul.f32 %v3163, %v3205
  %v3215 = vmul.f32 %v3168, %v3205
  %v3216 = vmul.f32 %v3173, %v3205
  %v3217 = vmul.f32 %v3178, %v3205
  %v3218 = vmul.f32 %v3183, %v3205
  %v3219 = vmul.f32 %v3188, %v3205
  %v3220 = vmul.f32 %v3193, %v3205
  %v3221 = vmul.f32 %v3198, %v3205
  %v3222 = vld [vmem:[%s3 + $0x10b] sm:$0x1]
  %v3223 = vlaneseq
  %v3224 = vshrl.u32 %v3223, 7
  %v3225 = vsub.s32 0, %v3224
  %v3226 = vrot.slane %v3222, %v3225
  %v3227 = vadd.f32 %v3206, %v3226
  %v3228 = vadd.f32 %v3207, %v3226
  %v3229 = vadd.f32 %v3208, %v3226
  %v3230 = vadd.f32 %v3209, %v3226
  %v3231 = vadd.f32 %v3210, %v3226
  %v3232 = vadd.f32 %v3211, %v3226
  %v3233 = vadd.f32 %v3212, %v3226
  %v3234 = vadd.f32 %v3213, %v3226
  %v3235 = vadd.f32 %v3214, %v3226
  %v3236 = vadd.f32 %v3215, %v3226
  %v3237 = vadd.f32 %v3216, %v3226
  %v3238 = vadd.f32 %v3217, %v3226
  %v3239 = vadd.f32 %v3218, %v3226
  %v3240 = vadd.f32 %v3219, %v3226
  %v3241 = vadd.f32 %v3220, %v3226
  %v3242 = vadd.f32 %v3221, %v3226
  %v3243 = vmul.f32 %v3227, 0.5
  %v3244 = vmul.f32 %v3228, 0.5
  %v3245 = vmul.f32 %v3229, 0.5
  %v3246 = vmul.f32 %v3230, 0.5
  %v3247 = vmul.f32 %v3231, 0.5
  %v3248 = vmul.f32 %v3232, 0.5
  %v3249 = vmul.f32 %v3233, 0.5
  %v3250 = vmul.f32 %v3234, 0.5
  %v3251 = vmul.f32 %v3235, 0.5
  %v3252 = vmul.f32 %v3236, 0.5
  %v3253 = vmul.f32 %v3237, 0.5
  %v3254 = vmul.f32 %v3238, 0.5
  %v3255 = vmul.f32 %v3239, 0.5
  %v3256 = vmul.f32 %v3240, 0.5
  %v3257 = vmul.f32 %v3241, 0.5
  %v3258 = vmul.f32 %v3242, 0.5
  %v3259 = vmul.f32 %v3227, 0.044715
  %v3260 = vmul.f32 %v3228, 0.044715
  %v3261 = vmul.f32 %v3229, 0.044715
  %v3262 = vmul.f32 %v3230, 0.044715
  %v3263 = vmul.f32 %v3231, 0.044715
  %v3264 = vmul.f32 %v3232, 0.044715
  %v3265 = vmul.f32 %v3233, 0.044715
  %v3266 = vmul.f32 %v3234, 0.044715
  %v3267 = vmul.f32 %v3235, 0.044715
  %v3268 = vmul.f32 %v3236, 0.044715
  %v3269 = vmul.f32 %v3237, 0.044715
  %v3270 = vmul.f32 %v3238, 0.044715
  %v3271 = vmul.f32 %v3239, 0.044715
  %v3272 = vmul.f32 %v3240, 0.044715
  %v3273 = vmul.f32 %v3241, 0.044715
  %v3274 = vmul.f32 %v3242, 0.044715
  %v3275 = vmul.f32 %v3259, %v3227
  %v3276 = vmul.f32 %v3260, %v3228
  %v3277 = vmul.f32 %v3261, %v3229
  %v3278 = vmul.f32 %v3262, %v3230
  %v3279 = vmul.f32 %v3263, %v3231
  %v3280 = vmul.f32 %v3264, %v3232
  %v3281 = vmul.f32 %v3265, %v3233
  %v3282 = vmul.f32 %v3266, %v3234
  %v3283 = vmul.f32 %v3267, %v3235
  %v3284 = vmul.f32 %v3268, %v3236
  %v3285 = vmul.f32 %v3269, %v3237
  %v3286 = vmul.f32 %v3270, %v3238
  %v3287 = vmul.f32 %v3271, %v3239
  %v3288 = vmul.f32 %v3272, %v3240
  %v3289 = vmul.f32 %v3273, %v3241
  %v3290 = vmul.f32 %v3274, %v3242
  %v3291 = vmul.f32 %v3275, %v3227
  %v3292 = vmul.f32 %v3276, %v3228
  %v3293 = vmul.f32 %v3277, %v3229
  %v3294 = vmul.f32 %v3278, %v3230
  %v3295 = vmul.f32 %v3279, %v3231
  %v3296 = vmul.f32 %v3280, %v3232
  %v3297 = vmul.f32 %v3281, %v3233
  %v3298 = vmul.f32 %v3282, %v3234
  %v3299 = vmul.f32 %v3283, %v3235
  %v3300 = vmul.f32 %v3284, %v3236
  %v3301 = vmul.f32 %v3285, %v3237
  %v3302 = vmul.f32 %v3286, %v3238
  %v3303 = vmul.f32 %v3287, %v3239
  %v3304 = vmul.f32 %v3288, %v3240
  %v3305 = vmul.f32 %v3289, %v3241
  %v3306 = vmul.f32 %v3290, %v3242
  %v3307 = vadd.f32 %v3227, %v3291
  %v3308 = vadd.f32 %v3228, %v3292
  %v3309 = vadd.f32 %v3229, %v3293
  %v3310 = vadd.f32 %v3230, %v3294
  %v3311 = vadd.f32 %v3231, %v3295
  %v3312 = vadd.f32 %v3232, %v3296
  %v3313 = vadd.f32 %v3233, %v3297
  %v3314 = vadd.f32 %v3234, %v3298
  %v3315 = vadd.f32 %v3235, %v3299
  %v3316 = vadd.f32 %v3236, %v3300
  %v3317 = vadd.f32 %v3237, %v3301
  %v3318 = vadd.f32 %v3238, %v3302
  %v3319 = vadd.f32 %v3239, %v3303
  %v3320 = vadd.f32 %v3240, %v3304
  %v3321 = vadd.f32 %v3241, %v3305
  %v3322 = vadd.f32 %v3242, %v3306
  %v3323 = vmul.f32 %v3307, 0.7978846
  %v3324 = vmul.f32 %v3308, 0.7978846
  %v3325 = vmul.f32 %v3309, 0.7978846
  %v3326 = vmul.f32 %v3310, 0.7978846
  %v3327 = vmul.f32 %v3311, 0.7978846
  %v3328 = vmul.f32 %v3312, 0.7978846
  %v3329 = vmul.f32 %v3313, 0.7978846
  %v3330 = vmul.f32 %v3314, 0.7978846
  %v3331 = vmul.f32 %v3315, 0.7978846
  %v3332 = vmul.f32 %v3316, 0.7978846
  %v3333 = vmul.f32 %v3317, 0.7978846
  %v3334 = vmul.f32 %v3318, 0.7978846
  %v3335 = vmul.f32 %v3319, 0.7978846
  %v3336 = vmul.f32 %v3320, 0.7978846
  %v3337 = vmul.f32 %v3321, 0.7978846
  %v3338 = vmul.f32 %v3322, 0.7978846
  %v3339 = vtanh.pop %v3323
  %v3340 = vtanh.pop %v3324
  %v3341 = vtanh.pop %v3325
  %v3342 = vtanh.pop %v3326
  %v3343 = vtanh.pop %v3327
  %v3344 = vtanh.pop %v3328
  %v3345 = vtanh.pop %v3329
  %v3346 = vtanh.pop %v3330
  %v3347 = vtanh.pop %v3331
  %v3348 = vtanh.pop %v3332
  %v3349 = vtanh.pop %v3333
  %v3350 = vtanh.pop %v3334
  %v3351 = vtanh.pop %v3335
  %v3352 = vtanh.pop %v3336
  %v3353 = vtanh.pop %v3337
  %v3354 = vtanh.pop %v3338
  %v3355 = vadd.f32 %v3339, 1.0
  %v3356 = vadd.f32 %v3340, 1.0
  %v3357 = vadd.f32 %v3341, 1.0
  %v3358 = vadd.f32 %v3342, 1.0
  %v3359 = vadd.f32 %v3343, 1.0
  %v3360 = vadd.f32 %v3344, 1.0
  %v3361 = vadd.f32 %v3345, 1.0
  %v3362 = vadd.f32 %v3346, 1.0
  %v3363 = vadd.f32 %v3347, 1.0
  %v3364 = vadd.f32 %v3348, 1.0
  %v3365 = vadd.f32 %v3349, 1.0
  %v3366 = vadd.f32 %v3350, 1.0
  %v3367 = vadd.f32 %v3351, 1.0
  %v3368 = vadd.f32 %v3352, 1.0
  %v3369 = vadd.f32 %v3353, 1.0
  %v3370 = vadd.f32 %v3354, 1.0
  %v3371 = vmul.f32 %v3243, %v3355
  %v3372 = vmul.f32 %v3244, %v3356
  %v3373 = vmul.f32 %v3245, %v3357
  %v3374 = vmul.f32 %v3246, %v3358
  %v3375 = vmul.f32 %v3247, %v3359
  %v3376 = vmul.f32 %v3248, %v3360
  %v3377 = vmul.f32 %v3249, %v3361
  %v3378 = vmul.f32 %v3250, %v3362
  %v3379 = vmul.f32 %v3251, %v3363
  %v3380 = vmul.f32 %v3252, %v3364
  %v3381 = vmul.f32 %v3253, %v3365
  %v3382 = vmul.f32 %v3254, %v3366
  %v3383 = vmul.f32 %v3255, %v3367
  %v3384 = vmul.f32 %v3256, %v3368
  %v3385 = vmul.f32 %v3257, %v3369
  %v3386 = vmul.f32 %v3258, %v3370
  %v3388 = vsel %vm1622, %v3371, 0
  %v3391 = vsel %vm1622, %v3372, 0
  %v3394 = vsel %vm1622, %v3373, 0
  %v3397 = vsel %vm1622, %v3374, 0
  %v3400 = vsel %vm1622, %v3375, 0
  %v3403 = vsel %vm1622, %v3376, 0
  %v3406 = vsel %vm1622, %v3377, 0
  %v3409 = vsel %vm1622, %v3378, 0
  %v3412 = vsel %vm1622, %v3379, 0
  %v3415 = vsel %vm1622, %v3380, 0
  %v3418 = vsel %vm1622, %v3381, 0
  %v3421 = vsel %vm1622, %v3382, 0
  %v3424 = vsel %vm1622, %v3383, 0
  %v3427 = vsel %vm1622, %v3384, 0
  %v3430 = vsel %vm1622, %v3385, 0
  %v3433 = vsel %vm1622, %v3386, 0
  %3435 = vmatprep.subr.mxu0 0.0
  %3436 = vmatpush1.msra.mxu0 0.0
  %3437 = vmatprep.subr.mxu0 0.0
  %3438 = vmatpush1.msra.mxu0 0.0
  %3439 = vmatprep.subr.mxu0 0.0
  %3440 = vmatpush1.msra.mxu0 0.0
  %3441 = vmatprep.subr.mxu0 0.0
  %3442 = vmatpush1.msra.mxu0 0.0
  %3443 = vmatprep.subr.mxu0 0.0
  %3444 = vmatpush1.msra.mxu0 0.0
  %3445 = vmatprep.subr.mxu0 0.0
  %3446 = vmatpush1.msra.mxu0 0.0
  %3447 = vmatprep.subr.mxu0 0.0
  %3448 = vmatpush1.msra.mxu0 0.0
  %3449 = vmatprep.subr.mxu0 0.0
  %3450 = vmatpush1.msra.mxu0 0.0
  %3451 = vmatprep.subr.mxu0 0.0
  %3452 = vmatpush1.msra.mxu0 0.0
  %3453 = vmatprep.subr.mxu0 0.0
  %3454 = vmatpush1.msra.mxu0 0.0
  %3455 = vmatprep.subr.mxu0 0.0
  %3456 = vmatpush1.msra.mxu0 0.0
  %3457 = vmatprep.subr.mxu0 0.0
  %3458 = vmatpush1.msra.mxu0 0.0
  %3459 = vmatprep.subr.mxu0 0.0
  %3460 = vmatpush1.msra.mxu0 %v53
  %3461 = vmatprep.subr.mxu0 0.0
  %3462 = vmatpush1.msra.mxu0 %v52
  %3463 = vmatprep.subr.mxu0 0.0
  %3464 = vmatpush1.msra.mxu0 %v51
  %3465 = vmatprep.subr.mxu0 0.0
  %3466 = vmatpush1.msra.mxu0 %v50
  %3467 = vmatprep.subr.mxu0 0.0
  %3468 = vmatpush2.msra.mxu0 0.0
  %3469 = vmatprep.subr.mxu0 0.0
  %3470 = vmatpush2.msra.mxu0 0.0
  %3471 = vmatprep.subr.mxu0 0.0
  %3472 = vmatpush2.msra.mxu0 0.0
  %3473 = vmatprep.subr.mxu0 0.0
  %3474 = vmatpush2.msra.mxu0 0.0
  %3475 = vmatprep.subr.mxu0 0.0
  %3476 = vmatpush2.msra.mxu0 0.0
  %3477 = vmatprep.subr.mxu0 0.0
  %3478 = vmatpush2.msra.mxu0 0.0
  %3479 = vmatprep.subr.mxu0 0.0
  %3480 = vmatpush2.msra.mxu0 0.0
  %3481 = vmatprep.subr.mxu0 0.0
  %3482 = vmatpush2.msra.mxu0 0.0
  %3483 = vmatprep.subr.mxu0 0.0
  %3484 = vmatpush2.msra.mxu0 0.0
  %3485 = vmatprep.subr.mxu0 0.0
  %3486 = vmatpush2.msra.mxu0 0.0
  %3487 = vmatprep.subr.mxu0 0.0
  %3488 = vmatpush2.msra.mxu0 0.0
  %3489 = vmatprep.subr.mxu0 0.0
  %3490 = vmatpush2.msra.mxu0 0.0
  %3491 = vmatprep.subr.mxu0 0.0
  %3492 = vmatpush2.msra.mxu0 0.0
  %3493 = vmatprep.subr.mxu0 0.0
  %3494 = vmatpush2.msra.mxu0 0.0
  %3495 = vmatprep.subr.mxu0 0.0
  %3496 = vmatpush2.msra.mxu0 0.0
  %3497 = vmatprep.subr.mxu0 0.0
  %3498 = vmatpush2.msra.mxu0 0.0
  %3499 = vmatprep.mubr.f32.mxu0 0.0
  %3500 = vmatmul.mubr.f32.gmra.mxu0 %v3388
  %v3501 = vpop.f32.mrf.mxu0
  %v3502 = vadd.f32 0.0, %v3501
  %v3503 = vpop.f32.mrf.mxu0
  %3504 = vmatprep.mubr.f32.mxu0 0.0
  %3505 = vmatmul.mubr.f32.gmra.mxu0 %v3391
  %v3506 = vpop.f32.mrf.mxu0
  %v3507 = vadd.f32 0.0, %v3506
  %v3508 = vpop.f32.mrf.mxu0
  %3509 = vmatprep.mubr.f32.mxu0 0.0
  %3510 = vmatmul.mubr.f32.gmra.mxu0 %v3394
  %v3511 = vpop.f32.mrf.mxu0
  %v3512 = vadd.f32 0.0, %v3511
  %v3513 = vpop.f32.mrf.mxu0
  %3514 = vmatprep.mubr.f32.mxu0 0.0
  %3515 = vmatmul.mubr.f32.gmra.mxu0 %v3397
  %v3516 = vpop.f32.mrf.mxu0
  %v3517 = vadd.f32 0.0, %v3516
  %v3518 = vpop.f32.mrf.mxu0
  %3519 = vmatprep.mubr.f32.mxu0 0.0
  %3520 = vmatmul.mubr.f32.gmra.mxu0 %v3400
  %v3521 = vpop.f32.mrf.mxu0
  %v3522 = vadd.f32 0.0, %v3521
  %v3523 = vpop.f32.mrf.mxu0
  %3524 = vmatprep.mubr.f32.mxu0 0.0
  %3525 = vmatmul.mubr.f32.gmra.mxu0 %v3403
  %v3526 = vpop.f32.mrf.mxu0
  %v3527 = vadd.f32 0.0, %v3526
  %v3528 = vpop.f32.mrf.mxu0
  %3529 = vmatprep.mubr.f32.mxu0 0.0
  %3530 = vmatmul.mubr.f32.gmra.mxu0 %v3406
  %v3531 = vpop.f32.mrf.mxu0
  %v3532 = vadd.f32 0.0, %v3531
  %v3533 = vpop.f32.mrf.mxu0
  %3534 = vmatprep.mubr.f32.mxu0 0.0
  %3535 = vmatmul.mubr.f32.gmra.mxu0 %v3409
  %v3536 = vpop.f32.mrf.mxu0
  %v3537 = vadd.f32 0.0, %v3536
  %v3538 = vpop.f32.mrf.mxu0
  %3539 = vmatprep.mubr.f32.mxu0 0.0
  %3540 = vmatmul.mubr.f32.gmra.mxu0 %v3412
  %v3541 = vpop.f32.mrf.mxu0
  %v3542 = vadd.f32 0.0, %v3541
  %v3543 = vpop.f32.mrf.mxu0
  %3544 = vmatprep.mubr.f32.mxu0 0.0
  %3545 = vmatmul.mubr.f32.gmra.mxu0 %v3415
  %v3546 = vpop.f32.mrf.mxu0
  %v3547 = vadd.f32 0.0, %v3546
  %v3548 = vpop.f32.mrf.mxu0
  %3549 = vmatprep.mubr.f32.mxu0 0.0
  %3550 = vmatmul.mubr.f32.gmra.mxu0 %v3418
  %v3551 = vpop.f32.mrf.mxu0
  %v3552 = vadd.f32 0.0, %v3551
  %v3553 = vpop.f32.mrf.mxu0
  %3554 = vmatprep.mubr.f32.mxu0 0.0
  %3555 = vmatmul.mubr.f32.gmra.mxu0 %v3421
  %v3556 = vpop.f32.mrf.mxu0
  %v3557 = vadd.f32 0.0, %v3556
  %v3558 = vpop.f32.mrf.mxu0
  %3559 = vmatprep.mubr.f32.mxu0 0.0
  %3560 = vmatmul.mubr.f32.gmra.mxu0 %v3424
  %v3561 = vpop.f32.mrf.mxu0
  %v3562 = vadd.f32 0.0, %v3561
  %v3563 = vpop.f32.mrf.mxu0
  %3564 = vmatprep.mubr.f32.mxu0 0.0
  %3565 = vmatmul.mubr.f32.gmra.mxu0 %v3427
  %v3566 = vpop.f32.mrf.mxu0
  %v3567 = vadd.f32 0.0, %v3566
  %v3568 = vpop.f32.mrf.mxu0
  %3569 = vmatprep.mubr.f32.mxu0 0.0
  %3570 = vmatmul.mubr.f32.gmra.mxu0 %v3430
  %v3571 = vpop.f32.mrf.mxu0
  %v3572 = vadd.f32 0.0, %v3571
  %v3573 = vpop.f32.mrf.mxu0
  %3574 = vmatprep.mubr.f32.mxu0 0.0
  %3575 = vmatmul.mubr.f32.gmra.mxu0 %v3433
  %v3576 = vpop.f32.mrf.mxu0
  %v3577 = vadd.f32 0.0, %v3576
  %v3578 = vpop.f32.mrf.mxu0
  %3579 = vdwg.mxu0
  %v3580 = vmul.f32 %v1182, %v3502
  %v3581 = vmul.f32 %v1183, %v3507
  %v3582 = vmul.f32 %v1184, %v3512
  %v3583 = vmul.f32 %v1185, %v3517
  %v3584 = vmul.f32 %v1186, %v3522
  %v3585 = vmul.f32 %v1187, %v3527
  %v3586 = vmul.f32 %v1188, %v3532
  %v3587 = vmul.f32 %v1189, %v3537
  %v3588 = vmul.f32 %v1190, %v3542
  %v3589 = vmul.f32 %v1191, %v3547
  %v3590 = vmul.f32 %v1192, %v3552
  %v3591 = vmul.f32 %v1193, %v3557
  %v3592 = vmul.f32 %v1194, %v3562
  %v3593 = vmul.f32 %v1195, %v3567
  %v3594 = vmul.f32 %v1196, %v3572
  %v3595 = vmul.f32 %v1197, %v3577
  %3596 = vmatprep.subr.mxu0 0.0
  %3597 = vmatpush1.msra.mxu0 %v3595
  %3598 = vmatprep.subr.mxu0 0.0
  %3599 = vmatpush1.msra.mxu0 %v3594
  %3600 = vmatprep.subr.mxu0 0.0
  %3601 = vmatpush1.msra.mxu0 %v3593
  %3602 = vmatprep.subr.mxu0 0.0
  %3603 = vmatpush1.msra.mxu0 %v3592
  %3604 = vmatprep.subr.mxu0 0.0
  %3605 = vmatpush1.msra.mxu0 %v3591
  %3606 = vmatprep.subr.mxu0 0.0
  %3607 = vmatpush1.msra.mxu0 %v3590
  %3608 = vmatprep.subr.mxu0 0.0
  %3609 = vmatpush1.msra.mxu0 %v3589
  %3610 = vmatprep.subr.mxu0 0.0
  %3611 = vmatpush1.msra.mxu0 %v3588
  %3612 = vmatprep.subr.mxu0 0.0
  %3613 = vmatpush1.msra.mxu0 %v3587
  %3614 = vmatprep.subr.mxu0 0.0
  %3615 = vmatpush1.msra.mxu0 %v3586
  %3616 = vmatprep.subr.mxu0 0.0
  %3617 = vmatpush1.msra.mxu0 %v3585
  %3618 = vmatprep.subr.mxu0 0.0
  %3619 = vmatpush1.msra.mxu0 %v3584
  %3620 = vmatprep.subr.mxu0 0.0
  %3621 = vmatpush1.msra.mxu0 %v3583
  %3622 = vmatprep.subr.mxu0 0.0
  %3623 = vmatpush1.msra.mxu0 %v3582
  %3624 = vmatprep.subr.mxu0 0.0
  %3625 = vmatpush1.msra.mxu0 %v3581
  %3626 = vmatprep.subr.mxu0 0.0
  %3627 = vmatpush1.msra.mxu0 %v3580
  %3628 = vmatprep.subr.mxu0 0.0
  %3629 = vmatpush2.msra.mxu0 0.0
  %3630 = vmatprep.subr.mxu0 0.0
  %3631 = vmatpush2.msra.mxu0 0.0
  %3632 = vmatprep.subr.mxu0 0.0
  %3633 = vmatpush2.msra.mxu0 0.0
  %3634 = vmatprep.subr.mxu0 0.0
  %3635 = vmatpush2.msra.mxu0 0.0
  %3636 = vmatprep.subr.mxu0 0.0
  %3637 = vmatpush2.msra.mxu0 0.0
  %3638 = vmatprep.subr.mxu0 0.0
  %3639 = vmatpush2.msra.mxu0 0.0
  %3640 = vmatprep.subr.mxu0 0.0
  %3641 = vmatpush2.msra.mxu0 0.0
  %3642 = vmatprep.subr.mxu0 0.0
  %3643 = vmatpush2.msra.mxu0 0.0
  %3644 = vmatprep.subr.mxu0 0.0
  %3645 = vmatpush2.msra.mxu0 0.0
  %3646 = vmatprep.subr.mxu0 0.0
  %3647 = vmatpush2.msra.mxu0 0.0
  %3648 = vmatprep.subr.mxu0 0.0
  %3649 = vmatpush2.msra.mxu0 0.0
  %3650 = vmatprep.subr.mxu0 0.0
  %3651 = vmatpush2.msra.mxu0 0.0
  %3652 = vmatprep.subr.mxu0 0.0
  %3653 = vmatpush2.msra.mxu0 0.0
  %3654 = vmatprep.subr.mxu0 0.0
  %3655 = vmatpush2.msra.mxu0 0.0
  %3656 = vmatprep.subr.mxu0 0.0
  %3657 = vmatpush2.msra.mxu0 0.0
  %3658 = vmatprep.subr.mxu0 0.0
  %3659 = vmatpush2.msra.mxu0 0.0
  %3660 = vmatprep.mubr.f32.mxu0 0.0
  %3661 = vmatmul.mubr.f32.gmra.mxu0 %v33
  %v3662 = vpop.f32.mrf.mxu0
  %v3663 = vadd.f32 0.0, %v3662
  %v3664 = vpop.f32.mrf.mxu0
  %3665 = vdwg.mxu0
  %3666 = vmatprep.subr.mxu0 0.0
  %3667 = vmatpush1.msra.mxu0 %v49
  %3668 = vmatprep.subr.mxu0 0.0
  %3669 = vmatpush1.msra.mxu0 %v48
  %3670 = vmatprep.subr.mxu0 0.0
  %3671 = vmatpush1.msra.mxu0 %v47
  %3672 = vmatprep.subr.mxu0 0.0
  %3673 = vmatpush1.msra.mxu0 %v46
  %3674 = vmatprep.subr.mxu0 0.0
  %3675 = vmatpush1.msra.mxu0 %v45
  %3676 = vmatprep.subr.mxu0 0.0
  %3677 = vmatpush1.msra.mxu0 %v44
  %3678 = vmatprep.subr.mxu0 0.0
  %3679 = vmatpush1.msra.mxu0 %v43
  %3680 = vmatprep.subr.mxu0 0.0
  %3681 = vmatpush1.msra.mxu0 %v42
  %3682 = vmatprep.subr.mxu0 0.0
  %3683 = vmatpush1.msra.mxu0 %v41
  %3684 = vmatprep.subr.mxu0 0.0
  %3685 = vmatpush1.msra.mxu0 %v40
  %3686 = vmatprep.subr.mxu0 0.0
  %3687 = vmatpush1.msra.mxu0 %v39
  %3688 = vmatprep.subr.mxu0 0.0
  %3689 = vmatpush1.msra.mxu0 %v38
  %3690 = vmatprep.subr.mxu0 0.0
  %3691 = vmatpush1.msra.mxu0 %v37
  %3692 = vmatprep.subr.mxu0 0.0
  %3693 = vmatpush1.msra.mxu0 %v36
  %3694 = vmatprep.subr.mxu0 0.0
  %3695 = vmatpush1.msra.mxu0 %v35
  %3696 = vmatprep.subr.mxu0 0.0
  %3697 = vmatpush1.msra.mxu0 %v34
  %3698 = vmatprep.subr.mxu0 0.0
  %3699 = vmatpush2.msra.mxu0 0.0
  %3700 = vmatprep.subr.mxu0 0.0
  %3701 = vmatpush2.msra.mxu0 0.0
  %3702 = vmatprep.subr.mxu0 0.0
  %3703 = vmatpush2.msra.mxu0 0.0
  %3704 = vmatprep.subr.mxu0 0.0
  %3705 = vmatpush2.msra.mxu0 0.0
  %3706 = vmatprep.subr.mxu0 0.0
  %3707 = vmatpush2.msra.mxu0 0.0
  %3708 = vmatprep.subr.mxu0 0.0
  %3709 = vmatpush2.msra.mxu0 0.0
  %3710 = vmatprep.subr.mxu0 0.0
  %3711 = vmatpush2.msra.mxu0 0.0
  %3712 = vmatprep.subr.mxu0 0.0
  %3713 = vmatpush2.msra.mxu0 0.0
  %3714 = vmatprep.subr.mxu0 0.0
  %3715 = vmatpush2.msra.mxu0 0.0
  %3716 = vmatprep.subr.mxu0 0.0
  %3717 = vmatpush2.msra.mxu0 0.0
  %3718 = vmatprep.subr.mxu0 0.0
  %3719 = vmatpush2.msra.mxu0 0.0
  %3720 = vmatprep.subr.mxu0 0.0
  %3721 = vmatpush2.msra.mxu0 0.0
  %3722 = vmatprep.subr.mxu0 0.0
  %3723 = vmatpush2.msra.mxu0 0.0
  %3724 = vmatprep.subr.mxu0 0.0
  %3725 = vmatpush2.msra.mxu0 0.0
  %3726 = vmatprep.subr.mxu0 0.0
  %3727 = vmatpush2.msra.mxu0 0.0
  %3728 = vmatprep.subr.mxu0 0.0
  %3729 = vmatpush2.msra.mxu0 0.0
  %3730 = vmatprep.mubr.f32.mxu0 0.0
  %3731 = vmatmul.mubr.f32.gmra.mxu0 %v3663
  %v3732 = vpop.f32.mrf.mxu0
  %v3733 = vadd.f32 0.0, %v3732
  %v3734 = vpop.f32.mrf.mxu0
  %3735 = vdwg.mxu0
  %v3736 = vlaneseq
  %v3737 = vshrl.u32 %v3736, 7
  %v3738 = vsub.s32 0, %v3737
  %v3739 = vrot.slane %v3733, %v3738
  %v3740 = vlaneseq
  %v3741 = vshrl.u32 %v3740, 7
  %v3742 = vsub.s32 1, %v3741
  %v3743 = vrot.slane %v3733, %v3742
  %v3744 = vsel %vm1976, %v3743, %v3739
  %v3745 = vsel %vm1977, %v3743, %v3739
  %v3746 = vsel %vm1978, %v3743, %v3739
  %v3747 = vsel %vm1979, %v3743, %v3739
  %v3748 = vsel %vm1980, %v3743, %v3739
  %v3749 = vsel %vm1981, %v3743, %v3739
  %v3750 = vsel %vm1982, %v3743, %v3739
  %v3751 = vsel %vm1983, %v3743, %v3739
  %v3752 = vsel %vm1984, %v3743, %v3739
  %v3753 = vsel %vm1985, %v3743, %v3739
  %v3754 = vsel %vm1986, %v3743, %v3739
  %v3755 = vsel %vm1987, %v3743, %v3739
  %v3756 = vsel %vm1988, %v3743, %v3739
  %v3757 = vsel %vm1989, %v3743, %v3739
  %v3758 = vsel %vm1990, %v3743, %v3739
  %v3759 = vsel %vm1991, %v3743, %v3739
  %v3760 = vmul.f32 %v1161, %v3744
  %v3761 = vmul.f32 %v1162, %v3745
  %v3762 = vmul.f32 %v1163, %v3746
  %v3763 = vmul.f32 %v1164, %v3747
  %v3764 = vmul.f32 %v1165, %v3748
  %v3765 = vmul.f32 %v1166, %v3749
  %v3766 = vmul.f32 %v1167, %v3750
  %v3767 = vmul.f32 %v1168, %v3751
  %v3768 = vmul.f32 %v1169, %v3752
  %v3769 = vmul.f32 %v1170, %v3753
  %v3770 = vmul.f32 %v1171, %v3754
  %v3771 = vmul.f32 %v1172, %v3755
  %v3772 = vmul.f32 %v1173, %v3756
  %v3773 = vmul.f32 %v1174, %v3757
  %v3774 = vmul.f32 %v1175, %v3758
  %v3775 = vmul.f32 %v1176, %v3759
  %v3776 = vld [vmem:[%s3 + $0xc0] sm:$0xff]
  %v3777 = vld [vmem:[%s3 + $0xc8] sm:$0xff]
  %v3778 = vld [vmem:[%s3 + $0xd0] sm:$0xff]
  %v3779 = vld [vmem:[%s3 + $0xd8] sm:$0xff]
  %v3780 = vld [vmem:[%s3 + $0x105] sm:$0x1]
  %v3781 = vlaneseq
  %v3782 = vshrl.u32 %v3781, 7
  %v3783 = vsub.s32 0, %v3782
  %v3784 = vrot.slane %v3780, %v3783
  %3785 = vmatprep.subr.mxu0 0.0
  %3786 = vmatpush1.msra.mxu0 0.0
  %3787 = vmatprep.subr.mxu0 0.0
  %3788 = vmatpush1.msra.mxu0 0.0
  %3789 = vmatprep.subr.mxu0 0.0
  %3790 = vmatpush1.msra.mxu0 0.0
  %3791 = vmatprep.subr.mxu0 0.0
  %3792 = vmatpush1.msra.mxu0 0.0
  %3793 = vmatprep.subr.mxu0 0.0
  %3794 = vmatpush1.msra.mxu0 0.0
  %3795 = vmatprep.subr.mxu0 0.0
  %3796 = vmatpush1.msra.mxu0 0.0
  %3797 = vmatprep.subr.mxu0 0.0
  %3798 = vmatpush1.msra.mxu0 0.0
  %3799 = vmatprep.subr.mxu0 0.0
  %3800 = vmatpush1.msra.mxu0 0.0
  %3801 = vmatprep.subr.mxu0 0.0
  %3802 = vmatpush1.msra.mxu0 0.0
  %3803 = vmatprep.subr.mxu0 0.0
  %3804 = vmatpush1.msra.mxu0 0.0
  %3805 = vmatprep.subr.mxu0 0.0
  %3806 = vmatpush1.msra.mxu0 0.0
  %3807 = vmatprep.subr.mxu0 0.0
  %3808 = vmatpush1.msra.mxu0 0.0
  %3809 = vmatprep.subr.mxu0 0.0
  %3810 = vmatpush1.msra.mxu0 %v3779
  %3811 = vmatprep.subr.mxu0 0.0
  %3812 = vmatpush1.msra.mxu0 %v3778
  %3813 = vmatprep.subr.mxu0 0.0
  %3814 = vmatpush1.msra.mxu0 %v3777
  %3815 = vmatprep.subr.mxu0 0.0
  %3816 = vmatpush1.msra.mxu0 %v3776
  %3817 = vmatprep.subr.mxu0 0.0
  %3818 = vmatpush2.msra.mxu0 0.0
  %3819 = vmatprep.subr.mxu0 0.0
  %3820 = vmatpush2.msra.mxu0 0.0
  %3821 = vmatprep.subr.mxu0 0.0
  %3822 = vmatpush2.msra.mxu0 0.0
  %3823 = vmatprep.subr.mxu0 0.0
  %3824 = vmatpush2.msra.mxu0 0.0
  %3825 = vmatprep.subr.mxu0 0.0
  %3826 = vmatpush2.msra.mxu0 0.0
  %3827 = vmatprep.subr.mxu0 0.0
  %3828 = vmatpush2.msra.mxu0 0.0
  %3829 = vmatprep.subr.mxu0 0.0
  %3830 = vmatpush2.msra.mxu0 0.0
  %3831 = vmatprep.subr.mxu0 0.0
  %3832 = vmatpush2.msra.mxu0 0.0
  %3833 = vmatprep.subr.mxu0 0.0
  %3834 = vmatpush2.msra.mxu0 0.0
  %3835 = vmatprep.subr.mxu0 0.0
  %3836 = vmatpush2.msra.mxu0 0.0
  %3837 = vmatprep.subr.mxu0 0.0
  %3838 = vmatpush2.msra.mxu0 0.0
  %3839 = vmatprep.subr.mxu0 0.0
  %3840 = vmatpush2.msra.mxu0 0.0
  %3841 = vmatprep.subr.mxu0 0.0
  %3842 = vmatpush2.msra.mxu0 0.0
  %3843 = vmatprep.subr.mxu0 0.0
  %3844 = vmatpush2.msra.mxu0 0.0
  %3845 = vmatprep.subr.mxu0 0.0
  %3846 = vmatpush2.msra.mxu0 0.0
  %3847 = vmatprep.subr.mxu0 0.0
  %3848 = vmatpush2.msra.mxu0 0.0
  %3849 = vmatprep.mubr.f32.mxu0 0.0
  %3850 = vmatmul.mubr.f32.gmra.mxu0 %v3388
  %v3851 = vpop.f32.mrf.mxu0
  %v3852 = vadd.f32 %v3784, %v3851
  %v3853 = vpop.f32.mrf.mxu0
  %3854 = vmatprep.mubr.f32.mxu0 0.0
  %3855 = vmatmul.mubr.f32.gmra.mxu0 %v3391
  %v3856 = vpop.f32.mrf.mxu0
  %v3857 = vadd.f32 %v3784, %v3856
  %v3858 = vpop.f32.mrf.mxu0
  %3859 = vmatprep.mubr.f32.mxu0 0.0
  %3860 = vmatmul.mubr.f32.gmra.mxu0 %v3394
  %v3861 = vpop.f32.mrf.mxu0
  %v3862 = vadd.f32 %v3784, %v3861
  %v3863 = vpop.f32.mrf.mxu0
  %3864 = vmatprep.mubr.f32.mxu0 0.0
  %3865 = vmatmul.mubr.f32.gmra.mxu0 %v3397
  %v3866 = vpop.f32.mrf.mxu0
  %v3867 = vadd.f32 %v3784, %v3866
  %v3868 = vpop.f32.mrf.mxu0
  %3869 = vmatprep.mubr.f32.mxu0 0.0
  %3870 = vmatmul.mubr.f32.gmra.mxu0 %v3400
  %v3871 = vpop.f32.mrf.mxu0
  %v3872 = vadd.f32 %v3784, %v3871
  %v3873 = vpop.f32.mrf.mxu0
  %3874 = vmatprep.mubr.f32.mxu0 0.0
  %3875 = vmatmul.mubr.f32.gmra.mxu0 %v3403
  %v3876 = vpop.f32.mrf.mxu0
  %v3877 = vadd.f32 %v3784, %v3876
  %v3878 = vpop.f32.mrf.mxu0
  %3879 = vmatprep.mubr.f32.mxu0 0.0
  %3880 = vmatmul.mubr.f32.gmra.mxu0 %v3406
  %v3881 = vpop.f32.mrf.mxu0
  %v3882 = vadd.f32 %v3784, %v3881
  %v3883 = vpop.f32.mrf.mxu0
  %3884 = vmatprep.mubr.f32.mxu0 0.0
  %3885 = vmatmul.mubr.f32.gmra.mxu0 %v3409
  %v3886 = vpop.f32.mrf.mxu0
  %v3887 = vadd.f32 %v3784, %v3886
  %v3888 = vpop.f32.mrf.mxu0
  %3889 = vmatprep.mubr.f32.mxu0 0.0
  %3890 = vmatmul.mubr.f32.gmra.mxu0 %v3412
  %v3891 = vpop.f32.mrf.mxu0
  %v3892 = vadd.f32 %v3784, %v3891
  %v3893 = vpop.f32.mrf.mxu0
  %3894 = vmatprep.mubr.f32.mxu0 0.0
  %3895 = vmatmul.mubr.f32.gmra.mxu0 %v3415
  %v3896 = vpop.f32.mrf.mxu0
  %v3897 = vadd.f32 %v3784, %v3896
  %v3898 = vpop.f32.mrf.mxu0
  %3899 = vmatprep.mubr.f32.mxu0 0.0
  %3900 = vmatmul.mubr.f32.gmra.mxu0 %v3418
  %v3901 = vpop.f32.mrf.mxu0
  %v3902 = vadd.f32 %v3784, %v3901
  %v3903 = vpop.f32.mrf.mxu0
  %3904 = vmatprep.mubr.f32.mxu0 0.0
  %3905 = vmatmul.mubr.f32.gmra.mxu0 %v3421
  %v3906 = vpop.f32.mrf.mxu0
  %v3907 = vadd.f32 %v3784, %v3906
  %v3908 = vpop.f32.mrf.mxu0
  %3909 = vmatprep.mubr.f32.mxu0 0.0
  %3910 = vmatmul.mubr.f32.gmra.mxu0 %v3424
  %v3911 = vpop.f32.mrf.mxu0
  %v3912 = vadd.f32 %v3784, %v3911
  %v3913 = vpop.f32.mrf.mxu0
  %3914 = vmatprep.mubr.f32.mxu0 0.0
  %3915 = vmatmul.mubr.f32.gmra.mxu0 %v3427
  %v3916 = vpop.f32.mrf.mxu0
  %v3917 = vadd.f32 %v3784, %v3916
  %v3918 = vpop.f32.mrf.mxu0
  %3919 = vmatprep.mubr.f32.mxu0 0.0
  %3920 = vmatmul.mubr.f32.gmra.mxu0 %v3430
  %v3921 = vpop.f32.mrf.mxu0
  %v3922 = vadd.f32 %v3784, %v3921
  %v3923 = vpop.f32.mrf.mxu0
  %3924 = vmatprep.mubr.f32.mxu0 0.0
  %3925 = vmatmul.mubr.f32.gmra.mxu0 %v3433
  %v3926 = vpop.f32.mrf.mxu0
  %v3927 = vadd.f32 %v3784, %v3926
  %v3928 = vpop.f32.mrf.mxu0
  %3929 = vdwg.mxu0
  %3930 = vmatprep.subr.mxu0 0.0
  %3931 = vmatpush1.msra.mxu0 %v69
  %3932 = vmatprep.subr.mxu0 0.0
  %3933 = vmatpush1.msra.mxu0 %v68
  %3934 = vmatprep.subr.mxu0 0.0
  %3935 = vmatpush1.msra.mxu0 %v67
  %3936 = vmatprep.subr.mxu0 0.0
  %3937 = vmatpush1.msra.mxu0 %v66
  %3938 = vmatprep.subr.mxu0 0.0
  %3939 = vmatpush1.msra.mxu0 %v65
  %3940 = vmatprep.subr.mxu0 0.0
  %3941 = vmatpush1.msra.mxu0 %v64
  %3942 = vmatprep.subr.mxu0 0.0
  %3943 = vmatpush1.msra.mxu0 %v63
  %3944 = vmatprep.subr.mxu0 0.0
  %3945 = vmatpush1.msra.mxu0 %v62
  %3946 = vmatprep.subr.mxu0 0.0
  %3947 = vmatpush1.msra.mxu0 %v61
  %3948 = vmatprep.subr.mxu0 0.0
  %3949 = vmatpush1.msra.mxu0 %v60
  %3950 = vmatprep.subr.mxu0 0.0
  %3951 = vmatpush1.msra.mxu0 %v59
  %3952 = vmatprep.subr.mxu0 0.0
  %3953 = vmatpush1.msra.mxu0 %v58
  %3954 = vmatprep.subr.mxu0 0.0
  %3955 = vmatpush1.msra.mxu0 %v57
  %3956 = vmatprep.subr.mxu0 0.0
  %3957 = vmatpush1.msra.mxu0 %v56
  %3958 = vmatprep.subr.mxu0 0.0
  %3959 = vmatpush1.msra.mxu0 %v55
  %3960 = vmatprep.subr.mxu0 0.0
  %3961 = vmatpush1.msra.mxu0 %v54
  %3962 = vmatprep.subr.mxu0 0.0
  %3963 = vmatpush2.msra.mxu0 0.0
  %3964 = vmatprep.subr.mxu0 0.0
  %3965 = vmatpush2.msra.mxu0 0.0
  %3966 = vmatprep.subr.mxu0 0.0
  %3967 = vmatpush2.msra.mxu0 0.0
  %3968 = vmatprep.subr.mxu0 0.0
  %3969 = vmatpush2.msra.mxu0 0.0
  %3970 = vmatprep.subr.mxu0 0.0
  %3971 = vmatpush2.msra.mxu0 0.0
  %3972 = vmatprep.subr.mxu0 0.0
  %3973 = vmatpush2.msra.mxu0 0.0
  %3974 = vmatprep.subr.mxu0 0.0
  %3975 = vmatpush2.msra.mxu0 0.0
  %3976 = vmatprep.subr.mxu0 0.0
  %3977 = vmatpush2.msra.mxu0 0.0
  %3978 = vmatprep.subr.mxu0 0.0
  %3979 = vmatpush2.msra.mxu0 0.0
  %3980 = vmatprep.subr.mxu0 0.0
  %3981 = vmatpush2.msra.mxu0 0.0
  %3982 = vmatprep.subr.mxu0 0.0
  %3983 = vmatpush2.msra.mxu0 0.0
  %3984 = vmatprep.subr.mxu0 0.0
  %3985 = vmatpush2.msra.mxu0 0.0
  %3986 = vmatprep.subr.mxu0 0.0
  %3987 = vmatpush2.msra.mxu0 0.0
  %3988 = vmatprep.subr.mxu0 0.0
  %3989 = vmatpush2.msra.mxu0 0.0
  %3990 = vmatprep.subr.mxu0 0.0
  %3991 = vmatpush2.msra.mxu0 0.0
  %3992 = vmatprep.subr.mxu0 0.0
  %3993 = vmatpush2.msra.mxu0 0.0
  %3994 = vmatprep.mubr.f32.mxu0 0.0
  %3995 = vmatmul.mubr.f32.gmra.mxu0 %v3760
  %v3996 = vpop.f32.mrf.mxu0
  %v3997 = vadd.f32 %v3852, %v3996
  %v3998 = vpop.f32.mrf.mxu0
  %3999 = vmatprep.mubr.f32.mxu0 0.0
  %4000 = vmatmul.mubr.f32.gmra.mxu0 %v3761
  %v4001 = vpop.f32.mrf.mxu0
  %v4002 = vadd.f32 %v3857, %v4001
  %v4003 = vpop.f32.mrf.mxu0
  %4004 = vmatprep.mubr.f32.mxu0 0.0
  %4005 = vmatmul.mubr.f32.gmra.mxu0 %v3762
  %v4006 = vpop.f32.mrf.mxu0
  %v4007 = vadd.f32 %v3862, %v4006
  %v4008 = vpop.f32.mrf.mxu0
  %4009 = vmatprep.mubr.f32.mxu0 0.0
  %4010 = vmatmul.mubr.f32.gmra.mxu0 %v3763
  %v4011 = vpop.f32.mrf.mxu0
  %v4012 = vadd.f32 %v3867, %v4011
  %v4013 = vpop.f32.mrf.mxu0
  %4014 = vmatprep.mubr.f32.mxu0 0.0
  %4015 = vmatmul.mubr.f32.gmra.mxu0 %v3764
  %v4016 = vpop.f32.mrf.mxu0
  %v4017 = vadd.f32 %v3872, %v4016
  %v4018 = vpop.f32.mrf.mxu0
  %4019 = vmatprep.mubr.f32.mxu0 0.0
  %4020 = vmatmul.mubr.f32.gmra.mxu0 %v3765
  %v4021 = vpop.f32.mrf.mxu0
  %v4022 = vadd.f32 %v3877, %v4021
  %v4023 = vpop.f32.mrf.mxu0
  %4024 = vmatprep.mubr.f32.mxu0 0.0
  %4025 = vmatmul.mubr.f32.gmra.mxu0 %v3766
  %v4026 = vpop.f32.mrf.mxu0
  %v4027 = vadd.f32 %v3882, %v4026
  %v4028 = vpop.f32.mrf.mxu0
  %4029 = vmatprep.mubr.f32.mxu0 0.0
  %4030 = vmatmul.mubr.f32.gmra.mxu0 %v3767
  %v4031 = vpop.f32.mrf.mxu0
  %v4032 = vadd.f32 %v3887, %v4031
  %v4033 = vpop.f32.mrf.mxu0
  %4034 = vmatprep.mubr.f32.mxu0 0.0
  %4035 = vmatmul.mubr.f32.gmra.mxu0 %v3768
  %v4036 = vpop.f32.mrf.mxu0
  %v4037 = vadd.f32 %v3892, %v4036
  %v4038 = vpop.f32.mrf.mxu0
  %4039 = vmatprep.mubr.f32.mxu0 0.0
  %4040 = vmatmul.mubr.f32.gmra.mxu0 %v3769
  %v4041 = vpop.f32.mrf.mxu0
  %v4042 = vadd.f32 %v3897, %v4041
  %v4043 = vpop.f32.mrf.mxu0
  %4044 = vmatprep.mubr.f32.mxu0 0.0
  %4045 = vmatmul.mubr.f32.gmra.mxu0 %v3770
  %v4046 = vpop.f32.mrf.mxu0
  %v4047 = vadd.f32 %v3902, %v4046
  %v4048 = vpop.f32.mrf.mxu0
  %4049 = vmatprep.mubr.f32.mxu0 0.0
  %4050 = vmatmul.mubr.f32.gmra.mxu0 %v3771
  %v4051 = vpop.f32.mrf.mxu0
  %v4052 = vadd.f32 %v3907, %v4051
  %v4053 = vpop.f32.mrf.mxu0
  %4054 = vmatprep.mubr.f32.mxu0 0.0
  %4055 = vmatmul.mubr.f32.gmra.mxu0 %v3772
  %v4056 = vpop.f32.mrf.mxu0
  %v4057 = vadd.f32 %v3912, %v4056
  %v4058 = vpop.f32.mrf.mxu0
  %4059 = vmatprep.mubr.f32.mxu0 0.0
  %4060 = vmatmul.mubr.f32.gmra.mxu0 %v3773
  %v4061 = vpop.f32.mrf.mxu0
  %v4062 = vadd.f32 %v3917, %v4061
  %v4063 = vpop.f32.mrf.mxu0
  %4064 = vmatprep.mubr.f32.mxu0 0.0
  %4065 = vmatmul.mubr.f32.gmra.mxu0 %v3774
  %v4066 = vpop.f32.mrf.mxu0
  %v4067 = vadd.f32 %v3922, %v4066
  %v4068 = vpop.f32.mrf.mxu0
  %4069 = vmatprep.mubr.f32.mxu0 0.0
  %4070 = vmatmul.mubr.f32.gmra.mxu0 %v3775
  %v4071 = vpop.f32.mrf.mxu0
  %v4072 = vadd.f32 %v3927, %v4071
  %v4073 = vpop.f32.mrf.mxu0
  %4074 = vdwg.mxu0
  %v4075 = vld [vmem:[%s3 + $0x109] sm:$0x1]
  %v4076 = vlaneseq
  %v4077 = vshrl.u32 %v4076, 7
  %v4078 = vsub.s32 0, %v4077
  %v4079 = vrot.slane %v4075, %v4078
  %v4080 = vmul.f32 %v3997, %v4079
  %v4081 = vmul.f32 %v4002, %v4079
  %v4082 = vmul.f32 %v4007, %v4079
  %v4083 = vmul.f32 %v4012, %v4079
  %v4084 = vmul.f32 %v4017, %v4079
  %v4085 = vmul.f32 %v4022, %v4079
  %v4086 = vmul.f32 %v4027, %v4079
  %v4087 = vmul.f32 %v4032, %v4079
  %v4088 = vmul.f32 %v4037, %v4079
  %v4089 = vmul.f32 %v4042, %v4079
  %v4090 = vmul.f32 %v4047, %v4079
  %v4091 = vmul.f32 %v4052, %v4079
  %v4092 = vmul.f32 %v4057, %v4079
  %v4093 = vmul.f32 %v4062, %v4079
  %v4094 = vmul.f32 %v4067, %v4079
  %v4095 = vmul.f32 %v4072, %v4079
  %v4096 = vld [vmem:[%s3 + $0x10c] sm:$0x1]
  %v4097 = vlaneseq
  %v4098 = vshrl.u32 %v4097, 7
  %v4099 = vsub.s32 0, %v4098
  %v4100 = vrot.slane %v4096, %v4099
  %v4101 = vadd.f32 %v4080, %v4100
  %v4102 = vadd.f32 %v4081, %v4100
  %v4103 = vadd.f32 %v4082, %v4100
  %v4104 = vadd.f32 %v4083, %v4100
  %v4105 = vadd.f32 %v4084, %v4100
  %v4106 = vadd.f32 %v4085, %v4100
  %v4107 = vadd.f32 %v4086, %v4100
  %v4108 = vadd.f32 %v4087, %v4100
  %v4109 = vadd.f32 %v4088, %v4100
  %v4110 = vadd.f32 %v4089, %v4100
  %v4111 = vadd.f32 %v4090, %v4100
  %v4112 = vadd.f32 %v4091, %v4100
  %v4113 = vadd.f32 %v4092, %v4100
  %v4114 = vadd.f32 %v4093, %v4100
  %v4115 = vadd.f32 %v4094, %v4100
  %v4116 = vadd.f32 %v4095, %v4100
  %v4117 = vmul.f32 %v4101, 0.5
  %v4118 = vmul.f32 %v4102, 0.5
  %v4119 = vmul.f32 %v4103, 0.5
  %v4120 = vmul.f32 %v4104, 0.5
  %v4121 = vmul.f32 %v4105, 0.5
  %v4122 = vmul.f32 %v4106, 0.5
  %v4123 = vmul.f32 %v4107, 0.5
  %v4124 = vmul.f32 %v4108, 0.5
  %v4125 = vmul.f32 %v4109, 0.5
  %v4126 = vmul.f32 %v4110, 0.5
  %v4127 = vmul.f32 %v4111, 0.5
  %v4128 = vmul.f32 %v4112, 0.5
  %v4129 = vmul.f32 %v4113, 0.5
  %v4130 = vmul.f32 %v4114, 0.5
  %v4131 = vmul.f32 %v4115, 0.5
  %v4132 = vmul.f32 %v4116, 0.5
  %v4133 = vmul.f32 %v4101, 0.044715
  %v4134 = vmul.f32 %v4102, 0.044715
  %v4135 = vmul.f32 %v4103, 0.044715
  %v4136 = vmul.f32 %v4104, 0.044715
  %v4137 = vmul.f32 %v4105, 0.044715
  %v4138 = vmul.f32 %v4106, 0.044715
  %v4139 = vmul.f32 %v4107, 0.044715
  %v4140 = vmul.f32 %v4108, 0.044715
  %v4141 = vmul.f32 %v4109, 0.044715
  %v4142 = vmul.f32 %v4110, 0.044715
  %v4143 = vmul.f32 %v4111, 0.044715
  %v4144 = vmul.f32 %v4112, 0.044715
  %v4145 = vmul.f32 %v4113, 0.044715
  %v4146 = vmul.f32 %v4114, 0.044715
  %v4147 = vmul.f32 %v4115, 0.044715
  %v4148 = vmul.f32 %v4116, 0.044715
  %v4149 = vmul.f32 %v4133, %v4101
  %v4150 = vmul.f32 %v4134, %v4102
  %v4151 = vmul.f32 %v4135, %v4103
  %v4152 = vmul.f32 %v4136, %v4104
  %v4153 = vmul.f32 %v4137, %v4105
  %v4154 = vmul.f32 %v4138, %v4106
  %v4155 = vmul.f32 %v4139, %v4107
  %v4156 = vmul.f32 %v4140, %v4108
  %v4157 = vmul.f32 %v4141, %v4109
  %v4158 = vmul.f32 %v4142, %v4110
  %v4159 = vmul.f32 %v4143, %v4111
  %v4160 = vmul.f32 %v4144, %v4112
  %v4161 = vmul.f32 %v4145, %v4113
  %v4162 = vmul.f32 %v4146, %v4114
  %v4163 = vmul.f32 %v4147, %v4115
  %v4164 = vmul.f32 %v4148, %v4116
  %v4165 = vmul.f32 %v4149, %v4101
  %v4166 = vmul.f32 %v4150, %v4102
  %v4167 = vmul.f32 %v4151, %v4103
  %v4168 = vmul.f32 %v4152, %v4104
  %v4169 = vmul.f32 %v4153, %v4105
  %v4170 = vmul.f32 %v4154, %v4106
  %v4171 = vmul.f32 %v4155, %v4107
  %v4172 = vmul.f32 %v4156, %v4108
  %v4173 = vmul.f32 %v4157, %v4109
  %v4174 = vmul.f32 %v4158, %v4110
  %v4175 = vmul.f32 %v4159, %v4111
  %v4176 = vmul.f32 %v4160, %v4112
  %v4177 = vmul.f32 %v4161, %v4113
  %v4178 = vmul.f32 %v4162, %v4114
  %v4179 = vmul.f32 %v4163, %v4115
  %v4180 = vmul.f32 %v4164, %v4116
  %v4181 = vadd.f32 %v4101, %v4165
  %v4182 = vadd.f32 %v4102, %v4166
  %v4183 = vadd.f32 %v4103, %v4167
  %v4184 = vadd.f32 %v4104, %v4168
  %v4185 = vadd.f32 %v4105, %v4169
  %v4186 = vadd.f32 %v4106, %v4170
  %v4187 = vadd.f32 %v4107, %v4171
  %v4188 = vadd.f32 %v4108, %v4172
  %v4189 = vadd.f32 %v4109, %v4173
  %v4190 = vadd.f32 %v4110, %v4174
  %v4191 = vadd.f32 %v4111, %v4175
  %v4192 = vadd.f32 %v4112, %v4176
  %v4193 = vadd.f32 %v4113, %v4177
  %v4194 = vadd.f32 %v4114, %v4178
  %v4195 = vadd.f32 %v4115, %v4179
  %v4196 = vadd.f32 %v4116, %v4180
  %v4197 = vmul.f32 %v4181, 0.7978846
  %v4198 = vmul.f32 %v4182, 0.7978846
  %v4199 = vmul.f32 %v4183, 0.7978846
  %v4200 = vmul.f32 %v4184, 0.7978846
  %v4201 = vmul.f32 %v4185, 0.7978846
  %v4202 = vmul.f32 %v4186, 0.7978846
  %v4203 = vmul.f32 %v4187, 0.7978846
  %v4204 = vmul.f32 %v4188, 0.7978846
  %v4205 = vmul.f32 %v4189, 0.7978846
  %v4206 = vmul.f32 %v4190, 0.7978846
  %v4207 = vmul.f32 %v4191, 0.7978846
  %v4208 = vmul.f32 %v4192, 0.7978846
  %v4209 = vmul.f32 %v4193, 0.7978846
  %v4210 = vmul.f32 %v4194, 0.7978846
  %v4211 = vmul.f32 %v4195, 0.7978846
  %v4212 = vmul.f32 %v4196, 0.7978846
  %v4213 = vtanh.pop %v4197
  %v4214 = vtanh.pop %v4198
  %v4215 = vtanh.pop %v4199
  %v4216 = vtanh.pop %v4200
  %v4217 = vtanh.pop %v4201
  %v4218 = vtanh.pop %v4202
  %v4219 = vtanh.pop %v4203
  %v4220 = vtanh.pop %v4204
  %v4221 = vtanh.pop %v4205
  %v4222 = vtanh.pop %v4206
  %v4223 = vtanh.pop %v4207
  %v4224 = vtanh.pop %v4208
  %v4225 = vtanh.pop %v4209
  %v4226 = vtanh.pop %v4210
  %v4227 = vtanh.pop %v4211
  %v4228 = vtanh.pop %v4212
  %v4229 = vadd.f32 %v4213, 1.0
  %v4230 = vadd.f32 %v4214, 1.0
  %v4231 = vadd.f32 %v4215, 1.0
  %v4232 = vadd.f32 %v4216, 1.0
  %v4233 = vadd.f32 %v4217, 1.0
  %v4234 = vadd.f32 %v4218, 1.0
  %v4235 = vadd.f32 %v4219, 1.0
  %v4236 = vadd.f32 %v4220, 1.0
  %v4237 = vadd.f32 %v4221, 1.0
  %v4238 = vadd.f32 %v4222, 1.0
  %v4239 = vadd.f32 %v4223, 1.0
  %v4240 = vadd.f32 %v4224, 1.0
  %v4241 = vadd.f32 %v4225, 1.0
  %v4242 = vadd.f32 %v4226, 1.0
  %v4243 = vadd.f32 %v4227, 1.0
  %v4244 = vadd.f32 %v4228, 1.0
  %v4245 = vmul.f32 %v4117, %v4229
  %v4246 = vmul.f32 %v4118, %v4230
  %v4247 = vmul.f32 %v4119, %v4231
  %v4248 = vmul.f32 %v4120, %v4232
  %v4249 = vmul.f32 %v4121, %v4233
  %v4250 = vmul.f32 %v4122, %v4234
  %v4251 = vmul.f32 %v4123, %v4235
  %v4252 = vmul.f32 %v4124, %v4236
  %v4253 = vmul.f32 %v4125, %v4237
  %v4254 = vmul.f32 %v4126, %v4238
  %v4255 = vmul.f32 %v4127, %v4239
  %v4256 = vmul.f32 %v4128, %v4240
  %v4257 = vmul.f32 %v4129, %v4241
  %v4258 = vmul.f32 %v4130, %v4242
  %v4259 = vmul.f32 %v4131, %v4243
  %v4260 = vmul.f32 %v4132, %v4244
  %v4262 = vsel %vm1622, %v4245, 0
  %v4265 = vsel %vm1622, %v4246, 0
  %v4268 = vsel %vm1622, %v4247, 0
  %v4271 = vsel %vm1622, %v4248, 0
  %v4274 = vsel %vm1622, %v4249, 0
  %v4277 = vsel %vm1622, %v4250, 0
  %v4280 = vsel %vm1622, %v4251, 0
  %v4283 = vsel %vm1622, %v4252, 0
  %v4286 = vsel %vm1622, %v4253, 0
  %v4289 = vsel %vm1622, %v4254, 0
  %v4292 = vsel %vm1622, %v4255, 0
  %v4295 = vsel %vm1622, %v4256, 0
  %v4298 = vsel %vm1622, %v4257, 0
  %v4301 = vsel %vm1622, %v4258, 0
  %v4304 = vsel %vm1622, %v4259, 0
  %v4307 = vsel %vm1622, %v4260, 0
  %4309 = vmatprep.subr.mxu0 0.0
  %4310 = vmatpush1.msra.mxu0 0.0
  %4311 = vmatprep.subr.mxu0 0.0
  %4312 = vmatpush1.msra.mxu0 0.0
  %4313 = vmatprep.subr.mxu0 0.0
  %4314 = vmatpush1.msra.mxu0 0.0
  %4315 = vmatprep.subr.mxu0 0.0
  %4316 = vmatpush1.msra.mxu0 0.0
  %4317 = vmatprep.subr.mxu0 0.0
  %4318 = vmatpush1.msra.mxu0 0.0
  %4319 = vmatprep.subr.mxu0 0.0
  %4320 = vmatpush1.msra.mxu0 0.0
  %4321 = vmatprep.subr.mxu0 0.0
  %4322 = vmatpush1.msra.mxu0 0.0
  %4323 = vmatprep.subr.mxu0 0.0
  %4324 = vmatpush1.msra.mxu0 0.0
  %4325 = vmatprep.subr.mxu0 0.0
  %4326 = vmatpush1.msra.mxu0 0.0
  %4327 = vmatprep.subr.mxu0 0.0
  %4328 = vmatpush1.msra.mxu0 0.0
  %4329 = vmatprep.subr.mxu0 0.0
  %4330 = vmatpush1.msra.mxu0 0.0
  %4331 = vmatprep.subr.mxu0 0.0
  %4332 = vmatpush1.msra.mxu0 0.0
  %4333 = vmatprep.subr.mxu0 0.0
  %4334 = vmatpush1.msra.mxu0 %v53
  %4335 = vmatprep.subr.mxu0 0.0
  %4336 = vmatpush1.msra.mxu0 %v52
  %4337 = vmatprep.subr.mxu0 0.0
  %4338 = vmatpush1.msra.mxu0 %v51
  %4339 = vmatprep.subr.mxu0 0.0
  %4340 = vmatpush1.msra.mxu0 %v50
  %4341 = vmatprep.subr.mxu0 0.0
  %4342 = vmatpush2.msra.mxu0 0.0
  %4343 = vmatprep.subr.mxu0 0.0
  %4344 = vmatpush2.msra.mxu0 0.0
  %4345 = vmatprep.subr.mxu0 0.0
  %4346 = vmatpush2.msra.mxu0 0.0
  %4347 = vmatprep.subr.mxu0 0.0
  %4348 = vmatpush2.msra.mxu0 0.0
  %4349 = vmatprep.subr.mxu0 0.0
  %4350 = vmatpush2.msra.mxu0 0.0
  %4351 = vmatprep.subr.mxu0 0.0
  %4352 = vmatpush2.msra.mxu0 0.0
  %4353 = vmatprep.subr.mxu0 0.0
  %4354 = vmatpush2.msra.mxu0 0.0
  %4355 = vmatprep.subr.mxu0 0.0
  %4356 = vmatpush2.msra.mxu0 0.0
  %4357 = vmatprep.subr.mxu0 0.0
  %4358 = vmatpush2.msra.mxu0 0.0
  %4359 = vmatprep.subr.mxu0 0.0
  %4360 = vmatpush2.msra.mxu0 0.0
  %4361 = vmatprep.subr.mxu0 0.0
  %4362 = vmatpush2.msra.mxu0 0.0
  %4363 = vmatprep.subr.mxu0 0.0
  %4364 = vmatpush2.msra.mxu0 0.0
  %4365 = vmatprep.subr.mxu0 0.0
  %4366 = vmatpush2.msra.mxu0 0.0
  %4367 = vmatprep.subr.mxu0 0.0
  %4368 = vmatpush2.msra.mxu0 0.0
  %4369 = vmatprep.subr.mxu0 0.0
  %4370 = vmatpush2.msra.mxu0 0.0
  %4371 = vmatprep.subr.mxu0 0.0
  %4372 = vmatpush2.msra.mxu0 0.0
  %4373 = vmatprep.mubr.f32.mxu0 0.0
  %4374 = vmatmul.mubr.f32.gmra.mxu0 %v4262
  %v4375 = vpop.f32.mrf.mxu0
  %v4376 = vadd.f32 0.0, %v4375
  %v4377 = vpop.f32.mrf.mxu0
  %4378 = vmatprep.mubr.f32.mxu0 0.0
  %4379 = vmatmul.mubr.f32.gmra.mxu0 %v4265
  %v4380 = vpop.f32.mrf.mxu0
  %v4381 = vadd.f32 0.0, %v4380
  %v4382 = vpop.f32.mrf.mxu0
  %4383 = vmatprep.mubr.f32.mxu0 0.0
  %4384 = vmatmul.mubr.f32.gmra.mxu0 %v4268
  %v4385 = vpop.f32.mrf.mxu0
  %v4386 = vadd.f32 0.0, %v4385
  %v4387 = vpop.f32.mrf.mxu0
  %4388 = vmatprep.mubr.f32.mxu0 0.0
  %4389 = vmatmul.mubr.f32.gmra.mxu0 %v4271
  %v4390 = vpop.f32.mrf.mxu0
  %v4391 = vadd.f32 0.0, %v4390
  %v4392 = vpop.f32.mrf.mxu0
  %4393 = vmatprep.mubr.f32.mxu0 0.0
  %4394 = vmatmul.mubr.f32.gmra.mxu0 %v4274
  %v4395 = vpop.f32.mrf.mxu0
  %v4396 = vadd.f32 0.0, %v4395
  %v4397 = vpop.f32.mrf.mxu0
  %4398 = vmatprep.mubr.f32.mxu0 0.0
  %4399 = vmatmul.mubr.f32.gmra.mxu0 %v4277
  %v4400 = vpop.f32.mrf.mxu0
  %v4401 = vadd.f32 0.0, %v4400
  %v4402 = vpop.f32.mrf.mxu0
  %4403 = vmatprep.mubr.f32.mxu0 0.0
  %4404 = vmatmul.mubr.f32.gmra.mxu0 %v4280
  %v4405 = vpop.f32.mrf.mxu0
  %v4406 = vadd.f32 0.0, %v4405
  %v4407 = vpop.f32.mrf.mxu0
  %4408 = vmatprep.mubr.f32.mxu0 0.0
  %4409 = vmatmul.mubr.f32.gmra.mxu0 %v4283
  %v4410 = vpop.f32.mrf.mxu0
  %v4411 = vadd.f32 0.0, %v4410
  %v4412 = vpop.f32.mrf.mxu0
  %4413 = vmatprep.mubr.f32.mxu0 0.0
  %4414 = vmatmul.mubr.f32.gmra.mxu0 %v4286
  %v4415 = vpop.f32.mrf.mxu0
  %v4416 = vadd.f32 0.0, %v4415
  %v4417 = vpop.f32.mrf.mxu0
  %4418 = vmatprep.mubr.f32.mxu0 0.0
  %4419 = vmatmul.mubr.f32.gmra.mxu0 %v4289
  %v4420 = vpop.f32.mrf.mxu0
  %v4421 = vadd.f32 0.0, %v4420
  %v4422 = vpop.f32.mrf.mxu0
  %4423 = vmatprep.mubr.f32.mxu0 0.0
  %4424 = vmatmul.mubr.f32.gmra.mxu0 %v4292
  %v4425 = vpop.f32.mrf.mxu0
  %v4426 = vadd.f32 0.0, %v4425
  %v4427 = vpop.f32.mrf.mxu0
  %4428 = vmatprep.mubr.f32.mxu0 0.0
  %4429 = vmatmul.mubr.f32.gmra.mxu0 %v4295
  %v4430 = vpop.f32.mrf.mxu0
  %v4431 = vadd.f32 0.0, %v4430
  %v4432 = vpop.f32.mrf.mxu0
  %4433 = vmatprep.mubr.f32.mxu0 0.0
  %4434 = vmatmul.mubr.f32.gmra.mxu0 %v4298
  %v4435 = vpop.f32.mrf.mxu0
  %v4436 = vadd.f32 0.0, %v4435
  %v4437 = vpop.f32.mrf.mxu0
  %4438 = vmatprep.mubr.f32.mxu0 0.0
  %4439 = vmatmul.mubr.f32.gmra.mxu0 %v4301
  %v4440 = vpop.f32.mrf.mxu0
  %v4441 = vadd.f32 0.0, %v4440
  %v4442 = vpop.f32.mrf.mxu0
  %4443 = vmatprep.mubr.f32.mxu0 0.0
  %4444 = vmatmul.mubr.f32.gmra.mxu0 %v4304
  %v4445 = vpop.f32.mrf.mxu0
  %v4446 = vadd.f32 0.0, %v4445
  %v4447 = vpop.f32.mrf.mxu0
  %4448 = vmatprep.mubr.f32.mxu0 0.0
  %4449 = vmatmul.mubr.f32.gmra.mxu0 %v4307
  %v4450 = vpop.f32.mrf.mxu0
  %v4451 = vadd.f32 0.0, %v4450
  %v4452 = vpop.f32.mrf.mxu0
  %4453 = vdwg.mxu0
  %v4454 = vmul.f32 %v1510, %v4376
  %v4455 = vmul.f32 %v1511, %v4381
  %v4456 = vmul.f32 %v1512, %v4386
  %v4457 = vmul.f32 %v1513, %v4391
  %v4458 = vmul.f32 %v1514, %v4396
  %v4459 = vmul.f32 %v1515, %v4401
  %v4460 = vmul.f32 %v1516, %v4406
  %v4461 = vmul.f32 %v1517, %v4411
  %v4462 = vmul.f32 %v1518, %v4416
  %v4463 = vmul.f32 %v1519, %v4421
  %v4464 = vmul.f32 %v1520, %v4426
  %v4465 = vmul.f32 %v1521, %v4431
  %v4466 = vmul.f32 %v1522, %v4436
  %v4467 = vmul.f32 %v1523, %v4441
  %v4468 = vmul.f32 %v1524, %v4446
  %v4469 = vmul.f32 %v1525, %v4451
  %4470 = vmatprep.subr.mxu0 0.0
  %4471 = vmatpush1.msra.mxu0 %v4469
  %4472 = vmatprep.subr.mxu0 0.0
  %4473 = vmatpush1.msra.mxu0 %v4468
  %4474 = vmatprep.subr.mxu0 0.0
  %4475 = vmatpush1.msra.mxu0 %v4467
  %4476 = vmatprep.subr.mxu0 0.0
  %4477 = vmatpush1.msra.mxu0 %v4466
  %4478 = vmatprep.subr.mxu0 0.0
  %4479 = vmatpush1.msra.mxu0 %v4465
  %4480 = vmatprep.subr.mxu0 0.0
  %4481 = vmatpush1.msra.mxu0 %v4464
  %4482 = vmatprep.subr.mxu0 0.0
  %4483 = vmatpush1.msra.mxu0 %v4463
  %4484 = vmatprep.subr.mxu0 0.0
  %4485 = vmatpush1.msra.mxu0 %v4462
  %4486 = vmatprep.subr.mxu0 0.0
  %4487 = vmatpush1.msra.mxu0 %v4461
  %4488 = vmatprep.subr.mxu0 0.0
  %4489 = vmatpush1.msra.mxu0 %v4460
  %4490 = vmatprep.subr.mxu0 0.0
  %4491 = vmatpush1.msra.mxu0 %v4459
  %4492 = vmatprep.subr.mxu0 0.0
  %4493 = vmatpush1.msra.mxu0 %v4458
  %4494 = vmatprep.subr.mxu0 0.0
  %4495 = vmatpush1.msra.mxu0 %v4457
  %4496 = vmatprep.subr.mxu0 0.0
  %4497 = vmatpush1.msra.mxu0 %v4456
  %4498 = vmatprep.subr.mxu0 0.0
  %4499 = vmatpush1.msra.mxu0 %v4455
  %4500 = vmatprep.subr.mxu0 0.0
  %4501 = vmatpush1.msra.mxu0 %v4454
  %4502 = vmatprep.subr.mxu0 0.0
  %4503 = vmatpush2.msra.mxu0 0.0
  %4504 = vmatprep.subr.mxu0 0.0
  %4505 = vmatpush2.msra.mxu0 0.0
  %4506 = vmatprep.subr.mxu0 0.0
  %4507 = vmatpush2.msra.mxu0 0.0
  %4508 = vmatprep.subr.mxu0 0.0
  %4509 = vmatpush2.msra.mxu0 0.0
  %4510 = vmatprep.subr.mxu0 0.0
  %4511 = vmatpush2.msra.mxu0 0.0
  %4512 = vmatprep.subr.mxu0 0.0
  %4513 = vmatpush2.msra.mxu0 0.0
  %4514 = vmatprep.subr.mxu0 0.0
  %4515 = vmatpush2.msra.mxu0 0.0
  %4516 = vmatprep.subr.mxu0 0.0
  %4517 = vmatpush2.msra.mxu0 0.0
  %4518 = vmatprep.subr.mxu0 0.0
  %4519 = vmatpush2.msra.mxu0 0.0
  %4520 = vmatprep.subr.mxu0 0.0
  %4521 = vmatpush2.msra.mxu0 0.0
  %4522 = vmatprep.subr.mxu0 0.0
  %4523 = vmatpush2.msra.mxu0 0.0
  %4524 = vmatprep.subr.mxu0 0.0
  %4525 = vmatpush2.msra.mxu0 0.0
  %4526 = vmatprep.subr.mxu0 0.0
  %4527 = vmatpush2.msra.mxu0 0.0
  %4528 = vmatprep.subr.mxu0 0.0
  %4529 = vmatpush2.msra.mxu0 0.0
  %4530 = vmatprep.subr.mxu0 0.0
  %4531 = vmatpush2.msra.mxu0 0.0
  %4532 = vmatprep.subr.mxu0 0.0
  %4533 = vmatpush2.msra.mxu0 0.0
  %4534 = vmatprep.mubr.f32.mxu0 0.0
  %4535 = vmatmul.mubr.f32.gmra.mxu0 %v33
  %v4536 = vpop.f32.mrf.mxu0
  %v4537 = vadd.f32 0.0, %v4536
  %v4538 = vpop.f32.mrf.mxu0
  %4539 = vdwg.mxu0
  %4540 = vmatprep.subr.mxu0 0.0
  %4541 = vmatpush1.msra.mxu0 %v49
  %4542 = vmatprep.subr.mxu0 0.0
  %4543 = vmatpush1.msra.mxu0 %v48
  %4544 = vmatprep.subr.mxu0 0.0
  %4545 = vmatpush1.msra.mxu0 %v47
  %4546 = vmatprep.subr.mxu0 0.0
  %4547 = vmatpush1.msra.mxu0 %v46
  %4548 = vmatprep.subr.mxu0 0.0
  %4549 = vmatpush1.msra.mxu0 %v45
  %4550 = vmatprep.subr.mxu0 0.0
  %4551 = vmatpush1.msra.mxu0 %v44
  %4552 = vmatprep.subr.mxu0 0.0
  %4553 = vmatpush1.msra.mxu0 %v43
  %4554 = vmatprep.subr.mxu0 0.0
  %4555 = vmatpush1.msra.mxu0 %v42
  %4556 = vmatprep.subr.mxu0 0.0
  %4557 = vmatpush1.msra.mxu0 %v41
  %4558 = vmatprep.subr.mxu0 0.0
  %4559 = vmatpush1.msra.mxu0 %v40
  %4560 = vmatprep.subr.mxu0 0.0
  %4561 = vmatpush1.msra.mxu0 %v39
  %4562 = vmatprep.subr.mxu0 0.0
  %4563 = vmatpush1.msra.mxu0 %v38
  %4564 = vmatprep.subr.mxu0 0.0
  %4565 = vmatpush1.msra.mxu0 %v37
  %4566 = vmatprep.subr.mxu0 0.0
  %4567 = vmatpush1.msra.mxu0 %v36
  %4568 = vmatprep.subr.mxu0 0.0
  %4569 = vmatpush1.msra.mxu0 %v35
  %4570 = vmatprep.subr.mxu0 0.0
  %4571 = vmatpush1.msra.mxu0 %v34
  %4572 = vmatprep.subr.mxu0 0.0
  %4573 = vmatpush2.msra.mxu0 0.0
  %4574 = vmatprep.subr.mxu0 0.0
  %4575 = vmatpush2.msra.mxu0 0.0
  %4576 = vmatprep.subr.mxu0 0.0
  %4577 = vmatpush2.msra.mxu0 0.0
  %4578 = vmatprep.subr.mxu0 0.0
  %4579 = vmatpush2.msra.mxu0 0.0
  %4580 = vmatprep.subr.mxu0 0.0
  %4581 = vmatpush2.msra.mxu0 0.0
  %4582 = vmatprep.subr.mxu0 0.0
  %4583 = vmatpush2.msra.mxu0 0.0
  %4584 = vmatprep.subr.mxu0 0.0
  %4585 = vmatpush2.msra.mxu0 0.0
  %4586 = vmatprep.subr.mxu0 0.0
  %4587 = vmatpush2.msra.mxu0 0.0
  %4588 = vmatprep.subr.mxu0 0.0
  %4589 = vmatpush2.msra.mxu0 0.0
  %4590 = vmatprep.subr.mxu0 0.0
  %4591 = vmatpush2.msra.mxu0 0.0
  %4592 = vmatprep.subr.mxu0 0.0
  %4593 = vmatpush2.msra.mxu0 0.0
  %4594 = vmatprep.subr.mxu0 0.0
  %4595 = vmatpush2.msra.mxu0 0.0
  %4596 = vmatprep.subr.mxu0 0.0
  %4597 = vmatpush2.msra.mxu0 0.0
  %4598 = vmatprep.subr.mxu0 0.0
  %4599 = vmatpush2.msra.mxu0 0.0
  %4600 = vmatprep.subr.mxu0 0.0
  %4601 = vmatpush2.msra.mxu0 0.0
  %4602 = vmatprep.subr.mxu0 0.0
  %4603 = vmatpush2.msra.mxu0 0.0
  %4604 = vmatprep.mubr.f32.mxu0 0.0
  %4605 = vmatmul.mubr.f32.gmra.mxu0 %v4537
  %v4606 = vpop.f32.mrf.mxu0
  %v4607 = vadd.f32 0.0, %v4606
  %v4608 = vpop.f32.mrf.mxu0
  %4609 = vdwg.mxu0
  %v4610 = vlaneseq
  %v4611 = vshrl.u32 %v4610, 7
  %v4612 = vsub.s32 0, %v4611
  %v4613 = vrot.slane %v4607, %v4612
  %v4614 = vlaneseq
  %v4615 = vshrl.u32 %v4614, 7
  %v4616 = vsub.s32 1, %v4615
  %v4617 = vrot.slane %v4607, %v4616
  %v4618 = vsel %vm1976, %v4617, %v4613
  %v4619 = vsel %vm1977, %v4617, %v4613
  %v4620 = vsel %vm1978, %v4617, %v4613
  %v4621 = vsel %vm1979, %v4617, %v4613
  %v4622 = vsel %vm1980, %v4617, %v4613
  %v4623 = vsel %vm1981, %v4617, %v4613
  %v4624 = vsel %vm1982, %v4617, %v4613
  %v4625 = vsel %vm1983, %v4617, %v4613
  %v4626 = vsel %vm1984, %v4617, %v4613
  %v4627 = vsel %vm1985, %v4617, %v4613
  %v4628 = vsel %vm1986, %v4617, %v4613
  %v4629 = vsel %vm1987, %v4617, %v4613
  %v4630 = vsel %vm1988, %v4617, %v4613
  %v4631 = vsel %vm1989, %v4617, %v4613
  %v4632 = vsel %vm1990, %v4617, %v4613
  %v4633 = vsel %vm1991, %v4617, %v4613
  %v4634 = vmul.f32 %v1489, %v4618
  %v4635 = vmul.f32 %v1490, %v4619
  %v4636 = vmul.f32 %v1491, %v4620
  %v4637 = vmul.f32 %v1492, %v4621
  %v4638 = vmul.f32 %v1493, %v4622
  %v4639 = vmul.f32 %v1494, %v4623
  %v4640 = vmul.f32 %v1495, %v4624
  %v4641 = vmul.f32 %v1496, %v4625
  %v4642 = vmul.f32 %v1497, %v4626
  %v4643 = vmul.f32 %v1498, %v4627
  %v4644 = vmul.f32 %v1499, %v4628
  %v4645 = vmul.f32 %v1500, %v4629
  %v4646 = vmul.f32 %v1501, %v4630
  %v4647 = vmul.f32 %v1502, %v4631
  %v4648 = vmul.f32 %v1503, %v4632
  %v4649 = vmul.f32 %v1504, %v4633
  %v4650 = vld [vmem:[%s3 + $0xe0] sm:$0xff]
  %v4651 = vld [vmem:[%s3 + $0xe8] sm:$0xff]
  %v4652 = vld [vmem:[%s3 + $0xf0] sm:$0xff]
  %v4653 = vld [vmem:[%s3 + $0xf8] sm:$0xff]
  %v4654 = vld [vmem:[%s3 + $0x106] sm:$0x1]
  %v4655 = vlaneseq
  %v4656 = vshrl.u32 %v4655, 7
  %v4657 = vsub.s32 0, %v4656
  %v4658 = vrot.slane %v4654, %v4657
  %4659 = vmatprep.subr.mxu0 0.0
  %4660 = vmatpush1.msra.mxu0 0.0
  %4661 = vmatprep.subr.mxu0 0.0
  %4662 = vmatpush1.msra.mxu0 0.0
  %4663 = vmatprep.subr.mxu0 0.0
  %4664 = vmatpush1.msra.mxu0 0.0
  %4665 = vmatprep.subr.mxu0 0.0
  %4666 = vmatpush1.msra.mxu0 0.0
  %4667 = vmatprep.subr.mxu0 0.0
  %4668 = vmatpush1.msra.mxu0 0.0
  %4669 = vmatprep.subr.mxu0 0.0
  %4670 = vmatpush1.msra.mxu0 0.0
  %4671 = vmatprep.subr.mxu0 0.0
  %4672 = vmatpush1.msra.mxu0 0.0
  %4673 = vmatprep.subr.mxu0 0.0
  %4674 = vmatpush1.msra.mxu0 0.0
  %4675 = vmatprep.subr.mxu0 0.0
  %4676 = vmatpush1.msra.mxu0 0.0
  %4677 = vmatprep.subr.mxu0 0.0
  %4678 = vmatpush1.msra.mxu0 0.0
  %4679 = vmatprep.subr.mxu0 0.0
  %4680 = vmatpush1.msra.mxu0 0.0
  %4681 = vmatprep.subr.mxu0 0.0
  %4682 = vmatpush1.msra.mxu0 0.0
  %4683 = vmatprep.subr.mxu0 0.0
  %4684 = vmatpush1.msra.mxu0 %v4653
  %4685 = vmatprep.subr.mxu0 0.0
  %4686 = vmatpush1.msra.mxu0 %v4652
  %4687 = vmatprep.subr.mxu0 0.0
  %4688 = vmatpush1.msra.mxu0 %v4651
  %4689 = vmatprep.subr.mxu0 0.0
  %4690 = vmatpush1.msra.mxu0 %v4650
  %4691 = vmatprep.subr.mxu0 0.0
  %4692 = vmatpush2.msra.mxu0 0.0
  %4693 = vmatprep.subr.mxu0 0.0
  %4694 = vmatpush2.msra.mxu0 0.0
  %4695 = vmatprep.subr.mxu0 0.0
  %4696 = vmatpush2.msra.mxu0 0.0
  %4697 = vmatprep.subr.mxu0 0.0
  %4698 = vmatpush2.msra.mxu0 0.0
  %4699 = vmatprep.subr.mxu0 0.0
  %4700 = vmatpush2.msra.mxu0 0.0
  %4701 = vmatprep.subr.mxu0 0.0
  %4702 = vmatpush2.msra.mxu0 0.0
  %4703 = vmatprep.subr.mxu0 0.0
  %4704 = vmatpush2.msra.mxu0 0.0
  %4705 = vmatprep.subr.mxu0 0.0
  %4706 = vmatpush2.msra.mxu0 0.0
  %4707 = vmatprep.subr.mxu0 0.0
  %4708 = vmatpush2.msra.mxu0 0.0
  %4709 = vmatprep.subr.mxu0 0.0
  %4710 = vmatpush2.msra.mxu0 0.0
  %4711 = vmatprep.subr.mxu0 0.0
  %4712 = vmatpush2.msra.mxu0 0.0
  %4713 = vmatprep.subr.mxu0 0.0
  %4714 = vmatpush2.msra.mxu0 0.0
  %4715 = vmatprep.subr.mxu0 0.0
  %4716 = vmatpush2.msra.mxu0 0.0
  %4717 = vmatprep.subr.mxu0 0.0
  %4718 = vmatpush2.msra.mxu0 0.0
  %4719 = vmatprep.subr.mxu0 0.0
  %4720 = vmatpush2.msra.mxu0 0.0
  %4721 = vmatprep.subr.mxu0 0.0
  %4722 = vmatpush2.msra.mxu0 0.0
  %4723 = vmatprep.mubr.f32.mxu0 0.0
  %4724 = vmatmul.mubr.f32.gmra.mxu0 %v4262
  %v4725 = vpop.f32.mrf.mxu0
  %v4726 = vadd.f32 %v4658, %v4725
  %v4727 = vpop.f32.mrf.mxu0
  %4728 = vmatprep.mubr.f32.mxu0 0.0
  %4729 = vmatmul.mubr.f32.gmra.mxu0 %v4265
  %v4730 = vpop.f32.mrf.mxu0
  %v4731 = vadd.f32 %v4658, %v4730
  %v4732 = vpop.f32.mrf.mxu0
  %4733 = vmatprep.mubr.f32.mxu0 0.0
  %4734 = vmatmul.mubr.f32.gmra.mxu0 %v4268
  %v4735 = vpop.f32.mrf.mxu0
  %v4736 = vadd.f32 %v4658, %v4735
  %v4737 = vpop.f32.mrf.mxu0
  %4738 = vmatprep.mubr.f32.mxu0 0.0
  %4739 = vmatmul.mubr.f32.gmra.mxu0 %v4271
  %v4740 = vpop.f32.mrf.mxu0
  %v4741 = vadd.f32 %v4658, %v4740
  %v4742 = vpop.f32.mrf.mxu0
  %4743 = vmatprep.mubr.f32.mxu0 0.0
  %4744 = vmatmul.mubr.f32.gmra.mxu0 %v4274
  %v4745 = vpop.f32.mrf.mxu0
  %v4746 = vadd.f32 %v4658, %v4745
  %v4747 = vpop.f32.mrf.mxu0
  %4748 = vmatprep.mubr.f32.mxu0 0.0
  %4749 = vmatmul.mubr.f32.gmra.mxu0 %v4277
  %v4750 = vpop.f32.mrf.mxu0
  %v4751 = vadd.f32 %v4658, %v4750
  %v4752 = vpop.f32.mrf.mxu0
  %4753 = vmatprep.mubr.f32.mxu0 0.0
  %4754 = vmatmul.mubr.f32.gmra.mxu0 %v4280
  %v4755 = vpop.f32.mrf.mxu0
  %v4756 = vadd.f32 %v4658, %v4755
  %v4757 = vpop.f32.mrf.mxu0
  %4758 = vmatprep.mubr.f32.mxu0 0.0
  %4759 = vmatmul.mubr.f32.gmra.mxu0 %v4283
  %v4760 = vpop.f32.mrf.mxu0
  %v4761 = vadd.f32 %v4658, %v4760
  %v4762 = vpop.f32.mrf.mxu0
  %4763 = vmatprep.mubr.f32.mxu0 0.0
  %4764 = vmatmul.mubr.f32.gmra.mxu0 %v4286
  %v4765 = vpop.f32.mrf.mxu0
  %v4766 = vadd.f32 %v4658, %v4765
  %v4767 = vpop.f32.mrf.mxu0
  %4768 = vmatprep.mubr.f32.mxu0 0.0
  %4769 = vmatmul.mubr.f32.gmra.mxu0 %v4289
  %v4770 = vpop.f32.mrf.mxu0
  %v4771 = vadd.f32 %v4658, %v4770
  %v4772 = vpop.f32.mrf.mxu0
  %4773 = vmatprep.mubr.f32.mxu0 0.0
  %4774 = vmatmul.mubr.f32.gmra.mxu0 %v4292
  %v4775 = vpop.f32.mrf.mxu0
  %v4776 = vadd.f32 %v4658, %v4775
  %v4777 = vpop.f32.mrf.mxu0
  %4778 = vmatprep.mubr.f32.mxu0 0.0
  %4779 = vmatmul.mubr.f32.gmra.mxu0 %v4295
  %v4780 = vpop.f32.mrf.mxu0
  %v4781 = vadd.f32 %v4658, %v4780
  %v4782 = vpop.f32.mrf.mxu0
  %4783 = vmatprep.mubr.f32.mxu0 0.0
  %4784 = vmatmul.mubr.f32.gmra.mxu0 %v4298
  %v4785 = vpop.f32.mrf.mxu0
  %v4786 = vadd.f32 %v4658, %v4785
  %v4787 = vpop.f32.mrf.mxu0
  %4788 = vmatprep.mubr.f32.mxu0 0.0
  %4789 = vmatmul.mubr.f32.gmra.mxu0 %v4301
  %v4790 = vpop.f32.mrf.mxu0
  %v4791 = vadd.f32 %v4658, %v4790
  %v4792 = vpop.f32.mrf.mxu0
  %4793 = vmatprep.mubr.f32.mxu0 0.0
  %4794 = vmatmul.mubr.f32.gmra.mxu0 %v4304
  %v4795 = vpop.f32.mrf.mxu0
  %v4796 = vadd.f32 %v4658, %v4795
  %v4797 = vpop.f32.mrf.mxu0
  %4798 = vmatprep.mubr.f32.mxu0 0.0
  %4799 = vmatmul.mubr.f32.gmra.mxu0 %v4307
  %v4800 = vpop.f32.mrf.mxu0
  %v4801 = vadd.f32 %v4658, %v4800
  %v4802 = vpop.f32.mrf.mxu0
  %4803 = vdwg.mxu0
  %4804 = vmatprep.subr.mxu0 0.0
  %4805 = vmatpush1.msra.mxu0 %v69
  %4806 = vmatprep.subr.mxu0 0.0
  %4807 = vmatpush1.msra.mxu0 %v68
  %4808 = vmatprep.subr.mxu0 0.0
  %4809 = vmatpush1.msra.mxu0 %v67
  %4810 = vmatprep.subr.mxu0 0.0
  %4811 = vmatpush1.msra.mxu0 %v66
  %4812 = vmatprep.subr.mxu0 0.0
  %4813 = vmatpush1.msra.mxu0 %v65
  %4814 = vmatprep.subr.mxu0 0.0
  %4815 = vmatpush1.msra.mxu0 %v64
  %4816 = vmatprep.subr.mxu0 0.0
  %4817 = vmatpush1.msra.mxu0 %v63
  %4818 = vmatprep.subr.mxu0 0.0
  %4819 = vmatpush1.msra.mxu0 %v62
  %4820 = vmatprep.subr.mxu0 0.0
  %4821 = vmatpush1.msra.mxu0 %v61
  %4822 = vmatprep.subr.mxu0 0.0
  %4823 = vmatpush1.msra.mxu0 %v60
  %4824 = vmatprep.subr.mxu0 0.0
  %4825 = vmatpush1.msra.mxu0 %v59
  %4826 = vmatprep.subr.mxu0 0.0
  %4827 = vmatpush1.msra.mxu0 %v58
  %4828 = vmatprep.subr.mxu0 0.0
  %4829 = vmatpush1.msra.mxu0 %v57
  %4830 = vmatprep.subr.mxu0 0.0
  %4831 = vmatpush1.msra.mxu0 %v56
  %4832 = vmatprep.subr.mxu0 0.0
  %4833 = vmatpush1.msra.mxu0 %v55
  %4834 = vmatprep.subr.mxu0 0.0
  %4835 = vmatpush1.msra.mxu0 %v54
  %4836 = vmatprep.subr.mxu0 0.0
  %4837 = vmatpush2.msra.mxu0 0.0
  %4838 = vmatprep.subr.mxu0 0.0
  %4839 = vmatpush2.msra.mxu0 0.0
  %4840 = vmatprep.subr.mxu0 0.0
  %4841 = vmatpush2.msra.mxu0 0.0
  %4842 = vmatprep.subr.mxu0 0.0
  %4843 = vmatpush2.msra.mxu0 0.0
  %4844 = vmatprep.subr.mxu0 0.0
  %4845 = vmatpush2.msra.mxu0 0.0
  %4846 = vmatprep.subr.mxu0 0.0
  %4847 = vmatpush2.msra.mxu0 0.0
  %4848 = vmatprep.subr.mxu0 0.0
  %4849 = vmatpush2.msra.mxu0 0.0
  %4850 = vmatprep.subr.mxu0 0.0
  %4851 = vmatpush2.msra.mxu0 0.0
  %4852 = vmatprep.subr.mxu0 0.0
  %4853 = vmatpush2.msra.mxu0 0.0
  %4854 = vmatprep.subr.mxu0 0.0
  %4855 = vmatpush2.msra.mxu0 0.0
  %4856 = vmatprep.subr.mxu0 0.0
  %4857 = vmatpush2.msra.mxu0 0.0
  %4858 = vmatprep.subr.mxu0 0.0
  %4859 = vmatpush2.msra.mxu0 0.0
  %4860 = vmatprep.subr.mxu0 0.0
  %4861 = vmatpush2.msra.mxu0 0.0
  %4862 = vmatprep.subr.mxu0 0.0
  %4863 = vmatpush2.msra.mxu0 0.0
  %4864 = vmatprep.subr.mxu0 0.0
  %4865 = vmatpush2.msra.mxu0 0.0
  %4866 = vmatprep.subr.mxu0 0.0
  %4867 = vmatpush2.msra.mxu0 0.0
  %4868 = vmatprep.mubr.f32.mxu0 0.0
  %4869 = vmatmul.mubr.f32.gmra.mxu0 %v4634
  %v4870 = vpop.f32.mrf.mxu0
  %v4871 = vadd.f32 %v4726, %v4870
  %v4872 = vpop.f32.mrf.mxu0
  %4873 = vmatprep.mubr.f32.mxu0 0.0
  %4874 = vmatmul.mubr.f32.gmra.mxu0 %v4635
  %v4875 = vpop.f32.mrf.mxu0
  %v4876 = vadd.f32 %v4731, %v4875
  %v4877 = vpop.f32.mrf.mxu0
  %4878 = vmatprep.mubr.f32.mxu0 0.0
  %4879 = vmatmul.mubr.f32.gmra.mxu0 %v4636
  %v4880 = vpop.f32.mrf.mxu0
  %v4881 = vadd.f32 %v4736, %v4880
  %v4882 = vpop.f32.mrf.mxu0
  %4883 = vmatprep.mubr.f32.mxu0 0.0
  %4884 = vmatmul.mubr.f32.gmra.mxu0 %v4637
  %v4885 = vpop.f32.mrf.mxu0
  %v4886 = vadd.f32 %v4741, %v4885
  %v4887 = vpop.f32.mrf.mxu0
  %4888 = vmatprep.mubr.f32.mxu0 0.0
  %4889 = vmatmul.mubr.f32.gmra.mxu0 %v4638
  %v4890 = vpop.f32.mrf.mxu0
  %v4891 = vadd.f32 %v4746, %v4890
  %v4892 = vpop.f32.mrf.mxu0
  %4893 = vmatprep.mubr.f32.mxu0 0.0
  %4894 = vmatmul.mubr.f32.gmra.mxu0 %v4639
  %v4895 = vpop.f32.mrf.mxu0
  %v4896 = vadd.f32 %v4751, %v4895
  %v4897 = vpop.f32.mrf.mxu0
  %4898 = vmatprep.mubr.f32.mxu0 0.0
  %4899 = vmatmul.mubr.f32.gmra.mxu0 %v4640
  %v4900 = vpop.f32.mrf.mxu0
  %v4901 = vadd.f32 %v4756, %v4900
  %v4902 = vpop.f32.mrf.mxu0
  %4903 = vmatprep.mubr.f32.mxu0 0.0
  %4904 = vmatmul.mubr.f32.gmra.mxu0 %v4641
  %v4905 = vpop.f32.mrf.mxu0
  %v4906 = vadd.f32 %v4761, %v4905
  %v4907 = vpop.f32.mrf.mxu0
  %4908 = vmatprep.mubr.f32.mxu0 0.0
  %4909 = vmatmul.mubr.f32.gmra.mxu0 %v4642
  %v4910 = vpop.f32.mrf.mxu0
  %v4911 = vadd.f32 %v4766, %v4910
  %v4912 = vpop.f32.mrf.mxu0
  %4913 = vmatprep.mubr.f32.mxu0 0.0
  %4914 = vmatmul.mubr.f32.gmra.mxu0 %v4643
  %v4915 = vpop.f32.mrf.mxu0
  %v4916 = vadd.f32 %v4771, %v4915
  %v4917 = vpop.f32.mrf.mxu0
  %4918 = vmatprep.mubr.f32.mxu0 0.0
  %4919 = vmatmul.mubr.f32.gmra.mxu0 %v4644
  %v4920 = vpop.f32.mrf.mxu0
  %v4921 = vadd.f32 %v4776, %v4920
  %v4922 = vpop.f32.mrf.mxu0
  %4923 = vmatprep.mubr.f32.mxu0 0.0
  %4924 = vmatmul.mubr.f32.gmra.mxu0 %v4645
  %v4925 = vpop.f32.mrf.mxu0
  %v4926 = vadd.f32 %v4781, %v4925
  %v4927 = vpop.f32.mrf.mxu0
  %4928 = vmatprep.mubr.f32.mxu0 0.0
  %4929 = vmatmul.mubr.f32.gmra.mxu0 %v4646
  %v4930 = vpop.f32.mrf.mxu0
  %v4931 = vadd.f32 %v4786, %v4930
  %v4932 = vpop.f32.mrf.mxu0
  %4933 = vmatprep.mubr.f32.mxu0 0.0
  %4934 = vmatmul.mubr.f32.gmra.mxu0 %v4647
  %v4935 = vpop.f32.mrf.mxu0
  %v4936 = vadd.f32 %v4791, %v4935
  %v4937 = vpop.f32.mrf.mxu0
  %4938 = vmatprep.mubr.f32.mxu0 0.0
  %4939 = vmatmul.mubr.f32.gmra.mxu0 %v4648
  %v4940 = vpop.f32.mrf.mxu0
  %v4941 = vadd.f32 %v4796, %v4940
  %v4942 = vpop.f32.mrf.mxu0
  %4943 = vmatprep.mubr.f32.mxu0 0.0
  %4944 = vmatmul.mubr.f32.gmra.mxu0 %v4649
  %v4945 = vpop.f32.mrf.mxu0
  %v4946 = vadd.f32 %v4801, %v4945
  %v4947 = vpop.f32.mrf.mxu0
  %4948 = vdwg.mxu0
  %v4949 = vld [vmem:[%s3 + $0x10d] sm:$0x1]
  %v4950 = vld [vmem:[%s3 + $0x10e] sm:$0x1]
  %4952 = vset.pattern.permute.xlu0 0
  %4953 = vperm.xlu0 %4952, %v4950
  %v4954 = vpop.permute.xlu0 %4953
  %v4957 = vsel %vm1622, %v4949, 0
  %v4960 = vsel %vm1622, %v4871, 0
  %v4963 = vsel %vm1622, %v4876, 0
  %v4966 = vsel %vm1622, %v4881, 0
  %v4969 = vsel %vm1622, %v4886, 0
  %v4972 = vsel %vm1622, %v4891, 0
  %v4975 = vsel %vm1622, %v4896, 0
  %v4978 = vsel %vm1622, %v4901, 0
  %v4981 = vsel %vm1622, %v4906, 0
  %v4984 = vsel %vm1622, %v4911, 0
  %v4987 = vsel %vm1622, %v4916, 0
  %v4990 = vsel %vm1622, %v4921, 0
  %v4993 = vsel %vm1622, %v4926, 0
  %v4996 = vsel %vm1622, %v4931, 0
  %v4999 = vsel %vm1622, %v4936, 0
  %v5002 = vsel %vm1622, %v4941, 0
  %v5005 = vsel %vm1622, %v4946, 0
  %5007 = vmatprep.subr.mxu0 0.0
  %5008 = vmatpush1.xpose.msra.mxu0 %v5005
  %5009 = vmatprep.subr.mxu0 0.0
  %5010 = vmatpush1.xpose.msra.mxu0 %v5002
  %5011 = vmatprep.subr.mxu0 0.0
  %5012 = vmatpush1.xpose.msra.mxu0 %v4999
  %5013 = vmatprep.subr.mxu0 0.0
  %5014 = vmatpush1.xpose.msra.mxu0 %v4996
  %5015 = vmatprep.subr.mxu0 0.0
  %5016 = vmatpush1.xpose.msra.mxu0 %v4993
  %5017 = vmatprep.subr.mxu0 0.0
  %5018 = vmatpush1.xpose.msra.mxu0 %v4990
  %5019 = vmatprep.subr.mxu0 0.0
  %5020 = vmatpush1.xpose.msra.mxu0 %v4987
  %5021 = vmatprep.subr.mxu0 0.0
  %5022 = vmatpush1.xpose.msra.mxu0 %v4984
  %5023 = vmatprep.subr.mxu0 0.0
  %5024 = vmatpush1.xpose.msra.mxu0 %v4981
  %5025 = vmatprep.subr.mxu0 0.0
  %5026 = vmatpush1.xpose.msra.mxu0 %v4978
  %5027 = vmatprep.subr.mxu0 0.0
  %5028 = vmatpush1.xpose.msra.mxu0 %v4975
  %5029 = vmatprep.subr.mxu0 0.0
  %5030 = vmatpush1.xpose.msra.mxu0 %v4972
  %5031 = vmatprep.subr.mxu0 0.0
  %5032 = vmatpush1.xpose.msra.mxu0 %v4969
  %5033 = vmatprep.subr.mxu0 0.0
  %5034 = vmatpush1.xpose.msra.mxu0 %v4966
  %5035 = vmatprep.subr.mxu0 0.0
  %5036 = vmatpush1.xpose.msra.mxu0 %v4963
  %5037 = vmatprep.subr.mxu0 0.0
  %5038 = vmatpush1.xpose.msra.mxu0 %v4960
  %5039 = vmatprep.subr.mxu0 0.0
  %5040 = vmatpush2.xpose.msra.mxu0 0.0
  %5041 = vmatprep.subr.mxu0 0.0
  %5042 = vmatpush2.xpose.msra.mxu0 0.0
  %5043 = vmatprep.subr.mxu0 0.0
  %5044 = vmatpush2.xpose.msra.mxu0 0.0
  %5045 = vmatprep.subr.mxu0 0.0
  %5046 = vmatpush2.xpose.msra.mxu0 0.0
  %5047 = vmatprep.subr.mxu0 0.0
  %5048 = vmatpush2.xpose.msra.mxu0 0.0
  %5049 = vmatprep.subr.mxu0 0.0
  %5050 = vmatpush2.xpose.msra.mxu0 0.0
  %5051 = vmatprep.subr.mxu0 0.0
  %5052 = vmatpush2.xpose.msra.mxu0 0.0
  %5053 = vmatprep.subr.mxu0 0.0
  %5054 = vmatpush2.xpose.msra.mxu0 0.0
  %5055 = vmatprep.subr.mxu0 0.0
  %5056 = vmatpush2.xpose.msra.mxu0 0.0
  %5057 = vmatprep.subr.mxu0 0.0
  %5058 = vmatpush2.xpose.msra.mxu0 0.0
  %5059 = vmatprep.subr.mxu0 0.0
  %5060 = vmatpush2.xpose.msra.mxu0 0.0
  %5061 = vmatprep.subr.mxu0 0.0
  %5062 = vmatpush2.xpose.msra.mxu0 0.0
  %5063 = vmatprep.subr.mxu0 0.0
  %5064 = vmatpush2.xpose.msra.mxu0 0.0
  %5065 = vmatprep.subr.mxu0 0.0
  %5066 = vmatpush2.xpose.msra.mxu0 0.0
  %5067 = vmatprep.subr.mxu0 0.0
  %5068 = vmatpush2.xpose.msra.mxu0 0.0
  %5069 = vmatprep.subr.mxu0 0.0
  %5070 = vmatpush2.xpose.msra.mxu0 0.0
  %5071 = vmatprep.mubr.f32.mxu0 0.0
  %5072 = vmatmul.mubr.f32.gmra.mxu0 %v4957
  %v5073 = vpop.f32.mrf.mxu0
  %v5074 = vadd.f32 %v4954, %v5073
  %v5075 = vpop.f32.mrf.mxu0
  %5076 = vdwg.mxu0
  %5077 = vst [vmem:[%s4] sm:$0x1] %v5074
  // Predicated region
  $region18: #{lrnol_forward.1} parent=0 // pred_check
    _
  $region19: #{lrnol_forward.1} parent=0 // pred_check_branch
    %5079 = sbr.rel (0) target = $region21
  $region20: #{lrnol_forward.1} parent=0 // pred_region
    _
  $region21: #{lrnol_forward.1} parent=0 // pred_fallthru
    _
  // Predicated region
  $region22: #{lrnol_forward.1} parent=0 // pred_check
    _
  $region23: #{lrnol_forward.1} parent=0 // pred_check_branch
    %5081 = sbr.rel (0) target = $region25
  $region24: #{lrnol_forward.1} parent=0 // pred_region
    _
  $region25: #{lrnol_forward.1} parent=0 // pred_fallthru
    _

</llo_original>
